<compile_context>
chip_gen: v7x
topology: tpu7x:2x2x1
jax: 0.10.0
libtpu: 0.0.40
codegen_flags: <defaults>
</compile_context>

<pallas_src>
import jax
import jax.numpy as jnp
from jax import lax
from jax.experimental import pallas as pl
from jax.experimental.pallas import tpu as pltpu


# ----------------------------- kernel helpers ------------------------------

def _leaky_relu(x, leak):
    return jnp.where(x >= 0, x, leak * x)


def _instance_norm(x, eps=1e-5):
    # InstanceNorm1d (affine=False): per-(sample, channel) normalization over
    # the temporal (lane) axis with biased variance, in f32.
    m = jnp.mean(x, axis=-1, keepdims=True)
    c = x - m
    v = jnp.mean(c * c, axis=-1, keepdims=True)
    return c * lax.rsqrt(v + eps)


def _cat(parts, axis):
    return parts[0] if len(parts) == 1 else jnp.concatenate(parts, axis=axis)


def _make_kernel(*, bt, n_layers, k0, layer_cfg, leak, mm_dtype, out_pad):
    """layer_cfg: static tuple of (kA, dilation, pad, shift) per residual layer."""

    def kernel(x_ref, w_init_ref, *rest):
        layer_refs = rest[:2 * n_layers]
        shrink_w_ref = rest[2 * n_layers]        # (channels, 1) f32
        shrink_b_ref = rest[2 * n_layers + 1]    # (1, 1) f32
        out_ref = rest[2 * n_layers + 2]         # (bt, out_len + out_pad)

        T = x_ref.shape[1]
        lout0 = T - (k0 - 1)

        # ------------------ first conv: one MXU contraction ------------------
        # x is streamed in its native (bt, T, C_in) layout; cast once to bf16,
        # stack the k0 taps along the channel axis and the bt samples along the
        # row axis, then contract over (k0*C_in) — the contraction doubles as
        # the NTC -> NCT transpose.
        x16 = x_ref[...].astype(mm_dtype)                       # (bt, T, C_in)
        xs0_parts = []
        for b in range(bt):
            xb = x16[b]                                          # (T, C_in)
            if k0 == 1:
                xs0_parts.append(xb)
            else:
                xs0_parts.append(
                    _cat([xb[k:k + lout0, :] for k in range(k0)], axis=1))
        xs0 = _cat(xs0_parts, axis=0)                            # (bt*lout0, k0*C_in)
        # (C_out, k0*C_in) x (bt*lout0, k0*C_in)^T -> (C_out, bt*lout0)
        y0 = lax.dot_general(
            w_init_ref[...], xs0,
            dimension_numbers=(((1,), (1,)), ((), ())),
            preferred_element_type=jnp.float32)
        hs = [_leaky_relu(_instance_norm(y0[:, b * lout0:(b + 1) * lout0]), leak)
              for b in range(bt)]                                # bt x (C, lout0) f32

        # --------------------------- residual layers --------------------------
        for i, (kA, dil, pad, shift) in enumerate(layer_cfg):
            wA_ref = layer_refs[2 * i]
            wB_ref = layer_refs[2 * i + 1]
            L = hs[0].shape[1]
            lout = L - (kA - 1) * dil

            # conv A: taps stacked on the contraction (sublane) axis, samples
            # concatenated on the lane axis -> a single matmul, N = bt*lout.
            h16 = [h.astype(mm_dtype) for h in hs]               # cast BEFORE stacking
            if kA == 1:
                xsA = _cat(h16, axis=1)
            else:
                xsA = _cat(
                    [_cat([hb[:, k * dil:k * dil + lout] for k in range(kA)], axis=0)
                     for hb in h16],
                    axis=1)                                      # (kA*C, bt*lout)
            yA = jnp.dot(wA_ref[...], xsA, preferred_element_type=jnp.float32)
            ya = [_leaky_relu(_instance_norm(yA[:, b * lout:(b + 1) * lout]), leak)
                  for b in range(bt)]

            # conv B (1x1): again one matmul over the whole batch tile.
            xsB = _cat([y.astype(mm_dtype) for y in ya], axis=1)  # (C, bt*lout)
            yB = jnp.dot(wB_ref[...], xsB, preferred_element_type=jnp.float32)

            new_hs = []
            for b in range(bt):
                yb = _leaky_relu(_instance_norm(yB[:, b * lout:(b + 1) * lout]), leak)
                res = hs[b][:, pad + shift:L - pad + shift]       # residual slice
                new_hs.append(res + yb)
            hs = new_hs

        # ------------ shrink (1x1 conv, with bias) + lane-dense store ------------
        # f32 multiply + sublane reduction per sample (avoids an M=1 matmul),
        # then a single full-block, lane-dense store for the whole batch tile.
        rows = [jnp.sum(h * shrink_w_ref[...], axis=0, keepdims=True) for h in hs]
        out = _cat(rows, axis=0) + shrink_b_ref[...]              # (bt, out_len)
        if out_pad > 0:
            out = jnp.concatenate(
                [out, jnp.zeros((bt, out_pad), out.dtype)], axis=1)
        out_ref[...] = out.astype(out_ref.dtype)

    return kernel


# ------------------------------- wrapper ------------------------------------

def _round_up(x, m):
    return ((x + m - 1) // m) * m


def _vmem_limit_bytes():
    # ~75% of physical VMEM (capped at 100 MiB); conservative 48 MiB fallback
    # (safe on v7x's 64 MiB, above v5e/v6e scoped defaults).
    try:
        cap = int(pltpu.get_tpu_info().vmem_capacity_bytes)
        return max(32 * 1024 * 1024, min(cap * 3 // 4, 100 * 1024 * 1024))
    except Exception:
        return 48 * 1024 * 1024


def _padded_2d_bytes(shape, itemsize):
    rows = _round_up(shape[-2], 8) if len(shape) >= 2 else 1
    cols = _round_up(shape[-1], 128)
    lead = 1
    for d in shape[:-2]:
        lead *= d
    return lead * rows * cols * itemsize


def _estimate_step_vmem(bt, T, in_features, channels, out_len_pad,
                        layer_cfg, k0, weight_bytes):
    """Rough per-grid-step VMEM estimate (bytes) for batch tile bt."""
    lane_T = _round_up(T, 128)
    max_k = max([k0] + [k for (k, _, _, _) in layer_cfg])
    by = 0
    by += 2 * bt * _round_up(T, 8) * _round_up(in_features, 128) * 4   # input block, double buffered
    by += 2 * _round_up(bt, 8) * out_len_pad * 4                       # output block, double buffered
    by += 2 * weight_bytes                                             # weights, double buffered
    by += bt * _round_up(T, 8) * _round_up(k0 * in_features, 128) * 2  # first-conv tap slab (bf16)
    # per-layer peak: f32 h + bf16 copy + bf16 tap slab + two f32 matmul slabs
    by += bt * channels * lane_T * (4 + 2 + 2 * max_k + 8)
    return by


def _pick_batch_tile(B, budget_bytes, est_fn, cap=8):
    # Largest divisor of B (<= cap) whose VMEM estimate fits the budget.
    best = 1
    for bt in range(1, min(B, cap) + 1):
        if B % bt == 0 and est_fn(bt) <= budget_bytes:
            best = bt
    return best


def discriminator_forward(x, params, filter_widths, channels, leak,
                          causal=False, dense=False, batch_tile=None,
                          mm_dtype=jnp.bfloat16):
    """x: (B, T, in_features) float32, matching the PyTorch forward input."""
    B, T, in_features = x.shape

    # --- static pad / shift / dilation bookkeeping (mirrors the module) ---
    k0 = filter_widths[0]
    assert T >= k0, f"sequence length {T} shorter than first filter {k0}"
    layer_cfg = []
    next_dilation = k0
    out_len = T - (k0 - 1)
    for i in range(1, len(filter_widths)):
        pad = (filter_widths[i] - 1) * next_dilation // 2
        shift = filter_widths[i] // 2 * next_dilation if causal else 0
        kA = filter_widths[i] if not dense else 2 * pad + 1
        dil = 1 if dense else next_dilation
        layer_cfg.append((kA, dil, pad, shift))
        out_len -= 2 * pad
        next_dilation *= filter_widths[i]
    assert out_len >= 1, f"sequence length {T} too short for filter stack (out_len={out_len})"
    n_layers = len(layer_cfg)

    # --- weights: stack taps into the contraction dim: (O, I, K) -> (O, K*I), bf16 ---
    def stack_taps(w):
        o, i_, k = w.shape
        return jnp.transpose(w, (0, 2, 1)).reshape(o, k * i_).astype(mm_dtype)

    w_init = stack_taps(params['w_init'])
    layer_ws = []
    for i in range(1, len(filter_widths)):
        layer_ws.append(stack_taps(params[f'wA_{i}']))
        layer_ws.append(stack_taps(params[f'wB_{i}']))
    shrink_w = params['shrink_w'].reshape(channels, 1).astype(jnp.float32)
    shrink_b = params['shrink_b'].reshape(1, 1).astype(jnp.float32)

    weight_bytes = (_padded_2d_bytes(w_init.shape, 2)
                    + sum(_padded_2d_bytes(w.shape, 2) for w in layer_ws)
                    + _padded_2d_bytes(shrink_w.shape, 4)
                    + _padded_2d_bytes(shrink_b.shape, 4))

    # --- lane-dense output padding (unmasked full-block stores) ---
    out_len_pad = _round_up(out_len, 128)
    out_pad = out_len_pad - out_len

    # --- batch tiling by VMEM fit ---
    vmem_limit = _vmem_limit_bytes()
    if batch_tile is not None:
        bt = batch_tile
    else:
        budget = int(vmem_limit * 0.8)
        bt = _pick_batch_tile(
            B, budget,
            lambda b: _estimate_step_vmem(b, T, in_features, channels,
                                          out_len_pad, layer_cfg, k0,
                                          weight_bytes))
    assert B % bt == 0, (B, bt)
    n_blocks = B // bt

    kernel = _make_kernel(bt=bt, n_layers=n_layers, k0=k0,
                          layer_cfg=tuple(layer_cfg), leak=leak,
                          mm_dtype=mm_dtype, out_pad=out_pad)

    def full_spec(arr):                       # all weights are 2D, loaded whole
        return pl.BlockSpec(arr.shape, lambda g: (0, 0))

    in_specs = [pl.BlockSpec((bt, T, in_features), lambda g: (g, 0, 0)),
                full_spec(w_init)]
    in_specs += [full_spec(w) for w in layer_ws]
    in_specs += [full_spec(shrink_w), full_spec(shrink_b)]

    out_specs = pl.BlockSpec((None, bt, out_len_pad), lambda g: (g, 0, 0))
    out_shape = jax.ShapeDtypeStruct((n_blocks, bt, out_len_pad), jnp.float32)

    fn = pl.pallas_call(
        kernel,
        grid=(n_blocks,),
        in_specs=in_specs,
        out_specs=out_specs,
        out_shape=out_shape,
        compiler_params=pltpu.CompilerParams(
            dimension_semantics=("parallel",),
            vmem_limit_bytes=vmem_limit),
    )
    out = fn(x, w_init, *layer_ws, shrink_w, shrink_b)
    out = out.reshape(B, out_len_pad)[:, :out_len]     # strip lane padding
    return jnp.squeeze(out)                            # same as torch .squeeze()


# ------------------------- pure-JAX reference --------------------------------

def reference_forward(x, params, filter_widths, channels, leak,
                      causal=False, dense=False):
    xh = jnp.transpose(x, (0, 2, 1))                      # (B, C, T)

    def conv(h, w, dilation):
        return jax.lax.conv_general_dilated(
            h, w, window_strides=(1,), padding='VALID',
            rhs_dilation=(dilation,),
            dimension_numbers=('NCH', 'OIH', 'NCH'))

    def inorm(h):
        m = jnp.mean(h, axis=-1, keepdims=True)
        v = jnp.mean((h - m) ** 2, axis=-1, keepdims=True)
        return (h - m) / jnp.sqrt(v + 1e-5)

    def lrelu(h):
        return jnp.where(h >= 0, h, leak * h)

    h = lrelu(inorm(conv(xh, params['w_init'], 1)))
    next_dilation = filter_widths[0]
    for i in range(1, len(filter_widths)):
        pad = (filter_widths[i] - 1) * next_dilation // 2
        shift = filter_widths[i] // 2 * next_dilation if causal else 0
        L = h.shape[2]
        res = h[:, :, pad + shift:L - pad + shift]
        dil = 1 if dense else next_dilation
        y = lrelu(inorm(conv(h, params[f'wA_{i}'], dil)))
        y = lrelu(inorm(conv(y, params[f'wB_{i}'], 1)))
        h = res + y
        next_dilation *= filter_widths[i]
    out = conv(h, params['shrink_w'].reshape(1, channels, 1), 1)
    out = out + params['shrink_b'].reshape(1, 1, 1)
    return jnp.squeeze(out)


# --------------------------- deterministic params ----------------------------

def init_params(key, in_features, filter_widths, channels, dense=False):
    params = {}
    keys = jax.random.split(key, 2 * len(filter_widths) + 2)
    k0 = filter_widths[0]
    params['w_init'] = jax.random.normal(
        keys[0], (channels, in_features, k0), jnp.float32) / (in_features * k0) ** 0.5
    next_dilation = filter_widths[0]
    idx = 1
    for i in range(1, len(filter_widths)):
        pad = (filter_widths[i] - 1) * next_dilation // 2
        kA = filter_widths[i] if not dense else 2 * pad + 1
        params[f'wA_{i}'] = jax.random.normal(
            keys[idx], (channels, channels, kA), jnp.float32) / (channels * kA) ** 0.5
        idx += 1
        params[f'wB_{i}'] = jax.random.normal(
            keys[idx], (channels, channels, 1), jnp.float32) / channels ** 0.5
        idx += 1
        next_dilation *= filter_widths[i]
    params['shrink_w'] = jax.random.normal(
        keys[idx], (1, channels), jnp.float32) / channels ** 0.5
    params['shrink_b'] = jnp.full((1, 1), 0.1, jnp.float32)
    return params


# --------------------------------- main --------------------------------------

if __name__ == "__main__":
    in_features, channels, leak = 16, 32, 0.2
    filter_widths = [3, 3, 3]
    B, T = 4, 64

    key = jax.random.PRNGKey(0)
    kx, kp = jax.random.split(key)
    x = jax.random.normal(kx, (B, T, in_features), jnp.float32)
    params = init_params(kp, in_features, filter_widths, channels)

    out = discriminator_forward(x, params, filter_widths, channels, leak)
    out = jax.block_until_ready(out)

    ref = reference_forward(x, params, filter_widths, channels, leak)
    assert out.shape == ref.shape, (out.shape, ref.shape)
    # bf16 matmul inputs (f32 accumulation) vs. the pure-f32 reference leave
    # ~1e-2-scale deviations after repeated InstanceNorm layers.
    err = float(jnp.max(jnp.abs(out - ref)))
    assert jnp.allclose(out, ref, atol=3e-2, rtol=3e-2), err
    print("KERNEL_OK")
</pallas_src>

<mosaic_0001>
module attributes {stable_mosaic.version = 11 : i64} {
  func.func @kernel(%arg0: i32, %arg1: memref<4x64x16xf32, #tpu.memory_space<vmem>>, %arg2: memref<32x48xbf16, #tpu.memory_space<vmem>>, %arg3: memref<32x96xbf16, #tpu.memory_space<vmem>>, %arg4: memref<32x32xbf16, #tpu.memory_space<vmem>>, %arg5: memref<32x96xbf16, #tpu.memory_space<vmem>>, %arg6: memref<32x32xbf16, #tpu.memory_space<vmem>>, %arg7: memref<32x1xf32, #tpu.memory_space<vmem>>, %arg8: memref<1x1xf32, #tpu.memory_space<vmem>>, %arg9: memref<1x4x128xf32, #tpu.memory_space<vmem>>) attributes {dimension_semantics = [#tpu.dimension_semantics<parallel>], iteration_bounds = array<i64: 1>, scalar_prefetch = 0 : i64, scratch_operands = 0 : i64, tpu.core_type = #tpu.core_type<tc>, window_params = [{transform_indices = @transform_0, window_bounds = array<i64: 4, 64, 16>}, {pipeline_mode = #tpu.pipeline_mode<synchronous>, transform_indices = @transform_1, window_bounds = array<i64: 32, 48>}, {pipeline_mode = #tpu.pipeline_mode<synchronous>, transform_indices = @transform_2, window_bounds = array<i64: 32, 96>}, {pipeline_mode = #tpu.pipeline_mode<synchronous>, transform_indices = @transform_3, window_bounds = array<i64: 32, 32>}, {pipeline_mode = #tpu.pipeline_mode<synchronous>, transform_indices = @transform_4, window_bounds = array<i64: 32, 96>}, {pipeline_mode = #tpu.pipeline_mode<synchronous>, transform_indices = @transform_5, window_bounds = array<i64: 32, 32>}, {pipeline_mode = #tpu.pipeline_mode<synchronous>, transform_indices = @transform_6, window_bounds = array<i64: 32, 1>}, {pipeline_mode = #tpu.pipeline_mode<synchronous>, transform_indices = @transform_7, window_bounds = array<i64: 1, 1>}, {transform_indices = @transform_8, window_bounds = array<i64: 1, 4, 128>}]} {
    %c0 = arith.constant 0 : index
    %c0_0 = arith.constant 0 : index
    %c0_1 = arith.constant 0 : index
    %0 = vector.load %arg1[%c0, %c0_0, %c0_1] : memref<4x64x16xf32, #tpu.memory_space<vmem>>, vector<4x64x16xf32>
    %1 = arith.truncf %0 : vector<4x64x16xf32> to vector<4x64x16xbf16>
    %2 = vector.extract_strided_slice %1 {offsets = [0, 0, 0], sizes = [1, 64, 16], strides = [1, 1, 1]} : vector<4x64x16xbf16> to vector<1x64x16xbf16>
    %3 = vector.shape_cast %2 : vector<1x64x16xbf16> to vector<64x16xbf16>
    %4 = vector.extract_strided_slice %3 {offsets = [0, 0], sizes = [62, 16], strides = [1, 1]} : vector<64x16xbf16> to vector<62x16xbf16>
    %5 = vector.extract_strided_slice %3 {offsets = [1, 0], sizes = [62, 16], strides = [1, 1]} : vector<64x16xbf16> to vector<62x16xbf16>
    %6 = vector.extract_strided_slice %3 {offsets = [2, 0], sizes = [62, 16], strides = [1, 1]} : vector<64x16xbf16> to vector<62x16xbf16>
    %7 = tpu.concatenate %4, %5, %6 in 1 : vector<62x16xbf16>, vector<62x16xbf16>, vector<62x16xbf16> -> vector<62x48xbf16>
    %8 = vector.extract_strided_slice %1 {offsets = [1, 0, 0], sizes = [1, 64, 16], strides = [1, 1, 1]} : vector<4x64x16xbf16> to vector<1x64x16xbf16>
    %9 = vector.shape_cast %8 : vector<1x64x16xbf16> to vector<64x16xbf16>
    %10 = vector.extract_strided_slice %9 {offsets = [0, 0], sizes = [62, 16], strides = [1, 1]} : vector<64x16xbf16> to vector<62x16xbf16>
    %11 = vector.extract_strided_slice %9 {offsets = [1, 0], sizes = [62, 16], strides = [1, 1]} : vector<64x16xbf16> to vector<62x16xbf16>
    %12 = vector.extract_strided_slice %9 {offsets = [2, 0], sizes = [62, 16], strides = [1, 1]} : vector<64x16xbf16> to vector<62x16xbf16>
    %13 = tpu.concatenate %10, %11, %12 in 1 : vector<62x16xbf16>, vector<62x16xbf16>, vector<62x16xbf16> -> vector<62x48xbf16>
    %14 = vector.extract_strided_slice %1 {offsets = [2, 0, 0], sizes = [1, 64, 16], strides = [1, 1, 1]} : vector<4x64x16xbf16> to vector<1x64x16xbf16>
    %15 = vector.shape_cast %14 : vector<1x64x16xbf16> to vector<64x16xbf16>
    %16 = vector.extract_strided_slice %15 {offsets = [0, 0], sizes = [62, 16], strides = [1, 1]} : vector<64x16xbf16> to vector<62x16xbf16>
    %17 = vector.extract_strided_slice %15 {offsets = [1, 0], sizes = [62, 16], strides = [1, 1]} : vector<64x16xbf16> to vector<62x16xbf16>
    %18 = vector.extract_strided_slice %15 {offsets = [2, 0], sizes = [62, 16], strides = [1, 1]} : vector<64x16xbf16> to vector<62x16xbf16>
    %19 = tpu.concatenate %16, %17, %18 in 1 : vector<62x16xbf16>, vector<62x16xbf16>, vector<62x16xbf16> -> vector<62x48xbf16>
    %20 = vector.extract_strided_slice %1 {offsets = [3, 0, 0], sizes = [1, 64, 16], strides = [1, 1, 1]} : vector<4x64x16xbf16> to vector<1x64x16xbf16>
    %21 = vector.shape_cast %20 : vector<1x64x16xbf16> to vector<64x16xbf16>
    %22 = vector.extract_strided_slice %21 {offsets = [0, 0], sizes = [62, 16], strides = [1, 1]} : vector<64x16xbf16> to vector<62x16xbf16>
    %23 = vector.extract_strided_slice %21 {offsets = [1, 0], sizes = [62, 16], strides = [1, 1]} : vector<64x16xbf16> to vector<62x16xbf16>
    %24 = vector.extract_strided_slice %21 {offsets = [2, 0], sizes = [62, 16], strides = [1, 1]} : vector<64x16xbf16> to vector<62x16xbf16>
    %25 = tpu.concatenate %22, %23, %24 in 1 : vector<62x16xbf16>, vector<62x16xbf16>, vector<62x16xbf16> -> vector<62x48xbf16>
    %26 = tpu.concatenate %7, %13, %19, %25 in 0 : vector<62x48xbf16>, vector<62x48xbf16>, vector<62x48xbf16>, vector<62x48xbf16> -> vector<248x48xbf16>
    %c0_2 = arith.constant 0 : index
    %c0_3 = arith.constant 0 : index
    %27 = vector.load %arg2[%c0_2, %c0_3] : memref<32x48xbf16, #tpu.memory_space<vmem>>, vector<32x48xbf16>
    %cst = arith.constant dense<0.000000e+00> : vector<32x248xf32>
    %28 = tpu.matmul %27, %26, %cst {dimension_numbers = #tpu.dot_dimension_numbers<[1], [1], [0], [0], [0, 0, 1, 0], [], []>} : vector<32x48xbf16>, vector<248x48xbf16>, vector<32x248xf32> -> vector<32x248xf32>
    %29 = vector.extract_strided_slice %28 {offsets = [0, 0], sizes = [32, 62], strides = [1, 1]} : vector<32x248xf32> to vector<32x62xf32>
    %cst_4 = arith.constant dense<0.000000e+00> : vector<32xf32>
    %30 = vector.multi_reduction <add>, %29, %cst_4 [1] : vector<32x62xf32> to vector<32xf32>
    %31 = vector.shape_cast %30 : vector<32xf32> to vector<32x1xf32>
    %cst_5 = arith.constant 6.200000e+01 : f32
    %32 = vector.broadcast %cst_5 : f32 to vector<32x1xf32>
    %33 = arith.divf %31, %32 : vector<32x1xf32>
    %34 = vector.broadcast %33 : vector<32x1xf32> to vector<32x62xf32>
    %35 = arith.subf %29, %34 : vector<32x62xf32>
    %36 = arith.mulf %35, %35 : vector<32x62xf32>
    %cst_6 = arith.constant dense<0.000000e+00> : vector<32xf32>
    %37 = vector.multi_reduction <add>, %36, %cst_6 [1] : vector<32x62xf32> to vector<32xf32>
    %38 = vector.shape_cast %37 : vector<32xf32> to vector<32x1xf32>
    %cst_7 = arith.constant 6.200000e+01 : f32
    %39 = vector.broadcast %cst_7 : f32 to vector<32x1xf32>
    %40 = arith.divf %38, %39 : vector<32x1xf32>
    %cst_8 = arith.constant 9.99999974E-6 : f32
    %41 = vector.broadcast %cst_8 : f32 to vector<32x1xf32>
    %42 = arith.addf %40, %41 : vector<32x1xf32>
    %43 = math.rsqrt %42 : vector<32x1xf32>
    %44 = vector.broadcast %43 : vector<32x1xf32> to vector<32x62xf32>
    %45 = arith.mulf %35, %44 : vector<32x62xf32>
    %cst_9 = arith.constant 0.000000e+00 : f32
    %46 = vector.broadcast %cst_9 : f32 to vector<32x62xf32>
    %47 = arith.cmpf oge, %45, %46 : vector<32x62xf32>
    %cst_10 = arith.constant 2.000000e-01 : f32
    %48 = vector.broadcast %cst_10 : f32 to vector<32x62xf32>
    %49 = arith.mulf %48, %45 : vector<32x62xf32>
    %50 = arith.select %47, %45, %49 : vector<32x62xi1>, vector<32x62xf32>
    %51 = vector.extract_strided_slice %28 {offsets = [0, 62], sizes = [32, 62], strides = [1, 1]} : vector<32x248xf32> to vector<32x62xf32>
    %cst_11 = arith.constant dense<0.000000e+00> : vector<32xf32>
    %52 = vector.multi_reduction <add>, %51, %cst_11 [1] : vector<32x62xf32> to vector<32xf32>
    %53 = vector.shape_cast %52 : vector<32xf32> to vector<32x1xf32>
    %cst_12 = arith.constant 6.200000e+01 : f32
    %54 = vector.broadcast %cst_12 : f32 to vector<32x1xf32>
    %55 = arith.divf %53, %54 : vector<32x1xf32>
    %56 = vector.broadcast %55 : vector<32x1xf32> to vector<32x62xf32>
    %57 = arith.subf %51, %56 : vector<32x62xf32>
    %58 = arith.mulf %57, %57 : vector<32x62xf32>
    %cst_13 = arith.constant dense<0.000000e+00> : vector<32xf32>
    %59 = vector.multi_reduction <add>, %58, %cst_13 [1] : vector<32x62xf32> to vector<32xf32>
    %60 = vector.shape_cast %59 : vector<32xf32> to vector<32x1xf32>
    %cst_14 = arith.constant 6.200000e+01 : f32
    %61 = vector.broadcast %cst_14 : f32 to vector<32x1xf32>
    %62 = arith.divf %60, %61 : vector<32x1xf32>
    %cst_15 = arith.constant 9.99999974E-6 : f32
    %63 = vector.broadcast %cst_15 : f32 to vector<32x1xf32>
    %64 = arith.addf %62, %63 : vector<32x1xf32>
    %65 = math.rsqrt %64 : vector<32x1xf32>
    %66 = vector.broadcast %65 : vector<32x1xf32> to vector<32x62xf32>
    %67 = arith.mulf %57, %66 : vector<32x62xf32>
    %cst_16 = arith.constant 0.000000e+00 : f32
    %68 = vector.broadcast %cst_16 : f32 to vector<32x62xf32>
    %69 = arith.cmpf oge, %67, %68 : vector<32x62xf32>
    %cst_17 = arith.constant 2.000000e-01 : f32
    %70 = vector.broadcast %cst_17 : f32 to vector<32x62xf32>
    %71 = arith.mulf %70, %67 : vector<32x62xf32>
    %72 = arith.select %69, %67, %71 : vector<32x62xi1>, vector<32x62xf32>
    %73 = vector.extract_strided_slice %28 {offsets = [0, 124], sizes = [32, 62], strides = [1, 1]} : vector<32x248xf32> to vector<32x62xf32>
    %cst_18 = arith.constant dense<0.000000e+00> : vector<32xf32>
    %74 = vector.multi_reduction <add>, %73, %cst_18 [1] : vector<32x62xf32> to vector<32xf32>
    %75 = vector.shape_cast %74 : vector<32xf32> to vector<32x1xf32>
    %cst_19 = arith.constant 6.200000e+01 : f32
    %76 = vector.broadcast %cst_19 : f32 to vector<32x1xf32>
    %77 = arith.divf %75, %76 : vector<32x1xf32>
    %78 = vector.broadcast %77 : vector<32x1xf32> to vector<32x62xf32>
    %79 = arith.subf %73, %78 : vector<32x62xf32>
    %80 = arith.mulf %79, %79 : vector<32x62xf32>
    %cst_20 = arith.constant dense<0.000000e+00> : vector<32xf32>
    %81 = vector.multi_reduction <add>, %80, %cst_20 [1] : vector<32x62xf32> to vector<32xf32>
    %82 = vector.shape_cast %81 : vector<32xf32> to vector<32x1xf32>
    %cst_21 = arith.constant 6.200000e+01 : f32
    %83 = vector.broadcast %cst_21 : f32 to vector<32x1xf32>
    %84 = arith.divf %82, %83 : vector<32x1xf32>
    %cst_22 = arith.constant 9.99999974E-6 : f32
    %85 = vector.broadcast %cst_22 : f32 to vector<32x1xf32>
    %86 = arith.addf %84, %85 : vector<32x1xf32>
    %87 = math.rsqrt %86 : vector<32x1xf32>
    %88 = vector.broadcast %87 : vector<32x1xf32> to vector<32x62xf32>
    %89 = arith.mulf %79, %88 : vector<32x62xf32>
    %cst_23 = arith.constant 0.000000e+00 : f32
    %90 = vector.broadcast %cst_23 : f32 to vector<32x62xf32>
    %91 = arith.cmpf oge, %89, %90 : vector<32x62xf32>
    %cst_24 = arith.constant 2.000000e-01 : f32
    %92 = vector.broadcast %cst_24 : f32 to vector<32x62xf32>
    %93 = arith.mulf %92, %89 : vector<32x62xf32>
    %94 = arith.select %91, %89, %93 : vector<32x62xi1>, vector<32x62xf32>
    %95 = vector.extract_strided_slice %28 {offsets = [0, 186], sizes = [32, 62], strides = [1, 1]} : vector<32x248xf32> to vector<32x62xf32>
    %cst_25 = arith.constant dense<0.000000e+00> : vector<32xf32>
    %96 = vector.multi_reduction <add>, %95, %cst_25 [1] : vector<32x62xf32> to vector<32xf32>
    %97 = vector.shape_cast %96 : vector<32xf32> to vector<32x1xf32>
    %cst_26 = arith.constant 6.200000e+01 : f32
    %98 = vector.broadcast %cst_26 : f32 to vector<32x1xf32>
    %99 = arith.divf %97, %98 : vector<32x1xf32>
    %100 = vector.broadcast %99 : vector<32x1xf32> to vector<32x62xf32>
    %101 = arith.subf %95, %100 : vector<32x62xf32>
    %102 = arith.mulf %101, %101 : vector<32x62xf32>
    %cst_27 = arith.constant dense<0.000000e+00> : vector<32xf32>
    %103 = vector.multi_reduction <add>, %102, %cst_27 [1] : vector<32x62xf32> to vector<32xf32>
    %104 = vector.shape_cast %103 : vector<32xf32> to vector<32x1xf32>
    %cst_28 = arith.constant 6.200000e+01 : f32
    %105 = vector.broadcast %cst_28 : f32 to vector<32x1xf32>
    %106 = arith.divf %104, %105 : vector<32x1xf32>
    %cst_29 = arith.constant 9.99999974E-6 : f32
    %107 = vector.broadcast %cst_29 : f32 to vector<32x1xf32>
    %108 = arith.addf %106, %107 : vector<32x1xf32>
    %109 = math.rsqrt %108 : vector<32x1xf32>
    %110 = vector.broadcast %109 : vector<32x1xf32> to vector<32x62xf32>
    %111 = arith.mulf %101, %110 : vector<32x62xf32>
    %cst_30 = arith.constant 0.000000e+00 : f32
    %112 = vector.broadcast %cst_30 : f32 to vector<32x62xf32>
    %113 = arith.cmpf oge, %111, %112 : vector<32x62xf32>
    %cst_31 = arith.constant 2.000000e-01 : f32
    %114 = vector.broadcast %cst_31 : f32 to vector<32x62xf32>
    %115 = arith.mulf %114, %111 : vector<32x62xf32>
    %116 = arith.select %113, %111, %115 : vector<32x62xi1>, vector<32x62xf32>
    %117 = arith.truncf %50 : vector<32x62xf32> to vector<32x62xbf16>
    %118 = arith.truncf %72 : vector<32x62xf32> to vector<32x62xbf16>
    %119 = arith.truncf %94 : vector<32x62xf32> to vector<32x62xbf16>
    %120 = arith.truncf %116 : vector<32x62xf32> to vector<32x62xbf16>
    %121 = vector.extract_strided_slice %117 {offsets = [0, 0], sizes = [32, 56], strides = [1, 1]} : vector<32x62xbf16> to vector<32x56xbf16>
    %122 = vector.extract_strided_slice %117 {offsets = [0, 3], sizes = [32, 56], strides = [1, 1]} : vector<32x62xbf16> to vector<32x56xbf16>
    %123 = vector.extract_strided_slice %117 {offsets = [0, 6], sizes = [32, 56], strides = [1, 1]} : vector<32x62xbf16> to vector<32x56xbf16>
    %124 = tpu.concatenate %121, %122, %123 in 0 : vector<32x56xbf16>, vector<32x56xbf16>, vector<32x56xbf16> -> vector<96x56xbf16>
    %125 = vector.extract_strided_slice %118 {offsets = [0, 0], sizes = [32, 56], strides = [1, 1]} : vector<32x62xbf16> to vector<32x56xbf16>
    %126 = vector.extract_strided_slice %118 {offsets = [0, 3], sizes = [32, 56], strides = [1, 1]} : vector<32x62xbf16> to vector<32x56xbf16>
    %127 = vector.extract_strided_slice %118 {offsets = [0, 6], sizes = [32, 56], strides = [1, 1]} : vector<32x62xbf16> to vector<32x56xbf16>
    %128 = tpu.concatenate %125, %126, %127 in 0 : vector<32x56xbf16>, vector<32x56xbf16>, vector<32x56xbf16> -> vector<96x56xbf16>
    %129 = vector.extract_strided_slice %119 {offsets = [0, 0], sizes = [32, 56], strides = [1, 1]} : vector<32x62xbf16> to vector<32x56xbf16>
    %130 = vector.extract_strided_slice %119 {offsets = [0, 3], sizes = [32, 56], strides = [1, 1]} : vector<32x62xbf16> to vector<32x56xbf16>
    %131 = vector.extract_strided_slice %119 {offsets = [0, 6], sizes = [32, 56], strides = [1, 1]} : vector<32x62xbf16> to vector<32x56xbf16>
    %132 = tpu.concatenate %129, %130, %131 in 0 : vector<32x56xbf16>, vector<32x56xbf16>, vector<32x56xbf16> -> vector<96x56xbf16>
    %133 = vector.extract_strided_slice %120 {offsets = [0, 0], sizes = [32, 56], strides = [1, 1]} : vector<32x62xbf16> to vector<32x56xbf16>
    %134 = vector.extract_strided_slice %120 {offsets = [0, 3], sizes = [32, 56], strides = [1, 1]} : vector<32x62xbf16> to vector<32x56xbf16>
    %135 = vector.extract_strided_slice %120 {offsets = [0, 6], sizes = [32, 56], strides = [1, 1]} : vector<32x62xbf16> to vector<32x56xbf16>
    %136 = tpu.concatenate %133, %134, %135 in 0 : vector<32x56xbf16>, vector<32x56xbf16>, vector<32x56xbf16> -> vector<96x56xbf16>
    %137 = tpu.concatenate %124, %128, %132, %136 in 1 : vector<96x56xbf16>, vector<96x56xbf16>, vector<96x56xbf16>, vector<96x56xbf16> -> vector<96x224xbf16>
    %c0_32 = arith.constant 0 : index
    %c0_33 = arith.constant 0 : index
    %138 = vector.load %arg3[%c0_32, %c0_33] : memref<32x96xbf16, #tpu.memory_space<vmem>>, vector<32x96xbf16>
    %cst_34 = arith.constant dense<0.000000e+00> : vector<32x224xf32>
    %139 = tpu.matmul %138, %137, %cst_34 {dimension_numbers = #tpu.dot_dimension_numbers<[1], [0], [0], [1], [0, 0, 1, 1], [], []>} : vector<32x96xbf16>, vector<96x224xbf16>, vector<32x224xf32> -> vector<32x224xf32>
    %140 = vector.extract_strided_slice %139 {offsets = [0, 0], sizes = [32, 56], strides = [1, 1]} : vector<32x224xf32> to vector<32x56xf32>
    %cst_35 = arith.constant dense<0.000000e+00> : vector<32xf32>
    %141 = vector.multi_reduction <add>, %140, %cst_35 [1] : vector<32x56xf32> to vector<32xf32>
    %142 = vector.shape_cast %141 : vector<32xf32> to vector<32x1xf32>
    %cst_36 = arith.constant 5.600000e+01 : f32
    %143 = vector.broadcast %cst_36 : f32 to vector<32x1xf32>
    %144 = arith.divf %142, %143 : vector<32x1xf32>
    %145 = vector.broadcast %144 : vector<32x1xf32> to vector<32x56xf32>
    %146 = arith.subf %140, %145 : vector<32x56xf32>
    %147 = arith.mulf %146, %146 : vector<32x56xf32>
    %cst_37 = arith.constant dense<0.000000e+00> : vector<32xf32>
    %148 = vector.multi_reduction <add>, %147, %cst_37 [1] : vector<32x56xf32> to vector<32xf32>
    %149 = vector.shape_cast %148 : vector<32xf32> to vector<32x1xf32>
    %cst_38 = arith.constant 5.600000e+01 : f32
    %150 = vector.broadcast %cst_38 : f32 to vector<32x1xf32>
    %151 = arith.divf %149, %150 : vector<32x1xf32>
    %cst_39 = arith.constant 9.99999974E-6 : f32
    %152 = vector.broadcast %cst_39 : f32 to vector<32x1xf32>
    %153 = arith.addf %151, %152 : vector<32x1xf32>
    %154 = math.rsqrt %153 : vector<32x1xf32>
    %155 = vector.broadcast %154 : vector<32x1xf32> to vector<32x56xf32>
    %156 = arith.mulf %146, %155 : vector<32x56xf32>
    %cst_40 = arith.constant 0.000000e+00 : f32
    %157 = vector.broadcast %cst_40 : f32 to vector<32x56xf32>
    %158 = arith.cmpf oge, %156, %157 : vector<32x56xf32>
    %cst_41 = arith.constant 2.000000e-01 : f32
    %159 = vector.broadcast %cst_41 : f32 to vector<32x56xf32>
    %160 = arith.mulf %159, %156 : vector<32x56xf32>
    %161 = arith.select %158, %156, %160 : vector<32x56xi1>, vector<32x56xf32>
    %162 = vector.extract_strided_slice %139 {offsets = [0, 56], sizes = [32, 56], strides = [1, 1]} : vector<32x224xf32> to vector<32x56xf32>
    %cst_42 = arith.constant dense<0.000000e+00> : vector<32xf32>
    %163 = vector.multi_reduction <add>, %162, %cst_42 [1] : vector<32x56xf32> to vector<32xf32>
    %164 = vector.shape_cast %163 : vector<32xf32> to vector<32x1xf32>
    %cst_43 = arith.constant 5.600000e+01 : f32
    %165 = vector.broadcast %cst_43 : f32 to vector<32x1xf32>
    %166 = arith.divf %164, %165 : vector<32x1xf32>
    %167 = vector.broadcast %166 : vector<32x1xf32> to vector<32x56xf32>
    %168 = arith.subf %162, %167 : vector<32x56xf32>
    %169 = arith.mulf %168, %168 : vector<32x56xf32>
    %cst_44 = arith.constant dense<0.000000e+00> : vector<32xf32>
    %170 = vector.multi_reduction <add>, %169, %cst_44 [1] : vector<32x56xf32> to vector<32xf32>
    %171 = vector.shape_cast %170 : vector<32xf32> to vector<32x1xf32>
    %cst_45 = arith.constant 5.600000e+01 : f32
    %172 = vector.broadcast %cst_45 : f32 to vector<32x1xf32>
    %173 = arith.divf %171, %172 : vector<32x1xf32>
    %cst_46 = arith.constant 9.99999974E-6 : f32
    %174 = vector.broadcast %cst_46 : f32 to vector<32x1xf32>
    %175 = arith.addf %173, %174 : vector<32x1xf32>
    %176 = math.rsqrt %175 : vector<32x1xf32>
    %177 = vector.broadcast %176 : vector<32x1xf32> to vector<32x56xf32>
    %178 = arith.mulf %168, %177 : vector<32x56xf32>
    %cst_47 = arith.constant 0.000000e+00 : f32
    %179 = vector.broadcast %cst_47 : f32 to vector<32x56xf32>
    %180 = arith.cmpf oge, %178, %179 : vector<32x56xf32>
    %cst_48 = arith.constant 2.000000e-01 : f32
    %181 = vector.broadcast %cst_48 : f32 to vector<32x56xf32>
    %182 = arith.mulf %181, %178 : vector<32x56xf32>
    %183 = arith.select %180, %178, %182 : vector<32x56xi1>, vector<32x56xf32>
    %184 = vector.extract_strided_slice %139 {offsets = [0, 112], sizes = [32, 56], strides = [1, 1]} : vector<32x224xf32> to vector<32x56xf32>
    %cst_49 = arith.constant dense<0.000000e+00> : vector<32xf32>
    %185 = vector.multi_reduction <add>, %184, %cst_49 [1] : vector<32x56xf32> to vector<32xf32>
    %186 = vector.shape_cast %185 : vector<32xf32> to vector<32x1xf32>
    %cst_50 = arith.constant 5.600000e+01 : f32
    %187 = vector.broadcast %cst_50 : f32 to vector<32x1xf32>
    %188 = arith.divf %186, %187 : vector<32x1xf32>
    %189 = vector.broadcast %188 : vector<32x1xf32> to vector<32x56xf32>
    %190 = arith.subf %184, %189 : vector<32x56xf32>
    %191 = arith.mulf %190, %190 : vector<32x56xf32>
    %cst_51 = arith.constant dense<0.000000e+00> : vector<32xf32>
    %192 = vector.multi_reduction <add>, %191, %cst_51 [1] : vector<32x56xf32> to vector<32xf32>
    %193 = vector.shape_cast %192 : vector<32xf32> to vector<32x1xf32>
    %cst_52 = arith.constant 5.600000e+01 : f32
    %194 = vector.broadcast %cst_52 : f32 to vector<32x1xf32>
    %195 = arith.divf %193, %194 : vector<32x1xf32>
    %cst_53 = arith.constant 9.99999974E-6 : f32
    %196 = vector.broadcast %cst_53 : f32 to vector<32x1xf32>
    %197 = arith.addf %195, %196 : vector<32x1xf32>
    %198 = math.rsqrt %197 : vector<32x1xf32>
    %199 = vector.broadcast %198 : vector<32x1xf32> to vector<32x56xf32>
    %200 = arith.mulf %190, %199 : vector<32x56xf32>
    %cst_54 = arith.constant 0.000000e+00 : f32
    %201 = vector.broadcast %cst_54 : f32 to vector<32x56xf32>
    %202 = arith.cmpf oge, %200, %201 : vector<32x56xf32>
    %cst_55 = arith.constant 2.000000e-01 : f32
    %203 = vector.broadcast %cst_55 : f32 to vector<32x56xf32>
    %204 = arith.mulf %203, %200 : vector<32x56xf32>
    %205 = arith.select %202, %200, %204 : vector<32x56xi1>, vector<32x56xf32>
    %206 = vector.extract_strided_slice %139 {offsets = [0, 168], sizes = [32, 56], strides = [1, 1]} : vector<32x224xf32> to vector<32x56xf32>
    %cst_56 = arith.constant dense<0.000000e+00> : vector<32xf32>
    %207 = vector.multi_reduction <add>, %206, %cst_56 [1] : vector<32x56xf32> to vector<32xf32>
    %208 = vector.shape_cast %207 : vector<32xf32> to vector<32x1xf32>
    %cst_57 = arith.constant 5.600000e+01 : f32
    %209 = vector.broadcast %cst_57 : f32 to vector<32x1xf32>
    %210 = arith.divf %208, %209 : vector<32x1xf32>
    %211 = vector.broadcast %210 : vector<32x1xf32> to vector<32x56xf32>
    %212 = arith.subf %206, %211 : vector<32x56xf32>
    %213 = arith.mulf %212, %212 : vector<32x56xf32>
    %cst_58 = arith.constant dense<0.000000e+00> : vector<32xf32>
    %214 = vector.multi_reduction <add>, %213, %cst_58 [1] : vector<32x56xf32> to vector<32xf32>
    %215 = vector.shape_cast %214 : vector<32xf32> to vector<32x1xf32>
    %cst_59 = arith.constant 5.600000e+01 : f32
    %216 = vector.broadcast %cst_59 : f32 to vector<32x1xf32>
    %217 = arith.divf %215, %216 : vector<32x1xf32>
    %cst_60 = arith.constant 9.99999974E-6 : f32
    %218 = vector.broadcast %cst_60 : f32 to vector<32x1xf32>
    %219 = arith.addf %217, %218 : vector<32x1xf32>
    %220 = math.rsqrt %219 : vector<32x1xf32>
    %221 = vector.broadcast %220 : vector<32x1xf32> to vector<32x56xf32>
    %222 = arith.mulf %212, %221 : vector<32x56xf32>
    %cst_61 = arith.constant 0.000000e+00 : f32
    %223 = vector.broadcast %cst_61 : f32 to vector<32x56xf32>
    %224 = arith.cmpf oge, %222, %223 : vector<32x56xf32>
    %cst_62 = arith.constant 2.000000e-01 : f32
    %225 = vector.broadcast %cst_62 : f32 to vector<32x56xf32>
    %226 = arith.mulf %225, %222 : vector<32x56xf32>
    %227 = arith.select %224, %222, %226 : vector<32x56xi1>, vector<32x56xf32>
    %228 = arith.truncf %161 : vector<32x56xf32> to vector<32x56xbf16>
    %229 = arith.truncf %183 : vector<32x56xf32> to vector<32x56xbf16>
    %230 = arith.truncf %205 : vector<32x56xf32> to vector<32x56xbf16>
    %231 = arith.truncf %227 : vector<32x56xf32> to vector<32x56xbf16>
    %232 = tpu.concatenate %228, %229, %230, %231 in 1 : vector<32x56xbf16>, vector<32x56xbf16>, vector<32x56xbf16>, vector<32x56xbf16> -> vector<32x224xbf16>
    %c0_63 = arith.constant 0 : index
    %c0_64 = arith.constant 0 : index
    %233 = vector.load %arg4[%c0_63, %c0_64] : memref<32x32xbf16, #tpu.memory_space<vmem>>, vector<32x32xbf16>
    %cst_65 = arith.constant dense<0.000000e+00> : vector<32x224xf32>
    %234 = tpu.matmul %233, %232, %cst_65 {dimension_numbers = #tpu.dot_dimension_numbers<[1], [0], [0], [1], [0, 0, 1, 1], [], []>} : vector<32x32xbf16>, vector<32x224xbf16>, vector<32x224xf32> -> vector<32x224xf32>
    %235 = vector.extract_strided_slice %234 {offsets = [0, 0], sizes = [32, 56], strides = [1, 1]} : vector<32x224xf32> to vector<32x56xf32>
    %cst_66 = arith.constant dense<0.000000e+00> : vector<32xf32>
    %236 = vector.multi_reduction <add>, %235, %cst_66 [1] : vector<32x56xf32> to vector<32xf32>
    %237 = vector.shape_cast %236 : vector<32xf32> to vector<32x1xf32>
    %cst_67 = arith.constant 5.600000e+01 : f32
    %238 = vector.broadcast %cst_67 : f32 to vector<32x1xf32>
    %239 = arith.divf %237, %238 : vector<32x1xf32>
    %240 = vector.broadcast %239 : vector<32x1xf32> to vector<32x56xf32>
    %241 = arith.subf %235, %240 : vector<32x56xf32>
    %242 = arith.mulf %241, %241 : vector<32x56xf32>
    %cst_68 = arith.constant dense<0.000000e+00> : vector<32xf32>
    %243 = vector.multi_reduction <add>, %242, %cst_68 [1] : vector<32x56xf32> to vector<32xf32>
    %244 = vector.shape_cast %243 : vector<32xf32> to vector<32x1xf32>
    %cst_69 = arith.constant 5.600000e+01 : f32
    %245 = vector.broadcast %cst_69 : f32 to vector<32x1xf32>
    %246 = arith.divf %244, %245 : vector<32x1xf32>
    %cst_70 = arith.constant 9.99999974E-6 : f32
    %247 = vector.broadcast %cst_70 : f32 to vector<32x1xf32>
    %248 = arith.addf %246, %247 : vector<32x1xf32>
    %249 = math.rsqrt %248 : vector<32x1xf32>
    %250 = vector.broadcast %249 : vector<32x1xf32> to vector<32x56xf32>
    %251 = arith.mulf %241, %250 : vector<32x56xf32>
    %cst_71 = arith.constant 0.000000e+00 : f32
    %252 = vector.broadcast %cst_71 : f32 to vector<32x56xf32>
    %253 = arith.cmpf oge, %251, %252 : vector<32x56xf32>
    %cst_72 = arith.constant 2.000000e-01 : f32
    %254 = vector.broadcast %cst_72 : f32 to vector<32x56xf32>
    %255 = arith.mulf %254, %251 : vector<32x56xf32>
    %256 = arith.select %253, %251, %255 : vector<32x56xi1>, vector<32x56xf32>
    %257 = vector.extract_strided_slice %50 {offsets = [0, 3], sizes = [32, 56], strides = [1, 1]} : vector<32x62xf32> to vector<32x56xf32>
    %258 = arith.addf %257, %256 : vector<32x56xf32>
    %259 = vector.extract_strided_slice %234 {offsets = [0, 56], sizes = [32, 56], strides = [1, 1]} : vector<32x224xf32> to vector<32x56xf32>
    %cst_73 = arith.constant dense<0.000000e+00> : vector<32xf32>
    %260 = vector.multi_reduction <add>, %259, %cst_73 [1] : vector<32x56xf32> to vector<32xf32>
    %261 = vector.shape_cast %260 : vector<32xf32> to vector<32x1xf32>
    %cst_74 = arith.constant 5.600000e+01 : f32
    %262 = vector.broadcast %cst_74 : f32 to vector<32x1xf32>
    %263 = arith.divf %261, %262 : vector<32x1xf32>
    %264 = vector.broadcast %263 : vector<32x1xf32> to vector<32x56xf32>
    %265 = arith.subf %259, %264 : vector<32x56xf32>
    %266 = arith.mulf %265, %265 : vector<32x56xf32>
    %cst_75 = arith.constant dense<0.000000e+00> : vector<32xf32>
    %267 = vector.multi_reduction <add>, %266, %cst_75 [1] : vector<32x56xf32> to vector<32xf32>
    %268 = vector.shape_cast %267 : vector<32xf32> to vector<32x1xf32>
    %cst_76 = arith.constant 5.600000e+01 : f32
    %269 = vector.broadcast %cst_76 : f32 to vector<32x1xf32>
    %270 = arith.divf %268, %269 : vector<32x1xf32>
    %cst_77 = arith.constant 9.99999974E-6 : f32
    %271 = vector.broadcast %cst_77 : f32 to vector<32x1xf32>
    %272 = arith.addf %270, %271 : vector<32x1xf32>
    %273 = math.rsqrt %272 : vector<32x1xf32>
    %274 = vector.broadcast %273 : vector<32x1xf32> to vector<32x56xf32>
    %275 = arith.mulf %265, %274 : vector<32x56xf32>
    %cst_78 = arith.constant 0.000000e+00 : f32
    %276 = vector.broadcast %cst_78 : f32 to vector<32x56xf32>
    %277 = arith.cmpf oge, %275, %276 : vector<32x56xf32>
    %cst_79 = arith.constant 2.000000e-01 : f32
    %278 = vector.broadcast %cst_79 : f32 to vector<32x56xf32>
    %279 = arith.mulf %278, %275 : vector<32x56xf32>
    %280 = arith.select %277, %275, %279 : vector<32x56xi1>, vector<32x56xf32>
    %281 = vector.extract_strided_slice %72 {offsets = [0, 3], sizes = [32, 56], strides = [1, 1]} : vector<32x62xf32> to vector<32x56xf32>
    %282 = arith.addf %281, %280 : vector<32x56xf32>
    %283 = vector.extract_strided_slice %234 {offsets = [0, 112], sizes = [32, 56], strides = [1, 1]} : vector<32x224xf32> to vector<32x56xf32>
    %cst_80 = arith.constant dense<0.000000e+00> : vector<32xf32>
    %284 = vector.multi_reduction <add>, %283, %cst_80 [1] : vector<32x56xf32> to vector<32xf32>
    %285 = vector.shape_cast %284 : vector<32xf32> to vector<32x1xf32>
    %cst_81 = arith.constant 5.600000e+01 : f32
    %286 = vector.broadcast %cst_81 : f32 to vector<32x1xf32>
    %287 = arith.divf %285, %286 : vector<32x1xf32>
    %288 = vector.broadcast %287 : vector<32x1xf32> to vector<32x56xf32>
    %289 = arith.subf %283, %288 : vector<32x56xf32>
    %290 = arith.mulf %289, %289 : vector<32x56xf32>
    %cst_82 = arith.constant dense<0.000000e+00> : vector<32xf32>
    %291 = vector.multi_reduction <add>, %290, %cst_82 [1] : vector<32x56xf32> to vector<32xf32>
    %292 = vector.shape_cast %291 : vector<32xf32> to vector<32x1xf32>
    %cst_83 = arith.constant 5.600000e+01 : f32
    %293 = vector.broadcast %cst_83 : f32 to vector<32x1xf32>
    %294 = arith.divf %292, %293 : vector<32x1xf32>
    %cst_84 = arith.constant 9.99999974E-6 : f32
    %295 = vector.broadcast %cst_84 : f32 to vector<32x1xf32>
    %296 = arith.addf %294, %295 : vector<32x1xf32>
    %297 = math.rsqrt %296 : vector<32x1xf32>
    %298 = vector.broadcast %297 : vector<32x1xf32> to vector<32x56xf32>
    %299 = arith.mulf %289, %298 : vector<32x56xf32>
    %cst_85 = arith.constant 0.000000e+00 : f32
    %300 = vector.broadcast %cst_85 : f32 to vector<32x56xf32>
    %301 = arith.cmpf oge, %299, %300 : vector<32x56xf32>
    %cst_86 = arith.constant 2.000000e-01 : f32
    %302 = vector.broadcast %cst_86 : f32 to vector<32x56xf32>
    %303 = arith.mulf %302, %299 : vector<32x56xf32>
    %304 = arith.select %301, %299, %303 : vector<32x56xi1>, vector<32x56xf32>
    %305 = vector.extract_strided_slice %94 {offsets = [0, 3], sizes = [32, 56], strides = [1, 1]} : vector<32x62xf32> to vector<32x56xf32>
    %306 = arith.addf %305, %304 : vector<32x56xf32>
    %307 = vector.extract_strided_slice %234 {offsets = [0, 168], sizes = [32, 56], strides = [1, 1]} : vector<32x224xf32> to vector<32x56xf32>
    %cst_87 = arith.constant dense<0.000000e+00> : vector<32xf32>
    %308 = vector.multi_reduction <add>, %307, %cst_87 [1] : vector<32x56xf32> to vector<32xf32>
    %309 = vector.shape_cast %308 : vector<32xf32> to vector<32x1xf32>
    %cst_88 = arith.constant 5.600000e+01 : f32
    %310 = vector.broadcast %cst_88 : f32 to vector<32x1xf32>
    %311 = arith.divf %309, %310 : vector<32x1xf32>
    %312 = vector.broadcast %311 : vector<32x1xf32> to vector<32x56xf32>
    %313 = arith.subf %307, %312 : vector<32x56xf32>
    %314 = arith.mulf %313, %313 : vector<32x56xf32>
    %cst_89 = arith.constant dense<0.000000e+00> : vector<32xf32>
    %315 = vector.multi_reduction <add>, %314, %cst_89 [1] : vector<32x56xf32> to vector<32xf32>
    %316 = vector.shape_cast %315 : vector<32xf32> to vector<32x1xf32>
    %cst_90 = arith.constant 5.600000e+01 : f32
    %317 = vector.broadcast %cst_90 : f32 to vector<32x1xf32>
    %318 = arith.divf %316, %317 : vector<32x1xf32>
    %cst_91 = arith.constant 9.99999974E-6 : f32
    %319 = vector.broadcast %cst_91 : f32 to vector<32x1xf32>
    %320 = arith.addf %318, %319 : vector<32x1xf32>
    %321 = math.rsqrt %320 : vector<32x1xf32>
    %322 = vector.broadcast %321 : vector<32x1xf32> to vector<32x56xf32>
    %323 = arith.mulf %313, %322 : vector<32x56xf32>
    %cst_92 = arith.constant 0.000000e+00 : f32
    %324 = vector.broadcast %cst_92 : f32 to vector<32x56xf32>
    %325 = arith.cmpf oge, %323, %324 : vector<32x56xf32>
    %cst_93 = arith.constant 2.000000e-01 : f32
    %326 = vector.broadcast %cst_93 : f32 to vector<32x56xf32>
    %327 = arith.mulf %326, %323 : vector<32x56xf32>
    %328 = arith.select %325, %323, %327 : vector<32x56xi1>, vector<32x56xf32>
    %329 = vector.extract_strided_slice %116 {offsets = [0, 3], sizes = [32, 56], strides = [1, 1]} : vector<32x62xf32> to vector<32x56xf32>
    %330 = arith.addf %329, %328 : vector<32x56xf32>
    %331 = arith.truncf %258 : vector<32x56xf32> to vector<32x56xbf16>
    %332 = arith.truncf %282 : vector<32x56xf32> to vector<32x56xbf16>
    %333 = arith.truncf %306 : vector<32x56xf32> to vector<32x56xbf16>
    %334 = arith.truncf %330 : vector<32x56xf32> to vector<32x56xbf16>
    %335 = vector.extract_strided_slice %331 {offsets = [0, 0], sizes = [32, 38], strides = [1, 1]} : vector<32x56xbf16> to vector<32x38xbf16>
    %336 = vector.extract_strided_slice %331 {offsets = [0, 9], sizes = [32, 38], strides = [1, 1]} : vector<32x56xbf16> to vector<32x38xbf16>
    %337 = vector.extract_strided_slice %331 {offsets = [0, 18], sizes = [32, 38], strides = [1, 1]} : vector<32x56xbf16> to vector<32x38xbf16>
    %338 = tpu.concatenate %335, %336, %337 in 0 : vector<32x38xbf16>, vector<32x38xbf16>, vector<32x38xbf16> -> vector<96x38xbf16>
    %339 = vector.extract_strided_slice %332 {offsets = [0, 0], sizes = [32, 38], strides = [1, 1]} : vector<32x56xbf16> to vector<32x38xbf16>
    %340 = vector.extract_strided_slice %332 {offsets = [0, 9], sizes = [32, 38], strides = [1, 1]} : vector<32x56xbf16> to vector<32x38xbf16>
    %341 = vector.extract_strided_slice %332 {offsets = [0, 18], sizes = [32, 38], strides = [1, 1]} : vector<32x56xbf16> to vector<32x38xbf16>
    %342 = tpu.concatenate %339, %340, %341 in 0 : vector<32x38xbf16>, vector<32x38xbf16>, vector<32x38xbf16> -> vector<96x38xbf16>
    %343 = vector.extract_strided_slice %333 {offsets = [0, 0], sizes = [32, 38], strides = [1, 1]} : vector<32x56xbf16> to vector<32x38xbf16>
    %344 = vector.extract_strided_slice %333 {offsets = [0, 9], sizes = [32, 38], strides = [1, 1]} : vector<32x56xbf16> to vector<32x38xbf16>
    %345 = vector.extract_strided_slice %333 {offsets = [0, 18], sizes = [32, 38], strides = [1, 1]} : vector<32x56xbf16> to vector<32x38xbf16>
    %346 = tpu.concatenate %343, %344, %345 in 0 : vector<32x38xbf16>, vector<32x38xbf16>, vector<32x38xbf16> -> vector<96x38xbf16>
    %347 = vector.extract_strided_slice %334 {offsets = [0, 0], sizes = [32, 38], strides = [1, 1]} : vector<32x56xbf16> to vector<32x38xbf16>
    %348 = vector.extract_strided_slice %334 {offsets = [0, 9], sizes = [32, 38], strides = [1, 1]} : vector<32x56xbf16> to vector<32x38xbf16>
    %349 = vector.extract_strided_slice %334 {offsets = [0, 18], sizes = [32, 38], strides = [1, 1]} : vector<32x56xbf16> to vector<32x38xbf16>
    %350 = tpu.concatenate %347, %348, %349 in 0 : vector<32x38xbf16>, vector<32x38xbf16>, vector<32x38xbf16> -> vector<96x38xbf16>
    %351 = tpu.concatenate %338, %342, %346, %350 in 1 : vector<96x38xbf16>, vector<96x38xbf16>, vector<96x38xbf16>, vector<96x38xbf16> -> vector<96x152xbf16>
    %c0_94 = arith.constant 0 : index
    %c0_95 = arith.constant 0 : index
    %352 = vector.load %arg5[%c0_94, %c0_95] : memref<32x96xbf16, #tpu.memory_space<vmem>>, vector<32x96xbf16>
    %cst_96 = arith.constant dense<0.000000e+00> : vector<32x152xf32>
    %353 = tpu.matmul %352, %351, %cst_96 {dimension_numbers = #tpu.dot_dimension_numbers<[1], [0], [0], [1], [0, 0, 1, 1], [], []>} : vector<32x96xbf16>, vector<96x152xbf16>, vector<32x152xf32> -> vector<32x152xf32>
    %354 = vector.extract_strided_slice %353 {offsets = [0, 0], sizes = [32, 38], strides = [1, 1]} : vector<32x152xf32> to vector<32x38xf32>
    %cst_97 = arith.constant dense<0.000000e+00> : vector<32xf32>
    %355 = vector.multi_reduction <add>, %354, %cst_97 [1] : vector<32x38xf32> to vector<32xf32>
    %356 = vector.shape_cast %355 : vector<32xf32> to vector<32x1xf32>
    %cst_98 = arith.constant 3.800000e+01 : f32
    %357 = vector.broadcast %cst_98 : f32 to vector<32x1xf32>
    %358 = arith.divf %356, %357 : vector<32x1xf32>
    %359 = vector.broadcast %358 : vector<32x1xf32> to vector<32x38xf32>
    %360 = arith.subf %354, %359 : vector<32x38xf32>
    %361 = arith.mulf %360, %360 : vector<32x38xf32>
    %cst_99 = arith.constant dense<0.000000e+00> : vector<32xf32>
    %362 = vector.multi_reduction <add>, %361, %cst_99 [1] : vector<32x38xf32> to vector<32xf32>
    %363 = vector.shape_cast %362 : vector<32xf32> to vector<32x1xf32>
    %cst_100 = arith.constant 3.800000e+01 : f32
    %364 = vector.broadcast %cst_100 : f32 to vector<32x1xf32>
    %365 = arith.divf %363, %364 : vector<32x1xf32>
    %cst_101 = arith.constant 9.99999974E-6 : f32
    %366 = vector.broadcast %cst_101 : f32 to vector<32x1xf32>
    %367 = arith.addf %365, %366 : vector<32x1xf32>
    %368 = math.rsqrt %367 : vector<32x1xf32>
    %369 = vector.broadcast %368 : vector<32x1xf32> to vector<32x38xf32>
    %370 = arith.mulf %360, %369 : vector<32x38xf32>
    %cst_102 = arith.constant 0.000000e+00 : f32
    %371 = vector.broadcast %cst_102 : f32 to vector<32x38xf32>
    %372 = arith.cmpf oge, %370, %371 : vector<32x38xf32>
    %cst_103 = arith.constant 2.000000e-01 : f32
    %373 = vector.broadcast %cst_103 : f32 to vector<32x38xf32>
    %374 = arith.mulf %373, %370 : vector<32x38xf32>
    %375 = arith.select %372, %370, %374 : vector<32x38xi1>, vector<32x38xf32>
    %376 = vector.extract_strided_slice %353 {offsets = [0, 38], sizes = [32, 38], strides = [1, 1]} : vector<32x152xf32> to vector<32x38xf32>
    %cst_104 = arith.constant dense<0.000000e+00> : vector<32xf32>
    %377 = vector.multi_reduction <add>, %376, %cst_104 [1] : vector<32x38xf32> to vector<32xf32>
    %378 = vector.shape_cast %377 : vector<32xf32> to vector<32x1xf32>
    %cst_105 = arith.constant 3.800000e+01 : f32
    %379 = vector.broadcast %cst_105 : f32 to vector<32x1xf32>
    %380 = arith.divf %378, %379 : vector<32x1xf32>
    %381 = vector.broadcast %380 : vector<32x1xf32> to vector<32x38xf32>
    %382 = arith.subf %376, %381 : vector<32x38xf32>
    %383 = arith.mulf %382, %382 : vector<32x38xf32>
    %cst_106 = arith.constant dense<0.000000e+00> : vector<32xf32>
    %384 = vector.multi_reduction <add>, %383, %cst_106 [1] : vector<32x38xf32> to vector<32xf32>
    %385 = vector.shape_cast %384 : vector<32xf32> to vector<32x1xf32>
    %cst_107 = arith.constant 3.800000e+01 : f32
    %386 = vector.broadcast %cst_107 : f32 to vector<32x1xf32>
    %387 = arith.divf %385, %386 : vector<32x1xf32>
    %cst_108 = arith.constant 9.99999974E-6 : f32
    %388 = vector.broadcast %cst_108 : f32 to vector<32x1xf32>
    %389 = arith.addf %387, %388 : vector<32x1xf32>
    %390 = math.rsqrt %389 : vector<32x1xf32>
    %391 = vector.broadcast %390 : vector<32x1xf32> to vector<32x38xf32>
    %392 = arith.mulf %382, %391 : vector<32x38xf32>
    %cst_109 = arith.constant 0.000000e+00 : f32
    %393 = vector.broadcast %cst_109 : f32 to vector<32x38xf32>
    %394 = arith.cmpf oge, %392, %393 : vector<32x38xf32>
    %cst_110 = arith.constant 2.000000e-01 : f32
    %395 = vector.broadcast %cst_110 : f32 to vector<32x38xf32>
    %396 = arith.mulf %395, %392 : vector<32x38xf32>
    %397 = arith.select %394, %392, %396 : vector<32x38xi1>, vector<32x38xf32>
    %398 = vector.extract_strided_slice %353 {offsets = [0, 76], sizes = [32, 38], strides = [1, 1]} : vector<32x152xf32> to vector<32x38xf32>
    %cst_111 = arith.constant dense<0.000000e+00> : vector<32xf32>
    %399 = vector.multi_reduction <add>, %398, %cst_111 [1] : vector<32x38xf32> to vector<32xf32>
    %400 = vector.shape_cast %399 : vector<32xf32> to vector<32x1xf32>
    %cst_112 = arith.constant 3.800000e+01 : f32
    %401 = vector.broadcast %cst_112 : f32 to vector<32x1xf32>
    %402 = arith.divf %400, %401 : vector<32x1xf32>
    %403 = vector.broadcast %402 : vector<32x1xf32> to vector<32x38xf32>
    %404 = arith.subf %398, %403 : vector<32x38xf32>
    %405 = arith.mulf %404, %404 : vector<32x38xf32>
    %cst_113 = arith.constant dense<0.000000e+00> : vector<32xf32>
    %406 = vector.multi_reduction <add>, %405, %cst_113 [1] : vector<32x38xf32> to vector<32xf32>
    %407 = vector.shape_cast %406 : vector<32xf32> to vector<32x1xf32>
    %cst_114 = arith.constant 3.800000e+01 : f32
    %408 = vector.broadcast %cst_114 : f32 to vector<32x1xf32>
    %409 = arith.divf %407, %408 : vector<32x1xf32>
    %cst_115 = arith.constant 9.99999974E-6 : f32
    %410 = vector.broadcast %cst_115 : f32 to vector<32x1xf32>
    %411 = arith.addf %409, %410 : vector<32x1xf32>
    %412 = math.rsqrt %411 : vector<32x1xf32>
    %413 = vector.broadcast %412 : vector<32x1xf32> to vector<32x38xf32>
    %414 = arith.mulf %404, %413 : vector<32x38xf32>
    %cst_116 = arith.constant 0.000000e+00 : f32
    %415 = vector.broadcast %cst_116 : f32 to vector<32x38xf32>
    %416 = arith.cmpf oge, %414, %415 : vector<32x38xf32>
    %cst_117 = arith.constant 2.000000e-01 : f32
    %417 = vector.broadcast %cst_117 : f32 to vector<32x38xf32>
    %418 = arith.mulf %417, %414 : vector<32x38xf32>
    %419 = arith.select %416, %414, %418 : vector<32x38xi1>, vector<32x38xf32>
    %420 = vector.extract_strided_slice %353 {offsets = [0, 114], sizes = [32, 38], strides = [1, 1]} : vector<32x152xf32> to vector<32x38xf32>
    %cst_118 = arith.constant dense<0.000000e+00> : vector<32xf32>
    %421 = vector.multi_reduction <add>, %420, %cst_118 [1] : vector<32x38xf32> to vector<32xf32>
    %422 = vector.shape_cast %421 : vector<32xf32> to vector<32x1xf32>
    %cst_119 = arith.constant 3.800000e+01 : f32
    %423 = vector.broadcast %cst_119 : f32 to vector<32x1xf32>
    %424 = arith.divf %422, %423 : vector<32x1xf32>
    %425 = vector.broadcast %424 : vector<32x1xf32> to vector<32x38xf32>
    %426 = arith.subf %420, %425 : vector<32x38xf32>
    %427 = arith.mulf %426, %426 : vector<32x38xf32>
    %cst_120 = arith.constant dense<0.000000e+00> : vector<32xf32>
    %428 = vector.multi_reduction <add>, %427, %cst_120 [1] : vector<32x38xf32> to vector<32xf32>
    %429 = vector.shape_cast %428 : vector<32xf32> to vector<32x1xf32>
    %cst_121 = arith.constant 3.800000e+01 : f32
    %430 = vector.broadcast %cst_121 : f32 to vector<32x1xf32>
    %431 = arith.divf %429, %430 : vector<32x1xf32>
    %cst_122 = arith.constant 9.99999974E-6 : f32
    %432 = vector.broadcast %cst_122 : f32 to vector<32x1xf32>
    %433 = arith.addf %431, %432 : vector<32x1xf32>
    %434 = math.rsqrt %433 : vector<32x1xf32>
    %435 = vector.broadcast %434 : vector<32x1xf32> to vector<32x38xf32>
    %436 = arith.mulf %426, %435 : vector<32x38xf32>
    %cst_123 = arith.constant 0.000000e+00 : f32
    %437 = vector.broadcast %cst_123 : f32 to vector<32x38xf32>
    %438 = arith.cmpf oge, %436, %437 : vector<32x38xf32>
    %cst_124 = arith.constant 2.000000e-01 : f32
    %439 = vector.broadcast %cst_124 : f32 to vector<32x38xf32>
    %440 = arith.mulf %439, %436 : vector<32x38xf32>
    %441 = arith.select %438, %436, %440 : vector<32x38xi1>, vector<32x38xf32>
    %442 = arith.truncf %375 : vector<32x38xf32> to vector<32x38xbf16>
    %443 = arith.truncf %397 : vector<32x38xf32> to vector<32x38xbf16>
    %444 = arith.truncf %419 : vector<32x38xf32> to vector<32x38xbf16>
    %445 = arith.truncf %441 : vector<32x38xf32> to vector<32x38xbf16>
    %446 = tpu.concatenate %442, %443, %444, %445 in 1 : vector<32x38xbf16>, vector<32x38xbf16>, vector<32x38xbf16>, vector<32x38xbf16> -> vector<32x152xbf16>
    %c0_125 = arith.constant 0 : index
    %c0_126 = arith.constant 0 : index
    %447 = vector.load %arg6[%c0_125, %c0_126] : memref<32x32xbf16, #tpu.memory_space<vmem>>, vector<32x32xbf16>
    %cst_127 = arith.constant dense<0.000000e+00> : vector<32x152xf32>
    %448 = tpu.matmul %447, %446, %cst_127 {dimension_numbers = #tpu.dot_dimension_numbers<[1], [0], [0], [1], [0, 0, 1, 1], [], []>} : vector<32x32xbf16>, vector<32x152xbf16>, vector<32x152xf32> -> vector<32x152xf32>
    %449 = vector.extract_strided_slice %448 {offsets = [0, 0], sizes = [32, 38], strides = [1, 1]} : vector<32x152xf32> to vector<32x38xf32>
    %cst_128 = arith.constant dense<0.000000e+00> : vector<32xf32>
    %450 = vector.multi_reduction <add>, %449, %cst_128 [1] : vector<32x38xf32> to vector<32xf32>
    %451 = vector.shape_cast %450 : vector<32xf32> to vector<32x1xf32>
    %cst_129 = arith.constant 3.800000e+01 : f32
    %452 = vector.broadcast %cst_129 : f32 to vector<32x1xf32>
    %453 = arith.divf %451, %452 : vector<32x1xf32>
    %454 = vector.broadcast %453 : vector<32x1xf32> to vector<32x38xf32>
    %455 = arith.subf %449, %454 : vector<32x38xf32>
    %456 = arith.mulf %455, %455 : vector<32x38xf32>
    %cst_130 = arith.constant dense<0.000000e+00> : vector<32xf32>
    %457 = vector.multi_reduction <add>, %456, %cst_130 [1] : vector<32x38xf32> to vector<32xf32>
    %458 = vector.shape_cast %457 : vector<32xf32> to vector<32x1xf32>
    %cst_131 = arith.constant 3.800000e+01 : f32
    %459 = vector.broadcast %cst_131 : f32 to vector<32x1xf32>
    %460 = arith.divf %458, %459 : vector<32x1xf32>
    %cst_132 = arith.constant 9.99999974E-6 : f32
    %461 = vector.broadcast %cst_132 : f32 to vector<32x1xf32>
    %462 = arith.addf %460, %461 : vector<32x1xf32>
    %463 = math.rsqrt %462 : vector<32x1xf32>
    %464 = vector.broadcast %463 : vector<32x1xf32> to vector<32x38xf32>
    %465 = arith.mulf %455, %464 : vector<32x38xf32>
    %cst_133 = arith.constant 0.000000e+00 : f32
    %466 = vector.broadcast %cst_133 : f32 to vector<32x38xf32>
    %467 = arith.cmpf oge, %465, %466 : vector<32x38xf32>
    %cst_134 = arith.constant 2.000000e-01 : f32
    %468 = vector.broadcast %cst_134 : f32 to vector<32x38xf32>
    %469 = arith.mulf %468, %465 : vector<32x38xf32>
    %470 = arith.select %467, %465, %469 : vector<32x38xi1>, vector<32x38xf32>
    %471 = vector.extract_strided_slice %258 {offsets = [0, 9], sizes = [32, 38], strides = [1, 1]} : vector<32x56xf32> to vector<32x38xf32>
    %472 = arith.addf %471, %470 : vector<32x38xf32>
    %473 = vector.extract_strided_slice %448 {offsets = [0, 38], sizes = [32, 38], strides = [1, 1]} : vector<32x152xf32> to vector<32x38xf32>
    %cst_135 = arith.constant dense<0.000000e+00> : vector<32xf32>
    %474 = vector.multi_reduction <add>, %473, %cst_135 [1] : vector<32x38xf32> to vector<32xf32>
    %475 = vector.shape_cast %474 : vector<32xf32> to vector<32x1xf32>
    %cst_136 = arith.constant 3.800000e+01 : f32
    %476 = vector.broadcast %cst_136 : f32 to vector<32x1xf32>
    %477 = arith.divf %475, %476 : vector<32x1xf32>
    %478 = vector.broadcast %477 : vector<32x1xf32> to vector<32x38xf32>
    %479 = arith.subf %473, %478 : vector<32x38xf32>
    %480 = arith.mulf %479, %479 : vector<32x38xf32>
    %cst_137 = arith.constant dense<0.000000e+00> : vector<32xf32>
    %481 = vector.multi_reduction <add>, %480, %cst_137 [1] : vector<32x38xf32> to vector<32xf32>
    %482 = vector.shape_cast %481 : vector<32xf32> to vector<32x1xf32>
    %cst_138 = arith.constant 3.800000e+01 : f32
    %483 = vector.broadcast %cst_138 : f32 to vector<32x1xf32>
    %484 = arith.divf %482, %483 : vector<32x1xf32>
    %cst_139 = arith.constant 9.99999974E-6 : f32
    %485 = vector.broadcast %cst_139 : f32 to vector<32x1xf32>
    %486 = arith.addf %484, %485 : vector<32x1xf32>
    %487 = math.rsqrt %486 : vector<32x1xf32>
    %488 = vector.broadcast %487 : vector<32x1xf32> to vector<32x38xf32>
    %489 = arith.mulf %479, %488 : vector<32x38xf32>
    %cst_140 = arith.constant 0.000000e+00 : f32
    %490 = vector.broadcast %cst_140 : f32 to vector<32x38xf32>
    %491 = arith.cmpf oge, %489, %490 : vector<32x38xf32>
    %cst_141 = arith.constant 2.000000e-01 : f32
    %492 = vector.broadcast %cst_141 : f32 to vector<32x38xf32>
    %493 = arith.mulf %492, %489 : vector<32x38xf32>
    %494 = arith.select %491, %489, %493 : vector<32x38xi1>, vector<32x38xf32>
    %495 = vector.extract_strided_slice %282 {offsets = [0, 9], sizes = [32, 38], strides = [1, 1]} : vector<32x56xf32> to vector<32x38xf32>
    %496 = arith.addf %495, %494 : vector<32x38xf32>
    %497 = vector.extract_strided_slice %448 {offsets = [0, 76], sizes = [32, 38], strides = [1, 1]} : vector<32x152xf32> to vector<32x38xf32>
    %cst_142 = arith.constant dense<0.000000e+00> : vector<32xf32>
    %498 = vector.multi_reduction <add>, %497, %cst_142 [1] : vector<32x38xf32> to vector<32xf32>
    %499 = vector.shape_cast %498 : vector<32xf32> to vector<32x1xf32>
    %cst_143 = arith.constant 3.800000e+01 : f32
    %500 = vector.broadcast %cst_143 : f32 to vector<32x1xf32>
    %501 = arith.divf %499, %500 : vector<32x1xf32>
    %502 = vector.broadcast %501 : vector<32x1xf32> to vector<32x38xf32>
    %503 = arith.subf %497, %502 : vector<32x38xf32>
    %504 = arith.mulf %503, %503 : vector<32x38xf32>
    %cst_144 = arith.constant dense<0.000000e+00> : vector<32xf32>
    %505 = vector.multi_reduction <add>, %504, %cst_144 [1] : vector<32x38xf32> to vector<32xf32>
    %506 = vector.shape_cast %505 : vector<32xf32> to vector<32x1xf32>
    %cst_145 = arith.constant 3.800000e+01 : f32
    %507 = vector.broadcast %cst_145 : f32 to vector<32x1xf32>
    %508 = arith.divf %506, %507 : vector<32x1xf32>
    %cst_146 = arith.constant 9.99999974E-6 : f32
    %509 = vector.broadcast %cst_146 : f32 to vector<32x1xf32>
    %510 = arith.addf %508, %509 : vector<32x1xf32>
    %511 = math.rsqrt %510 : vector<32x1xf32>
    %512 = vector.broadcast %511 : vector<32x1xf32> to vector<32x38xf32>
    %513 = arith.mulf %503, %512 : vector<32x38xf32>
    %cst_147 = arith.constant 0.000000e+00 : f32
    %514 = vector.broadcast %cst_147 : f32 to vector<32x38xf32>
    %515 = arith.cmpf oge, %513, %514 : vector<32x38xf32>
    %cst_148 = arith.constant 2.000000e-01 : f32
    %516 = vector.broadcast %cst_148 : f32 to vector<32x38xf32>
    %517 = arith.mulf %516, %513 : vector<32x38xf32>
    %518 = arith.select %515, %513, %517 : vector<32x38xi1>, vector<32x38xf32>
    %519 = vector.extract_strided_slice %306 {offsets = [0, 9], sizes = [32, 38], strides = [1, 1]} : vector<32x56xf32> to vector<32x38xf32>
    %520 = arith.addf %519, %518 : vector<32x38xf32>
    %521 = vector.extract_strided_slice %448 {offsets = [0, 114], sizes = [32, 38], strides = [1, 1]} : vector<32x152xf32> to vector<32x38xf32>
    %cst_149 = arith.constant dense<0.000000e+00> : vector<32xf32>
    %522 = vector.multi_reduction <add>, %521, %cst_149 [1] : vector<32x38xf32> to vector<32xf32>
    %523 = vector.shape_cast %522 : vector<32xf32> to vector<32x1xf32>
    %cst_150 = arith.constant 3.800000e+01 : f32
    %524 = vector.broadcast %cst_150 : f32 to vector<32x1xf32>
    %525 = arith.divf %523, %524 : vector<32x1xf32>
    %526 = vector.broadcast %525 : vector<32x1xf32> to vector<32x38xf32>
    %527 = arith.subf %521, %526 : vector<32x38xf32>
    %528 = arith.mulf %527, %527 : vector<32x38xf32>
    %cst_151 = arith.constant dense<0.000000e+00> : vector<32xf32>
    %529 = vector.multi_reduction <add>, %528, %cst_151 [1] : vector<32x38xf32> to vector<32xf32>
    %530 = vector.shape_cast %529 : vector<32xf32> to vector<32x1xf32>
    %cst_152 = arith.constant 3.800000e+01 : f32
    %531 = vector.broadcast %cst_152 : f32 to vector<32x1xf32>
    %532 = arith.divf %530, %531 : vector<32x1xf32>
    %cst_153 = arith.constant 9.99999974E-6 : f32
    %533 = vector.broadcast %cst_153 : f32 to vector<32x1xf32>
    %534 = arith.addf %532, %533 : vector<32x1xf32>
    %535 = math.rsqrt %534 : vector<32x1xf32>
    %536 = vector.broadcast %535 : vector<32x1xf32> to vector<32x38xf32>
    %537 = arith.mulf %527, %536 : vector<32x38xf32>
    %cst_154 = arith.constant 0.000000e+00 : f32
    %538 = vector.broadcast %cst_154 : f32 to vector<32x38xf32>
    %539 = arith.cmpf oge, %537, %538 : vector<32x38xf32>
    %cst_155 = arith.constant 2.000000e-01 : f32
    %540 = vector.broadcast %cst_155 : f32 to vector<32x38xf32>
    %541 = arith.mulf %540, %537 : vector<32x38xf32>
    %542 = arith.select %539, %537, %541 : vector<32x38xi1>, vector<32x38xf32>
    %543 = vector.extract_strided_slice %330 {offsets = [0, 9], sizes = [32, 38], strides = [1, 1]} : vector<32x56xf32> to vector<32x38xf32>
    %544 = arith.addf %543, %542 : vector<32x38xf32>
    %c0_156 = arith.constant 0 : index
    %c0_157 = arith.constant 0 : index
    %545 = vector.load %arg7[%c0_156, %c0_157] : memref<32x1xf32, #tpu.memory_space<vmem>>, vector<32x1xf32>
    %546 = vector.broadcast %545 : vector<32x1xf32> to vector<32x38xf32>
    %547 = arith.mulf %472, %546 : vector<32x38xf32>
    %cst_158 = arith.constant dense<0.000000e+00> : vector<38xf32>
    %548 = vector.multi_reduction <add>, %547, %cst_158 [0] : vector<32x38xf32> to vector<38xf32>
    %549 = vector.shape_cast %548 : vector<38xf32> to vector<1x38xf32>
    %c0_159 = arith.constant 0 : index
    %c0_160 = arith.constant 0 : index
    %550 = vector.load %arg7[%c0_159, %c0_160] : memref<32x1xf32, #tpu.memory_space<vmem>>, vector<32x1xf32>
    %551 = vector.broadcast %550 : vector<32x1xf32> to vector<32x38xf32>
    %552 = arith.mulf %496, %551 : vector<32x38xf32>
    %cst_161 = arith.constant dense<0.000000e+00> : vector<38xf32>
    %553 = vector.multi_reduction <add>, %552, %cst_161 [0] : vector<32x38xf32> to vector<38xf32>
    %554 = vector.shape_cast %553 : vector<38xf32> to vector<1x38xf32>
    %c0_162 = arith.constant 0 : index
    %c0_163 = arith.constant 0 : index
    %555 = vector.load %arg7[%c0_162, %c0_163] : memref<32x1xf32, #tpu.memory_space<vmem>>, vector<32x1xf32>
    %556 = vector.broadcast %555 : vector<32x1xf32> to vector<32x38xf32>
    %557 = arith.mulf %520, %556 : vector<32x38xf32>
    %cst_164 = arith.constant dense<0.000000e+00> : vector<38xf32>
    %558 = vector.multi_reduction <add>, %557, %cst_164 [0] : vector<32x38xf32> to vector<38xf32>
    %559 = vector.shape_cast %558 : vector<38xf32> to vector<1x38xf32>
    %c0_165 = arith.constant 0 : index
    %c0_166 = arith.constant 0 : index
    %560 = vector.load %arg7[%c0_165, %c0_166] : memref<32x1xf32, #tpu.memory_space<vmem>>, vector<32x1xf32>
    %561 = vector.broadcast %560 : vector<32x1xf32> to vector<32x38xf32>
    %562 = arith.mulf %544, %561 : vector<32x38xf32>
    %cst_167 = arith.constant dense<0.000000e+00> : vector<38xf32>
    %563 = vector.multi_reduction <add>, %562, %cst_167 [0] : vector<32x38xf32> to vector<38xf32>
    %564 = vector.shape_cast %563 : vector<38xf32> to vector<1x38xf32>
    %565 = tpu.concatenate %549, %554, %559, %564 in 0 : vector<1x38xf32>, vector<1x38xf32>, vector<1x38xf32>, vector<1x38xf32> -> vector<4x38xf32>
    %c0_168 = arith.constant 0 : index
    %c0_169 = arith.constant 0 : index
    %566 = vector.load %arg8[%c0_168, %c0_169] : memref<1x1xf32, #tpu.memory_space<vmem>>, vector<1x1xf32>
    %567 = vector.broadcast %566 : vector<1x1xf32> to vector<4x38xf32>
    %568 = arith.addf %565, %567 : vector<4x38xf32>
    %cst_170 = arith.constant 0.000000e+00 : f32
    %569 = vector.broadcast %cst_170 : f32 to vector<4x90xf32>
    %570 = tpu.concatenate %568, %569 in 1 : vector<4x38xf32>, vector<4x90xf32> -> vector<4x128xf32>
    %c0_171 = arith.constant 0 : index
    %c0_172 = arith.constant 0 : index
    %c0_173 = arith.constant 0 : index
    %571 = vector.load %arg9[%c0_171, %c0_172, %c0_173] : memref<1x4x128xf32, #tpu.memory_space<vmem>>, vector<1x4x128xf32>
    %572 = vector.shape_cast %571 : vector<1x4x128xf32> to vector<4x128xf32>
    %573 = vector.shape_cast %570 : vector<4x128xf32> to vector<1x4x128xf32>
    tpu.vector_store %arg9[%c0_171, %c0_172, %c0_173], %573 {strides = array<i32>} : memref<1x4x128xf32, #tpu.memory_space<vmem>>, vector<1x4x128xf32>,
    return
  }
  func.func @transform_0(%arg0: i32) -> (i32, i32, i32) {
    %c0_i32 = arith.constant 0 : i32
    %c0_i32_0 = arith.constant 0 : i32
    %c0_i32_1 = arith.constant 0 : i32
    return %arg0, %c0_i32, %c0_i32_0 : i32, i32, i32
  }
  func.func @transform_1(%arg0: i32) -> (i32, i32) {
    %c0_i32 = arith.constant 0 : i32
    %c0_i32_0 = arith.constant 0 : i32
    %c0_i32_1 = arith.constant 0 : i32
    return %c0_i32, %c0_i32_0 : i32, i32
  }
  func.func @transform_2(%arg0: i32) -> (i32, i32) {
    %c0_i32 = arith.constant 0 : i32
    %c0_i32_0 = arith.constant 0 : i32
    %c0_i32_1 = arith.constant 0 : i32
    return %c0_i32, %c0_i32_0 : i32, i32
  }
  func.func @transform_3(%arg0: i32) -> (i32, i32) {
    %c0_i32 = arith.constant 0 : i32
    %c0_i32_0 = arith.constant 0 : i32
    %c0_i32_1 = arith.constant 0 : i32
    return %c0_i32, %c0_i32_0 : i32, i32
  }
  func.func @transform_4(%arg0: i32) -> (i32, i32) {
    %c0_i32 = arith.constant 0 : i32
    %c0_i32_0 = arith.constant 0 : i32
    %c0_i32_1 = arith.constant 0 : i32
    return %c0_i32, %c0_i32_0 : i32, i32
  }
  func.func @transform_5(%arg0: i32) -> (i32, i32) {
    %c0_i32 = arith.constant 0 : i32
    %c0_i32_0 = arith.constant 0 : i32
    %c0_i32_1 = arith.constant 0 : i32
    return %c0_i32, %c0_i32_0 : i32, i32
  }
  func.func @transform_6(%arg0: i32) -> (i32, i32) {
    %c0_i32 = arith.constant 0 : i32
    %c0_i32_0 = arith.constant 0 : i32
    %c0_i32_1 = arith.constant 0 : i32
    return %c0_i32, %c0_i32_0 : i32, i32
  }
  func.func @transform_7(%arg0: i32) -> (i32, i32) {
    %c0_i32 = arith.constant 0 : i32
    %c0_i32_0 = arith.constant 0 : i32
    %c0_i32_1 = arith.constant 0 : i32
    return %c0_i32, %c0_i32_0 : i32, i32
  }
  func.func @transform_8(%arg0: i32) -> (i32, i32, i32) {
    %c0_i32 = arith.constant 0 : i32
    %c0_i32_0 = arith.constant 0 : i32
    %c0_i32_1 = arith.constant 0 : i32
    return %arg0, %c0_i32, %c0_i32_0 : i32, i32, i32
  }
}

</mosaic_0001>

<llo_original>
// kernel: tpu_custom_call.1
$region0: #{tpu_custom_call.1}
  #allocation0 [shape = 'u32[]', space=smem, size = 0x4, offset = 0x4, fixed_abs, tag = 'smem constant byte address 0x4 - core index']
  #allocation1 [shape = 'u32[144,128]{1,0:T(1,128)}', space=vmem, size = 0x12000, scoped, tag = 'internal scratch']
  #allocation2 [shape = 'f32[1,1]{1,0:T(1,128)S(1)}', space=vmem, size = 0x200, scoped, tag = 'scoped memory for tpu_custom_call.1']
  %s0 = inlined_call_operand.vmem [shape: f32[4,64,16], index: 0, kind: input, shape index: {}]
  %s1 = inlined_call_operand.vmem [shape: bf16[32,48], index: 1, kind: input, shape index: {}]
  %s2 = inlined_call_operand.vmem [shape: bf16[32,96], index: 2, kind: input, shape index: {}]
  %s3 = inlined_call_operand.vmem [shape: bf16[32,32], index: 3, kind: input, shape index: {}]
  %s4 = inlined_call_operand.vmem [shape: bf16[32,96], index: 4, kind: input, shape index: {}]
  %s5 = inlined_call_operand.vmem [shape: bf16[32,32], index: 5, kind: input, shape index: {}]
  %s6 = inlined_call_operand.vmem [shape: f32[32,1], index: 6, kind: input, shape index: {}]
  %s7 = inlined_call_operand.<no memory space> [shape: f32[1,1], index: 7, kind: input, shape index: {}]
  %s8 = inlined_call_operand.hbm [shape: f32[1,4,128], index: 8, kind: output, shape index: {}]
  %s9 = sld [smem:[#allocation0]]
  $region42: #{tpu_custom_call.1} parent=0
    _
  %s11 = ssub.s32 1, %s9
  %s12 = scalar_select 0, %s11, %s9
  %v13 = vstv %s7
  %14 = vst [vmem:[#allocation2] sm:$0x1] %v13
  $region1: #{tpu_custom_call.1} parent=0
    #allocation3 [shape = 'u8[2048]{0}', space=vmem, size = 0x800, scoped, tag = 'output window, operand 0, single buffered']
    #allocation4 [shape = 's32[1]{0}', space=sflag, size = 0x4, scoped, tag = 'scoped memory for tpu_custom_call.1']
    %15 = vsyncpa [#allocation4], 0
    // Predicated region
    $region2: #{tpu_custom_call.1} parent=1 // pred_check
      _
    $region3: #{tpu_custom_call.1} parent=1 // pred_check_branch
      %17 = sbr.rel (0) target = $region5
    $region4: #{tpu_custom_call.1} parent=1 // pred_region
      _
    $region5: #{tpu_custom_call.1} parent=1 // pred_fallthru
      _
    // Predicated region
    $region6: #{tpu_custom_call.1} parent=1 // pred_check
      _
    $region7: #{tpu_custom_call.1} parent=1 // pred_check_branch
      %19 = sbr.rel (0) target = $region9
    $region8: #{tpu_custom_call.1} parent=1 // pred_region
      _
    $region9: #{tpu_custom_call.1} parent=1 // pred_fallthru
      _
    // Predicated region
    $region10: #{tpu_custom_call.1} parent=1 // pred_check
      _
    $region11: #{tpu_custom_call.1} parent=1 // pred_check_branch
      %21 = sbr.rel (0) target = $region13
    $region12: #{tpu_custom_call.1} parent=1 // pred_region
      _
    $region13: #{tpu_custom_call.1} parent=1 // pred_fallthru
      _
    // Predicated region
    $region14: #{tpu_custom_call.1} parent=1 // pred_check
      _
    $region15: #{tpu_custom_call.1} parent=1 // pred_check_branch
      %23 = sbr.rel (0) target = $region17
    $region16: #{tpu_custom_call.1} parent=1 // pred_region
      _
    $region17: #{tpu_custom_call.1} parent=1 // pred_fallthru
      _
    // Predicated region
    $region18: #{tpu_custom_call.1} parent=1 // pred_check
      _
    $region19: #{tpu_custom_call.1} parent=1 // pred_check_branch
      %25 = sbr.rel (0) target = $region21
    $region20: #{tpu_custom_call.1} parent=1 // pred_region
      _
    $region21: #{tpu_custom_call.1} parent=1 // pred_fallthru
      _
    // Predicated region
    $region22: #{tpu_custom_call.1} parent=1 // pred_check
      _
    $region23: #{tpu_custom_call.1} parent=1 // pred_check_branch
      %27 = sbr.rel (0) target = $region25
    $region24: #{tpu_custom_call.1} parent=1 // pred_region
      _
    $region25: #{tpu_custom_call.1} parent=1 // pred_fallthru
      _
    // Predicated region
    $region26: #{tpu_custom_call.1} parent=1 // pred_check
      _
    $region27: #{tpu_custom_call.1} parent=1 // pred_check_branch
      %29 = sbr.rel (0) target = $region29
    $region28: #{tpu_custom_call.1} parent=1 // pred_region
      _
    $region29: #{tpu_custom_call.1} parent=1 // pred_fallthru
      _
    // Predicated region
    $region30: #{tpu_custom_call.1} parent=1 // pred_check
      _
    $region31: #{tpu_custom_call.1} parent=1 // pred_check_branch
      %31 = sbr.rel (0) target = $region33
    $region32: #{tpu_custom_call.1} parent=1 // pred_region
      _
    $region33: #{tpu_custom_call.1} parent=1 // pred_fallthru
      _
    %v33 = vld [vmem:[%s0] sm:$0xff]
    %v34 = vld [vmem:[%s0 + $0x8] sm:$0xff]
    %v35 = vld [vmem:[%s0 + $0x10] sm:$0xff]
    %v36 = vld [vmem:[%s0 + $0x18] sm:$0xff]
    %v37 = vld [vmem:[%s0 + $0x20] sm:$0xff]
    %v38 = vld [vmem:[%s0 + $0x28] sm:$0xff]
    %v39 = vld [vmem:[%s0 + $0x30] sm:$0xff]
    %v40 = vld [vmem:[%s0 + $0x38] sm:$0xff]
    %v41 = vld [vmem:[%s0 + $0x40] sm:$0xff]
    %v42 = vld [vmem:[%s0 + $0x48] sm:$0xff]
    %v43 = vld [vmem:[%s0 + $0x50] sm:$0xff]
    %v44 = vld [vmem:[%s0 + $0x58] sm:$0xff]
    %v45 = vld [vmem:[%s0 + $0x60] sm:$0xff]
    %v46 = vld [vmem:[%s0 + $0x68] sm:$0xff]
    %v47 = vld [vmem:[%s0 + $0x70] sm:$0xff]
    %v48 = vld [vmem:[%s0 + $0x78] sm:$0xff]
    %v49 = vld [vmem:[%s0 + $0x80] sm:$0xff]
    %v50 = vld [vmem:[%s0 + $0x88] sm:$0xff]
    %v51 = vld [vmem:[%s0 + $0x90] sm:$0xff]
    %v52 = vld [vmem:[%s0 + $0x98] sm:$0xff]
    %v53 = vld [vmem:[%s0 + $0xa0] sm:$0xff]
    %v54 = vld [vmem:[%s0 + $0xa8] sm:$0xff]
    %v55 = vld [vmem:[%s0 + $0xb0] sm:$0xff]
    %v56 = vld [vmem:[%s0 + $0xb8] sm:$0xff]
    %v57 = vld [vmem:[%s0 + $0xc0] sm:$0xff]
    %v58 = vld [vmem:[%s0 + $0xc8] sm:$0xff]
    %v59 = vld [vmem:[%s0 + $0xd0] sm:$0xff]
    %v60 = vld [vmem:[%s0 + $0xd8] sm:$0xff]
    %v61 = vld [vmem:[%s0 + $0xe0] sm:$0xff]
    %v62 = vld [vmem:[%s0 + $0xe8] sm:$0xff]
    %v63 = vld [vmem:[%s0 + $0xf0] sm:$0xff]
    %v64 = vld [vmem:[%s0 + $0xf8] sm:$0xff]
    %v65 = vpack.c.bf16 %v34, %v33
    %v66 = vpack.c.bf16 %v36, %v35
    %v67 = vpack.c.bf16 %v38, %v37
    %v68 = vpack.c.bf16 %v40, %v39
    %v69 = vpack.c.bf16 %v42, %v41
    %v70 = vpack.c.bf16 %v44, %v43
    %v71 = vpack.c.bf16 %v46, %v45
    %v72 = vpack.c.bf16 %v48, %v47
    %v73 = vpack.c.bf16 %v50, %v49
    %v74 = vpack.c.bf16 %v52, %v51
    %v75 = vpack.c.bf16 %v54, %v53
    %v76 = vpack.c.bf16 %v56, %v55
    %v77 = vpack.c.bf16 %v58, %v57
    %v78 = vpack.c.bf16 %v60, %v59
    %v79 = vpack.c.bf16 %v62, %v61
    %v80 = vpack.c.bf16 %v64, %v63
    %vm81 = vsmask.f32 7424
    %v83 = vshrl.u32 %v65, 16
    %v85 = vshll.u32 %v65, 16
    %v87 = vrot.slane %v85, 1
    %v88 = vor.u32 %v83, %v87
    %v90 = vshll.u32 %v66, 16
    %v92 = vrot.slane %v90, 1
    %v93 = vsel %vm81, %v88, %v92
    %v94 = vshrl.u32 %v66, 16
    %v96 = vor.u32 %v94, %v92
    %v98 = vshll.u32 %v67, 16
    %v100 = vrot.slane %v98, 1
    %v101 = vsel %vm81, %v96, %v100
    %v102 = vshrl.u32 %v67, 16
    %v104 = vor.u32 %v102, %v100
    %v106 = vshll.u32 %v68, 16
    %v108 = vrot.slane %v106, 1
    %v109 = vsel %vm81, %v104, %v108
    %v110 = vshrl.u32 %v68, 16
    %v112 = vor.u32 %v110, %v108
    %113 = vrot.lane.b32.xlu0 %v93, 16
    %v114 = vpop.permute.xlu0 %113
    %115 = vrot.lane.b32.xlu0 %v101, 16
    %v116 = vpop.permute.xlu0 %115
    %117 = vrot.lane.b32.xlu0 %v109, 16
    %v118 = vpop.permute.xlu0 %117
    %119 = vrot.lane.b32.xlu0 %v112, 16
    %v120 = vpop.permute.xlu0 %119
    %vm125 = vcmask 1046528
    %v126 = vrot.slane %v65, 1
    %v127 = vrot.slane %v66, 1
    %v128 = vsel %vm125, %v126, %v127
    %v129 = vrot.slane %v67, 1
    %v130 = vsel %vm125, %v127, %v129
    %v131 = vrot.slane %v68, 1
    %v132 = vsel %vm125, %v129, %v131
    %133 = vrot.lane.b32.xlu0 %v128, 32
    %v134 = vpop.permute.xlu0 %133
    %135 = vrot.lane.b32.xlu0 %v130, 32
    %v136 = vpop.permute.xlu0 %135
    %137 = vrot.lane.b32.xlu0 %v132, 32
    %v138 = vpop.permute.xlu0 %137
    %139 = vrot.lane.b32.xlu0 %v131, 32
    %v140 = vpop.permute.xlu0 %139
    %vm141 = vcmask 130048
    %v143 = vsel %vm141, %v65, %v114
    %v145 = vsel %vm141, %v66, %v116
    %v147 = vsel %vm141, %v67, %v118
    %v149 = vsel %vm141, %v68, %v120
    %vm150 = vcmask 261120
    %v152 = vsel %vm150, %v143, %v134
    %v154 = vsel %vm150, %v145, %v136
    %v156 = vsel %vm150, %v147, %v138
    %v158 = vsel %vm150, %v149, %v140
    %v160 = vshrl.u32 %v69, 16
    %v162 = vshll.u32 %v69, 16
    %v164 = vrot.slane %v162, 1
    %v165 = vor.u32 %v160, %v164
    %v167 = vshll.u32 %v70, 16
    %v169 = vrot.slane %v167, 1
    %v170 = vsel %vm81, %v165, %v169
    %v171 = vshrl.u32 %v70, 16
    %v173 = vor.u32 %v171, %v169
    %v175 = vshll.u32 %v71, 16
    %v177 = vrot.slane %v175, 1
    %v178 = vsel %vm81, %v173, %v177
    %v179 = vshrl.u32 %v71, 16
    %v181 = vor.u32 %v179, %v177
    %v183 = vshll.u32 %v72, 16
    %v185 = vrot.slane %v183, 1
    %v186 = vsel %vm81, %v181, %v185
    %v187 = vshrl.u32 %v72, 16
    %v189 = vor.u32 %v187, %v185
    %190 = vrot.lane.b32.xlu0 %v170, 16
    %v191 = vpop.permute.xlu0 %190
    %192 = vrot.lane.b32.xlu0 %v178, 16
    %v193 = vpop.permute.xlu0 %192
    %194 = vrot.lane.b32.xlu0 %v186, 16
    %v195 = vpop.permute.xlu0 %194
    %196 = vrot.lane.b32.xlu0 %v189, 16
    %v197 = vpop.permute.xlu0 %196
    %v202 = vrot.slane %v69, 1
    %v203 = vrot.slane %v70, 1
    %v204 = vsel %vm125, %v202, %v203
    %v205 = vrot.slane %v71, 1
    %v206 = vsel %vm125, %v203, %v205
    %v207 = vrot.slane %v72, 1
    %v208 = vsel %vm125, %v205, %v207
    %209 = vrot.lane.b32.xlu0 %v204, 32
    %v210 = vpop.permute.xlu0 %209
    %211 = vrot.lane.b32.xlu0 %v206, 32
    %v212 = vpop.permute.xlu0 %211
    %213 = vrot.lane.b32.xlu0 %v208, 32
    %v214 = vpop.permute.xlu0 %213
    %215 = vrot.lane.b32.xlu0 %v207, 32
    %v216 = vpop.permute.xlu0 %215
    %v218 = vsel %vm141, %v69, %v191
    %v220 = vsel %vm141, %v70, %v193
    %v222 = vsel %vm141, %v71, %v195
    %v224 = vsel %vm141, %v72, %v197
    %v226 = vsel %vm150, %v218, %v210
    %v228 = vsel %vm150, %v220, %v212
    %v230 = vsel %vm150, %v222, %v214
    %v232 = vsel %vm150, %v224, %v216
    %v234 = vshrl.u32 %v73, 16
    %v236 = vshll.u32 %v73, 16
    %v238 = vrot.slane %v236, 1
    %v239 = vor.u32 %v234, %v238
    %v241 = vshll.u32 %v74, 16
    %v243 = vrot.slane %v241, 1
    %v244 = vsel %vm81, %v239, %v243
    %v245 = vshrl.u32 %v74, 16
    %v247 = vor.u32 %v245, %v243
    %v249 = vshll.u32 %v75, 16
    %v251 = vrot.slane %v249, 1
    %v252 = vsel %vm81, %v247, %v251
    %v253 = vshrl.u32 %v75, 16
    %v255 = vor.u32 %v253, %v251
    %v257 = vshll.u32 %v76, 16
    %v259 = vrot.slane %v257, 1
    %v260 = vsel %vm81, %v255, %v259
    %v261 = vshrl.u32 %v76, 16
    %v263 = vor.u32 %v261, %v259
    %264 = vrot.lane.b32.xlu0 %v244, 16
    %v265 = vpop.permute.xlu0 %264
    %266 = vrot.lane.b32.xlu0 %v252, 16
    %v267 = vpop.permute.xlu0 %266
    %268 = vrot.lane.b32.xlu0 %v260, 16
    %v269 = vpop.permute.xlu0 %268
    %270 = vrot.lane.b32.xlu0 %v263, 16
    %v271 = vpop.permute.xlu0 %270
    %v276 = vrot.slane %v73, 1
    %v277 = vrot.slane %v74, 1
    %v278 = vsel %vm125, %v276, %v277
    %v279 = vrot.slane %v75, 1
    %v280 = vsel %vm125, %v277, %v279
    %v281 = vrot.slane %v76, 1
    %v282 = vsel %vm125, %v279, %v281
    %283 = vrot.lane.b32.xlu0 %v278, 32
    %v284 = vpop.permute.xlu0 %283
    %285 = vrot.lane.b32.xlu0 %v280, 32
    %v286 = vpop.permute.xlu0 %285
    %287 = vrot.lane.b32.xlu0 %v282, 32
    %v288 = vpop.permute.xlu0 %287
    %289 = vrot.lane.b32.xlu0 %v281, 32
    %v290 = vpop.permute.xlu0 %289
    %v292 = vsel %vm141, %v73, %v265
    %v294 = vsel %vm141, %v74, %v267
    %v296 = vsel %vm141, %v75, %v269
    %v298 = vsel %vm141, %v76, %v271
    %v300 = vsel %vm150, %v292, %v284
    %v302 = vsel %vm150, %v294, %v286
    %v304 = vsel %vm150, %v296, %v288
    %v306 = vsel %vm150, %v298, %v290
    %v308 = vshrl.u32 %v77, 16
    %v310 = vshll.u32 %v77, 16
    %v312 = vrot.slane %v310, 1
    %v313 = vor.u32 %v308, %v312
    %v315 = vshll.u32 %v78, 16
    %v317 = vrot.slane %v315, 1
    %v318 = vsel %vm81, %v313, %v317
    %v319 = vshrl.u32 %v78, 16
    %v321 = vor.u32 %v319, %v317
    %v323 = vshll.u32 %v79, 16
    %v325 = vrot.slane %v323, 1
    %v326 = vsel %vm81, %v321, %v325
    %v327 = vshrl.u32 %v79, 16
    %v329 = vor.u32 %v327, %v325
    %v331 = vshll.u32 %v80, 16
    %v333 = vrot.slane %v331, 1
    %v334 = vsel %vm81, %v329, %v333
    %v335 = vshrl.u32 %v80, 16
    %v337 = vor.u32 %v335, %v333
    %338 = vrot.lane.b32.xlu0 %v318, 16
    %v339 = vpop.permute.xlu0 %338
    %340 = vrot.lane.b32.xlu0 %v326, 16
    %v341 = vpop.permute.xlu0 %340
    %342 = vrot.lane.b32.xlu0 %v334, 16
    %v343 = vpop.permute.xlu0 %342
    %344 = vrot.lane.b32.xlu0 %v337, 16
    %v345 = vpop.permute.xlu0 %344
    %v350 = vrot.slane %v77, 1
    %v351 = vrot.slane %v78, 1
    %v352 = vsel %vm125, %v350, %v351
    %v353 = vrot.slane %v79, 1
    %v354 = vsel %vm125, %v351, %v353
    %v355 = vrot.slane %v80, 1
    %v356 = vsel %vm125, %v353, %v355
    %357 = vrot.lane.b32.xlu0 %v352, 32
    %v358 = vpop.permute.xlu0 %357
    %359 = vrot.lane.b32.xlu0 %v354, 32
    %v360 = vpop.permute.xlu0 %359
    %361 = vrot.lane.b32.xlu0 %v356, 32
    %v362 = vpop.permute.xlu0 %361
    %363 = vrot.lane.b32.xlu0 %v355, 32
    %v364 = vpop.permute.xlu0 %363
    %v366 = vsel %vm141, %v77, %v339
    %v368 = vsel %vm141, %v78, %v341
    %v370 = vsel %vm141, %v79, %v343
    %v372 = vsel %vm141, %v80, %v345
    %v374 = vsel %vm150, %v366, %v358
    %v376 = vsel %vm150, %v368, %v360
    %v378 = vsel %vm150, %v370, %v362
    %v380 = vsel %vm150, %v372, %v364
    %v385 = vrot.slane %v226, 1
    %v386 = vrot.slane %v228, 1
    %v387 = vsel %vm125, %v385, %v386
    %v388 = vrot.slane %v230, 1
    %v389 = vsel %vm125, %v386, %v388
    %v390 = vrot.slane %v232, 1
    %v391 = vsel %vm125, %v388, %v390
    %vm396 = vcmask 1045504
    %v397 = vrot.slane %v300, 2
    %v398 = vrot.slane %v302, 2
    %v399 = vsel %vm396, %v397, %v398
    %v400 = vrot.slane %v304, 2
    %v401 = vsel %vm396, %v398, %v400
    %v402 = vrot.slane %v306, 2
    %v403 = vsel %vm396, %v400, %v402
    %vm408 = vcmask 1044480
    %v409 = vrot.slane %v374, 3
    %v410 = vrot.slane %v376, 3
    %v411 = vsel %vm408, %v409, %v410
    %v412 = vrot.slane %v378, 3
    %v413 = vsel %vm408, %v410, %v412
    %v414 = vrot.slane %v380, 3
    %v415 = vsel %vm408, %v412, %v414
    %vm416 = vcmask 1046528
    %v418 = vsel %vm416, %v158, %v385
    %vm419 = vcmask 1045504
    %v422 = vsel %vm419, %v390, %v397
    %vm423 = vcmask 1044480
    %v426 = vsel %vm423, %v402, %v409
    %v427 = vld [vmem:[%s1] sm:$0xf]
    %v428 = vld [vmem:[%s1 + $0x4] sm:$0xf]
    %v429 = vld [vmem:[%s1 + $0x8] sm:$0xf]
    %v430 = vld [vmem:[%s1 + $0xc] sm:$0xf]
    %v435 = vunpack.c.l.b16 %v427
    %v436 = vunpack.c.l.b16 %v428
    %v437 = vunpack.c.l.b16 %v429
    %v438 = vunpack.c.l.b16 %v430
    %v439 = vpack.c.b16 %v436, %v435
    %v440 = vpack.c.b16 %v438, %v437
    %vm441 = vcmask 392192
    %v443 = vsel %vm441, %v439, 0
    %v446 = vsel %vm441, %v440, 0
    %v448 = vsel %vm441, %v152, 0
    %v450 = vsel %vm441, %v154, 0
    %v452 = vsel %vm441, %v156, 0
    %v454 = vsel %vm441, %v418, 0
    %v457 = vsel %vm441, %v387, 0
    %v460 = vsel %vm441, %v389, 0
    %v463 = vsel %vm441, %v391, 0
    %v465 = vsel %vm441, %v422, 0
    %v468 = vsel %vm441, %v399, 0
    %v471 = vsel %vm441, %v401, 0
    %v474 = vsel %vm441, %v403, 0
    %v476 = vsel %vm441, %v426, 0
    %v479 = vsel %vm441, %v411, 0
    %v482 = vsel %vm441, %v413, 0
    %v485 = vsel %vm441, %v415, 0
    %v488 = vsel %vm441, %v414, 0
    %490 = vmatprep.subr.bf16.mxu0 0
    %491 = vmatpush1.bf16.xpose.msra.mxu0 %v448
    %492 = vmatprep.subr.bf16.mxu0 0
    %493 = vmatpush1.bf16.xpose.msra.mxu0 %v450
    %494 = vmatprep.subr.bf16.mxu0 0
    %495 = vmatpush1.bf16.xpose.msra.mxu0 %v452
    %496 = vmatprep.subr.bf16.mxu0 0
    %497 = vmatpush1.bf16.xpose.msra.mxu0 %v454
    %498 = vmatprep.subr.bf16.mxu0 0
    %499 = vmatpush1.bf16.xpose.msra.mxu0 %v457
    %500 = vmatprep.subr.bf16.mxu0 0
    %501 = vmatpush1.bf16.xpose.msra.mxu0 %v460
    %502 = vmatprep.subr.bf16.mxu0 0
    %503 = vmatpush1.bf16.xpose.msra.mxu0 %v463
    %504 = vmatprep.subr.bf16.mxu0 0
    %505 = vmatpush1.bf16.xpose.msra.mxu0 %v465
    %506 = vmatprep.subr.bf16.mxu0 0
    %507 = vmatpush1.bf16.xpose.msra.mxu0 %v468
    %508 = vmatprep.subr.bf16.mxu0 0
    %509 = vmatpush1.bf16.xpose.msra.mxu0 %v471
    %510 = vmatprep.subr.bf16.mxu0 0
    %511 = vmatpush1.bf16.xpose.msra.mxu0 %v474
    %512 = vmatprep.subr.bf16.mxu0 0
    %513 = vmatpush1.bf16.xpose.msra.mxu0 %v476
    %514 = vmatprep.subr.bf16.mxu0 0
    %515 = vmatpush1.bf16.xpose.msra.mxu0 %v479
    %516 = vmatprep.subr.bf16.mxu0 0
    %517 = vmatpush1.bf16.xpose.msra.mxu0 %v482
    %518 = vmatprep.subr.bf16.mxu0 0
    %519 = vmatpush1.bf16.xpose.msra.mxu0 %v485
    %520 = vmatprep.subr.bf16.mxu0 0
    %521 = vmatpush1.bf16.xpose.msra.mxu0 %v488
    %522 = vmatprep.mubr.bf16.mxu0 0
    %523 = vmatmul.mubr.bf16.gmra.mrb[0].mxu0 %v443
    %v524 = vpop.f32.mrb[0].mxu0
    %v525 = vadd.f32 0.0, %v524
    %v526 = vpop.f32.mrb[0].mxu0
    %v527 = vadd.f32 0.0, %v526
    %v528 = vpop.f32.mrb[0].mxu0
    %v529 = vadd.f32 0.0, %v528
    %v530 = vpop.f32.mrb[0].mxu0
    %v531 = vadd.f32 0.0, %v530
    %532 = vmatprep.mubr.bf16.mxu0 0
    %533 = vmatmul.mubr.bf16.gmra.mrb[0].mxu0 %v446
    %v534 = vpop.f32.mrb[0].mxu0
    %v535 = vadd.f32 0.0, %v534
    %v536 = vpop.f32.mrb[0].mxu0
    %v537 = vadd.f32 0.0, %v536
    %v538 = vpop.f32.mrb[0].mxu0
    %v539 = vadd.f32 0.0, %v538
    %v540 = vpop.f32.mrb[0].mxu0
    %v541 = vadd.f32 0.0, %v540
    %542 = vdwg.mxu0
    %vm543 = vcmask 506880
    %v544 = vsel %vm543, %v525, 0.0
    %545 = vadd.xlane.f32.xlu0 %v544
    %v546 = vpop.xlane.xlu0 %545
    %v547 = vsel %vm543, %v529, 0.0
    %548 = vadd.xlane.f32.xlu0 %v547
    %v549 = vpop.xlane.xlu0 %548
    %v550 = vsel %vm543, %v535, 0.0
    %551 = vadd.xlane.f32.xlu0 %v550
    %v552 = vpop.xlane.xlu0 %551
    %v553 = vsel %vm543, %v539, 0.0
    %554 = vadd.xlane.f32.xlu0 %v553
    %v555 = vpop.xlane.xlu0 %554
    %v556 = vrcp.pop 62.0
    %v557 = vmul.f32 %v546, %v556
    %v558 = vmul.f32 %v549, %v556
    %v559 = vmul.f32 %v552, %v556
    %v560 = vmul.f32 %v555, %v556
    %v561 = vsub.f32 %v525, %v557
    %v562 = vsub.f32 %v529, %v558
    %v563 = vsub.f32 %v535, %v559
    %v564 = vsub.f32 %v539, %v560
    %v565 = vmul.f32 %v561, %v561
    %v566 = vmul.f32 %v562, %v562
    %v567 = vmul.f32 %v563, %v563
    %v568 = vmul.f32 %v564, %v564
    %v569 = vsel %vm543, %v565, 0.0
    %570 = vadd.xlane.f32.xlu0 %v569
    %v571 = vpop.xlane.xlu0 %570
    %v572 = vsel %vm543, %v566, 0.0
    %573 = vadd.xlane.f32.xlu0 %v572
    %v574 = vpop.xlane.xlu0 %573
    %v575 = vsel %vm543, %v567, 0.0
    %576 = vadd.xlane.f32.xlu0 %v575
    %v577 = vpop.xlane.xlu0 %576
    %v578 = vsel %vm543, %v568, 0.0
    %579 = vadd.xlane.f32.xlu0 %v578
    %v580 = vpop.xlane.xlu0 %579
    %v581 = vmul.f32 %v571, %v556
    %v582 = vmul.f32 %v574, %v556
    %v583 = vmul.f32 %v577, %v556
    %v584 = vmul.f32 %v580, %v556
    %v585 = vadd.f32 %v581, 1e-05
    %v586 = vadd.f32 %v582, 1e-05
    %v587 = vadd.f32 %v583, 1e-05
    %v588 = vadd.f32 %v584, 1e-05
    %v589 = vrsqrt.pop %v585
    %v590 = vrsqrt.pop %v586
    %v591 = vrsqrt.pop %v587
    %v592 = vrsqrt.pop %v588
    %v593 = vmul.f32 %v561, %v589
    %v594 = vmul.f32 %v562, %v590
    %v595 = vmul.f32 %v563, %v591
    %v596 = vmul.f32 %v564, %v592
    %vm597 = vcmp.ge.f32.partialorder %v593, 0.0
    %vm598 = vcmp.ge.f32.partialorder %v594, 0.0
    %vm599 = vcmp.ge.f32.partialorder %v595, 0.0
    %vm600 = vcmp.ge.f32.partialorder %v596, 0.0
    %v601 = vmul.f32 %v593, 0.2
    %v602 = vmul.f32 %v594, 0.2
    %v603 = vmul.f32 %v595, 0.2
    %v604 = vmul.f32 %v596, 0.2
    %v605 = vsel %vm597, %v593, %v601
    %v606 = vsel %vm598, %v594, %v602
    %v607 = vsel %vm599, %v595, %v603
    %v608 = vsel %vm600, %v596, %v604
    %613 = vrot.lane.b32.xlu0 %v525, 66
    %v614 = vpop.permute.xlu0 %613
    %615 = vrot.lane.b32.xlu0 %v529, 66
    %v616 = vpop.permute.xlu0 %615
    %617 = vrot.lane.b32.xlu0 %v535, 66
    %v618 = vpop.permute.xlu0 %617
    %619 = vrot.lane.b32.xlu0 %v539, 66
    %v620 = vpop.permute.xlu0 %619
    %v625 = vsel %vm543, %v614, 0.0
    %626 = vadd.xlane.f32.xlu0 %v625
    %v627 = vpop.xlane.xlu0 %626
    %v628 = vsel %vm543, %v616, 0.0
    %629 = vadd.xlane.f32.xlu0 %v628
    %v630 = vpop.xlane.xlu0 %629
    %v631 = vsel %vm543, %v618, 0.0
    %632 = vadd.xlane.f32.xlu0 %v631
    %v633 = vpop.xlane.xlu0 %632
    %v634 = vsel %vm543, %v620, 0.0
    %635 = vadd.xlane.f32.xlu0 %v634
    %v636 = vpop.xlane.xlu0 %635
    %v637 = vmul.f32 %v627, %v556
    %v638 = vmul.f32 %v630, %v556
    %v639 = vmul.f32 %v633, %v556
    %v640 = vmul.f32 %v636, %v556
    %v641 = vsub.f32 %v525, %v637
    %v642 = vsub.f32 %v529, %v638
    %v643 = vsub.f32 %v535, %v639
    %v644 = vsub.f32 %v539, %v640
    %v645 = vmul.f32 %v641, %v641
    %v646 = vmul.f32 %v642, %v642
    %v647 = vmul.f32 %v643, %v643
    %v648 = vmul.f32 %v644, %v644
    %653 = vrot.lane.b32.xlu0 %v645, 66
    %v654 = vpop.permute.xlu0 %653
    %655 = vrot.lane.b32.xlu0 %v646, 66
    %v656 = vpop.permute.xlu0 %655
    %657 = vrot.lane.b32.xlu0 %v647, 66
    %v658 = vpop.permute.xlu0 %657
    %659 = vrot.lane.b32.xlu0 %v648, 66
    %v660 = vpop.permute.xlu0 %659
    %v665 = vsel %vm543, %v654, 0.0
    %666 = vadd.xlane.f32.xlu0 %v665
    %v667 = vpop.xlane.xlu0 %666
    %v668 = vsel %vm543, %v656, 0.0
    %669 = vadd.xlane.f32.xlu0 %v668
    %v670 = vpop.xlane.xlu0 %669
    %v671 = vsel %vm543, %v658, 0.0
    %672 = vadd.xlane.f32.xlu0 %v671
    %v673 = vpop.xlane.xlu0 %672
    %v674 = vsel %vm543, %v660, 0.0
    %675 = vadd.xlane.f32.xlu0 %v674
    %v676 = vpop.xlane.xlu0 %675
    %v677 = vmul.f32 %v667, %v556
    %v678 = vmul.f32 %v670, %v556
    %v679 = vmul.f32 %v673, %v556
    %v680 = vmul.f32 %v676, %v556
    %v681 = vadd.f32 %v677, 1e-05
    %v682 = vadd.f32 %v678, 1e-05
    %v683 = vadd.f32 %v679, 1e-05
    %v684 = vadd.f32 %v680, 1e-05
    %v685 = vrsqrt.pop %v681
    %v686 = vrsqrt.pop %v682
    %v687 = vrsqrt.pop %v683
    %v688 = vrsqrt.pop %v684
    %v689 = vmul.f32 %v641, %v685
    %v690 = vmul.f32 %v642, %v686
    %v691 = vmul.f32 %v643, %v687
    %v692 = vmul.f32 %v644, %v688
    %vm693 = vcmp.ge.f32.partialorder %v689, 0.0
    %vm694 = vcmp.ge.f32.partialorder %v690, 0.0
    %vm695 = vcmp.ge.f32.partialorder %v691, 0.0
    %vm696 = vcmp.ge.f32.partialorder %v692, 0.0
    %v697 = vmul.f32 %v689, 0.2
    %v698 = vmul.f32 %v690, 0.2
    %v699 = vmul.f32 %v691, 0.2
    %v700 = vmul.f32 %v692, 0.2
    %v701 = vsel %vm693, %v689, %v697
    %v702 = vsel %vm694, %v690, %v698
    %v703 = vsel %vm695, %v691, %v699
    %v704 = vsel %vm696, %v692, %v700
    %709 = vrot.lane.b32.xlu0 %v525, 4
    %v710 = vpop.permute.xlu0 %709
    %711 = vrot.lane.b32.xlu0 %v527, 4
    %v712 = vpop.permute.xlu0 %711
    %713 = vrot.lane.b32.xlu0 %v529, 4
    %v714 = vpop.permute.xlu0 %713
    %715 = vrot.lane.b32.xlu0 %v531, 4
    %v716 = vpop.permute.xlu0 %715
    %717 = vrot.lane.b32.xlu0 %v535, 4
    %v718 = vpop.permute.xlu0 %717
    %719 = vrot.lane.b32.xlu0 %v537, 4
    %v720 = vpop.permute.xlu0 %719
    %721 = vrot.lane.b32.xlu0 %v539, 4
    %v722 = vpop.permute.xlu0 %721
    %723 = vrot.lane.b32.xlu0 %v541, 4
    %v724 = vpop.permute.xlu0 %723
    %vm725 = vcmask 31744
    %v726 = vsel %vm725, %v710, %v712
    %v727 = vsel %vm725, %v714, %v716
    %v728 = vsel %vm725, %v718, %v720
    %v729 = vsel %vm725, %v722, %v724
    %v734 = vsel %vm543, %v726, 0.0
    %735 = vadd.xlane.f32.xlu0 %v734
    %v736 = vpop.xlane.xlu0 %735
    %v737 = vsel %vm543, %v727, 0.0
    %738 = vadd.xlane.f32.xlu0 %v737
    %v739 = vpop.xlane.xlu0 %738
    %v740 = vsel %vm543, %v728, 0.0
    %741 = vadd.xlane.f32.xlu0 %v740
    %v742 = vpop.xlane.xlu0 %741
    %v743 = vsel %vm543, %v729, 0.0
    %744 = vadd.xlane.f32.xlu0 %v743
    %v745 = vpop.xlane.xlu0 %744
    %v746 = vmul.f32 %v736, %v556
    %v747 = vmul.f32 %v739, %v556
    %v748 = vmul.f32 %v742, %v556
    %v749 = vmul.f32 %v745, %v556
    %v750 = vsub.f32 %v525, %v746
    %v751 = vsub.f32 %v527, %v746
    %v752 = vsub.f32 %v529, %v747
    %v753 = vsub.f32 %v531, %v747
    %v754 = vsub.f32 %v535, %v748
    %v755 = vsub.f32 %v537, %v748
    %v756 = vsub.f32 %v539, %v749
    %v757 = vsub.f32 %v541, %v749
    %v758 = vmul.f32 %v750, %v750
    %v759 = vmul.f32 %v751, %v751
    %v760 = vmul.f32 %v752, %v752
    %v761 = vmul.f32 %v753, %v753
    %v762 = vmul.f32 %v754, %v754
    %v763 = vmul.f32 %v755, %v755
    %v764 = vmul.f32 %v756, %v756
    %v765 = vmul.f32 %v757, %v757
    %774 = vrot.lane.b32.xlu0 %v758, 4
    %v775 = vpop.permute.xlu0 %774
    %776 = vrot.lane.b32.xlu0 %v759, 4
    %v777 = vpop.permute.xlu0 %776
    %778 = vrot.lane.b32.xlu0 %v760, 4
    %v779 = vpop.permute.xlu0 %778
    %780 = vrot.lane.b32.xlu0 %v761, 4
    %v781 = vpop.permute.xlu0 %780
    %782 = vrot.lane.b32.xlu0 %v762, 4
    %v783 = vpop.permute.xlu0 %782
    %784 = vrot.lane.b32.xlu0 %v763, 4
    %v785 = vpop.permute.xlu0 %784
    %786 = vrot.lane.b32.xlu0 %v764, 4
    %v787 = vpop.permute.xlu0 %786
    %788 = vrot.lane.b32.xlu0 %v765, 4
    %v789 = vpop.permute.xlu0 %788
    %v790 = vsel %vm725, %v775, %v777
    %v791 = vsel %vm725, %v779, %v781
    %v792 = vsel %vm725, %v783, %v785
    %v793 = vsel %vm725, %v787, %v789
    %v798 = vsel %vm543, %v790, 0.0
    %799 = vadd.xlane.f32.xlu0 %v798
    %v800 = vpop.xlane.xlu0 %799
    %v801 = vsel %vm543, %v791, 0.0
    %802 = vadd.xlane.f32.xlu0 %v801
    %v803 = vpop.xlane.xlu0 %802
    %v804 = vsel %vm543, %v792, 0.0
    %805 = vadd.xlane.f32.xlu0 %v804
    %v806 = vpop.xlane.xlu0 %805
    %v807 = vsel %vm543, %v793, 0.0
    %808 = vadd.xlane.f32.xlu0 %v807
    %v809 = vpop.xlane.xlu0 %808
    %v810 = vmul.f32 %v800, %v556
    %v811 = vmul.f32 %v803, %v556
    %v812 = vmul.f32 %v806, %v556
    %v813 = vmul.f32 %v809, %v556
    %v814 = vadd.f32 %v810, 1e-05
    %v815 = vadd.f32 %v811, 1e-05
    %v816 = vadd.f32 %v812, 1e-05
    %v817 = vadd.f32 %v813, 1e-05
    %v818 = vrsqrt.pop %v814
    %v819 = vrsqrt.pop %v815
    %v820 = vrsqrt.pop %v816
    %v821 = vrsqrt.pop %v817
    %v822 = vmul.f32 %v750, %v818
    %v823 = vmul.f32 %v751, %v818
    %v824 = vmul.f32 %v752, %v819
    %v825 = vmul.f32 %v753, %v819
    %v826 = vmul.f32 %v754, %v820
    %v827 = vmul.f32 %v755, %v820
    %v828 = vmul.f32 %v756, %v821
    %v829 = vmul.f32 %v757, %v821
    %vm830 = vcmp.ge.f32.partialorder %v822, 0.0
    %vm831 = vcmp.ge.f32.partialorder %v823, 0.0
    %vm832 = vcmp.ge.f32.partialorder %v824, 0.0
    %vm833 = vcmp.ge.f32.partialorder %v825, 0.0
    %vm834 = vcmp.ge.f32.partialorder %v826, 0.0
    %vm835 = vcmp.ge.f32.partialorder %v827, 0.0
    %vm836 = vcmp.ge.f32.partialorder %v828, 0.0
    %vm837 = vcmp.ge.f32.partialorder %v829, 0.0
    %v838 = vmul.f32 %v822, 0.2
    %v839 = vmul.f32 %v823, 0.2
    %v840 = vmul.f32 %v824, 0.2
    %v841 = vmul.f32 %v825, 0.2
    %v842 = vmul.f32 %v826, 0.2
    %v843 = vmul.f32 %v827, 0.2
    %v844 = vmul.f32 %v828, 0.2
    %v845 = vmul.f32 %v829, 0.2
    %v846 = vsel %vm830, %v822, %v838
    %v847 = vsel %vm831, %v823, %v839
    %v848 = vsel %vm832, %v824, %v840
    %v849 = vsel %vm833, %v825, %v841
    %v850 = vsel %vm834, %v826, %v842
    %v851 = vsel %vm835, %v827, %v843
    %v852 = vsel %vm836, %v828, %v844
    %v853 = vsel %vm837, %v829, %v845
    %854 = vrot.lane.b32.xlu0 %v527, 70
    %v855 = vpop.permute.xlu0 %854
    %856 = vrot.lane.b32.xlu0 %v531, 70
    %v857 = vpop.permute.xlu0 %856
    %858 = vrot.lane.b32.xlu0 %v537, 70
    %v859 = vpop.permute.xlu0 %858
    %860 = vrot.lane.b32.xlu0 %v541, 70
    %v861 = vpop.permute.xlu0 %860
    %v866 = vsel %vm543, %v855, 0.0
    %867 = vadd.xlane.f32.xlu0 %v866
    %v868 = vpop.xlane.xlu0 %867
    %v869 = vsel %vm543, %v857, 0.0
    %870 = vadd.xlane.f32.xlu0 %v869
    %v871 = vpop.xlane.xlu0 %870
    %v872 = vsel %vm543, %v859, 0.0
    %873 = vadd.xlane.f32.xlu0 %v872
    %v874 = vpop.xlane.xlu0 %873
    %v875 = vsel %vm543, %v861, 0.0
    %876 = vadd.xlane.f32.xlu0 %v875
    %v877 = vpop.xlane.xlu0 %876
    %v878 = vmul.f32 %v868, %v556
    %v879 = vmul.f32 %v871, %v556
    %v880 = vmul.f32 %v874, %v556
    %v881 = vmul.f32 %v877, %v556
    %v882 = vsub.f32 %v527, %v878
    %v883 = vsub.f32 %v531, %v879
    %v884 = vsub.f32 %v537, %v880
    %v885 = vsub.f32 %v541, %v881
    %v886 = vmul.f32 %v882, %v882
    %v887 = vmul.f32 %v883, %v883
    %v888 = vmul.f32 %v884, %v884
    %v889 = vmul.f32 %v885, %v885
    %894 = vrot.lane.b32.xlu0 %v886, 70
    %v895 = vpop.permute.xlu0 %894
    %896 = vrot.lane.b32.xlu0 %v887, 70
    %v897 = vpop.permute.xlu0 %896
    %898 = vrot.lane.b32.xlu0 %v888, 70
    %v899 = vpop.permute.xlu0 %898
    %900 = vrot.lane.b32.xlu0 %v889, 70
    %v901 = vpop.permute.xlu0 %900
    %v906 = vsel %vm543, %v895, 0.0
    %907 = vadd.xlane.f32.xlu0 %v906
    %v908 = vpop.xlane.xlu0 %907
    %v909 = vsel %vm543, %v897, 0.0
    %910 = vadd.xlane.f32.xlu0 %v909
    %v911 = vpop.xlane.xlu0 %910
    %v912 = vsel %vm543, %v899, 0.0
    %913 = vadd.xlane.f32.xlu0 %v912
    %v914 = vpop.xlane.xlu0 %913
    %v915 = vsel %vm543, %v901, 0.0
    %916 = vadd.xlane.f32.xlu0 %v915
    %v917 = vpop.xlane.xlu0 %916
    %v918 = vmul.f32 %v908, %v556
    %v919 = vmul.f32 %v911, %v556
    %v920 = vmul.f32 %v914, %v556
    %v921 = vmul.f32 %v917, %v556
    %v922 = vadd.f32 %v918, 1e-05
    %v923 = vadd.f32 %v919, 1e-05
    %v924 = vadd.f32 %v920, 1e-05
    %v925 = vadd.f32 %v921, 1e-05
    %v926 = vrsqrt.pop %v922
    %v927 = vrsqrt.pop %v923
    %v928 = vrsqrt.pop %v924
    %v929 = vrsqrt.pop %v925
    %v930 = vmul.f32 %v882, %v926
    %v931 = vmul.f32 %v883, %v927
    %v932 = vmul.f32 %v884, %v928
    %v933 = vmul.f32 %v885, %v929
    %vm934 = vcmp.ge.f32.partialorder %v930, 0.0
    %vm935 = vcmp.ge.f32.partialorder %v931, 0.0
    %vm936 = vcmp.ge.f32.partialorder %v932, 0.0
    %vm937 = vcmp.ge.f32.partialorder %v933, 0.0
    %v938 = vmul.f32 %v930, 0.2
    %v939 = vmul.f32 %v931, 0.2
    %v940 = vmul.f32 %v932, 0.2
    %v941 = vmul.f32 %v933, 0.2
    %v942 = vsel %vm934, %v930, %v938
    %v943 = vsel %vm935, %v931, %v939
    %v944 = vsel %vm936, %v932, %v940
    %v945 = vsel %vm937, %v933, %v941
    %v946 = vpack.c.bf16 %v606, %v605
    %v947 = vpack.c.bf16 %v608, %v607
    %v948 = vpack.c.bf16 %v702, %v701
    %v949 = vpack.c.bf16 %v704, %v703
    %v950 = vpack.c.bf16 %v848, %v846
    %v951 = vpack.c.bf16 %v849, %v847
    %v952 = vpack.c.bf16 %v852, %v850
    %v953 = vpack.c.bf16 %v853, %v851
    %v954 = vpack.c.bf16 %v943, %v942
    %v955 = vpack.c.bf16 %v945, %v944
    %958 = vrot.lane.b32.xlu0 %v946, 125
    %v959 = vpop.permute.xlu0 %958
    %960 = vrot.lane.b32.xlu0 %v947, 125
    %v961 = vpop.permute.xlu0 %960
    %962 = vrot.lane.b32.xlu0 %v946, 122
    %v963 = vpop.permute.xlu0 %962
    %964 = vrot.lane.b32.xlu0 %v947, 122
    %v965 = vpop.permute.xlu0 %964
    %968 = vrot.lane.b32.xlu0 %v948, 125
    %v969 = vpop.permute.xlu0 %968
    %970 = vrot.lane.b32.xlu0 %v949, 125
    %v971 = vpop.permute.xlu0 %970
    %972 = vrot.lane.b32.xlu0 %v948, 122
    %v973 = vpop.permute.xlu0 %972
    %974 = vrot.lane.b32.xlu0 %v949, 122
    %v975 = vpop.permute.xlu0 %974
    %980 = vrot.lane.b32.xlu0 %v950, 125
    %v981 = vpop.permute.xlu0 %980
    %982 = vrot.lane.b32.xlu0 %v951, 125
    %v983 = vpop.permute.xlu0 %982
    %984 = vrot.lane.b32.xlu0 %v952, 125
    %v985 = vpop.permute.xlu0 %984
    %986 = vrot.lane.b32.xlu0 %v953, 125
    %v987 = vpop.permute.xlu0 %986
    %vm988 = vcmask 1022976
    %v989 = vsel %vm988, %v981, %v983
    %v990 = vsel %vm988, %v985, %v987
    %991 = vrot.lane.b32.xlu0 %v951, 122
    %v992 = vpop.permute.xlu0 %991
    %993 = vrot.lane.b32.xlu0 %v953, 122
    %v994 = vpop.permute.xlu0 %993
    %997 = vrot.lane.b32.xlu0 %v954, 125
    %v998 = vpop.permute.xlu0 %997
    %999 = vrot.lane.b32.xlu0 %v955, 125
    %v1000 = vpop.permute.xlu0 %999
    %1001 = vrot.lane.b32.xlu0 %v954, 122
    %v1002 = vpop.permute.xlu0 %1001
    %1003 = vrot.lane.b32.xlu0 %v955, 122
    %v1004 = vpop.permute.xlu0 %1003
    %1005 = vrot.lane.b32.xlu0 %v969, 122
    %v1006 = vpop.permute.xlu0 %1005
    %1007 = vrot.lane.b32.xlu0 %v971, 122
    %v1008 = vpop.permute.xlu0 %1007
    %1009 = vrot.lane.b32.xlu0 %v973, 122
    %v1010 = vpop.permute.xlu0 %1009
    %1011 = vrot.lane.b32.xlu0 %v975, 122
    %v1012 = vpop.permute.xlu0 %1011
    %1013 = vrot.lane.b32.xlu0 %v950, 116
    %v1014 = vpop.permute.xlu0 %1013
    %1015 = vrot.lane.b32.xlu0 %v951, 116
    %v1016 = vpop.permute.xlu0 %1015
    %1017 = vrot.lane.b32.xlu0 %v952, 116
    %v1018 = vpop.permute.xlu0 %1017
    %1019 = vrot.lane.b32.xlu0 %v953, 116
    %v1020 = vpop.permute.xlu0 %1019
    %1021 = vrot.lane.b32.xlu0 %v989, 116
    %v1022 = vpop.permute.xlu0 %1021
    %1023 = vrot.lane.b32.xlu0 %v983, 116
    %v1024 = vpop.permute.xlu0 %1023
    %1025 = vrot.lane.b32.xlu0 %v990, 116
    %v1026 = vpop.permute.xlu0 %1025
    %1027 = vrot.lane.b32.xlu0 %v987, 116
    %v1028 = vpop.permute.xlu0 %1027
    %1029 = vrot.lane.b32.xlu0 %v992, 116
    %v1030 = vpop.permute.xlu0 %1029
    %1031 = vrot.lane.b32.xlu0 %v994, 116
    %v1032 = vpop.permute.xlu0 %1031
    %vm1033 = vcmask 949248
    %v1034 = vsel %vm1033, %v1014, %v1016
    %v1035 = vsel %vm1033, %v1018, %v1020
    %v1036 = vsel %vm1033, %v1022, %v1024
    %v1037 = vsel %vm1033, %v1026, %v1028
    %1038 = vrot.lane.b32.xlu0 %v954, 110
    %v1039 = vpop.permute.xlu0 %1038
    %1040 = vrot.lane.b32.xlu0 %v955, 110
    %v1041 = vpop.permute.xlu0 %1040
    %1042 = vrot.lane.b32.xlu0 %v998, 110
    %v1043 = vpop.permute.xlu0 %1042
    %1044 = vrot.lane.b32.xlu0 %v1000, 110
    %v1045 = vpop.permute.xlu0 %1044
    %1046 = vrot.lane.b32.xlu0 %v1002, 110
    %v1047 = vpop.permute.xlu0 %1046
    %1048 = vrot.lane.b32.xlu0 %v1004, 110
    %v1049 = vpop.permute.xlu0 %1048
    %vm1050 = vcmask 457728
    %v1053 = vsel %vm1050, %v946, %v973
    %v1056 = vsel %vm1050, %v947, %v975
    %v1059 = vsel %vm1050, %v959, %v1006
    %v1062 = vsel %vm1050, %v961, %v1008
    %v1065 = vsel %vm1050, %v963, %v1010
    %v1068 = vsel %vm1050, %v965, %v1012
    %vm1069 = vcmask 916480
    %v1071 = vsel %vm1069, %v1053, %v1034
    %v1074 = vsel %vm1069, %v1056, %v1035
    %v1077 = vsel %vm1069, %v1059, %v1036
    %v1080 = vsel %vm1069, %v1062, %v1037
    %v1083 = vsel %vm1069, %v1065, %v1030
    %v1086 = vsel %vm1069, %v1068, %v1032
    %vm1088 = vcmask 326656
    %v1091 = vsel %vm1088, %v1016, %v1039
    %v1095 = vsel %vm1088, %v1020, %v1041
    %v1099 = vsel %vm1088, %v1024, %v1043
    %v1103 = vsel %vm1088, %v1028, %v1045
    %v1106 = vsel %vm1088, %v1030, %v1047
    %v1109 = vsel %vm1088, %v1032, %v1049
    %v1111 = vld [vmem:[%s2] sm:$0xf]
    %v1112 = vld [vmem:[%s2 + $0x4] sm:$0xf]
    %v1113 = vld [vmem:[%s2 + $0x8] sm:$0xf]
    %v1114 = vld [vmem:[%s2 + $0xc] sm:$0xf]
    %v1119 = vunpack.c.l.b16 %v1111
    %v1120 = vunpack.c.l.b16 %v1112
    %v1121 = vunpack.c.l.b16 %v1113
    %v1122 = vunpack.c.l.b16 %v1114
    %v1123 = vpack.c.b16 %v1120, %v1119
    %v1124 = vpack.c.b16 %v1122, %v1121
    %vm1125 = vcmask 785408
    %v1127 = vsel %vm1125, %v1123, 0
    %v1130 = vsel %vm1125, %v1124, 0
    %1132 = vmatprep.subr.bf16.mxu0 %v1091
    %1133 = vmatpush1.bf16.msra.mxu0 %v1071
    %1134 = vmatprep.subr.bf16.mxu0 %v1095
    %1135 = vmatpush1.bf16.msra.mxu0 %v1074
    %1136 = vmatprep.subr.bf16.mxu0 %v1099
    %1137 = vmatpush1.bf16.msra.mxu0 %v1077
    %1138 = vmatprep.subr.bf16.mxu0 %v1103
    %1139 = vmatpush1.bf16.msra.mxu0 %v1080
    %1140 = vmatprep.subr.bf16.mxu0 %v1106
    %1141 = vmatpush1.bf16.msra.mxu0 %v1083
    %1142 = vmatprep.subr.bf16.mxu0 %v1109
    %1143 = vmatpush1.bf16.msra.mxu0 %v1086
    %1144 = vmatprep.subr.bf16.mxu0 0
    %1145 = vmatpush1.bf16.msra.mxu0 0
    %1146 = vmatprep.subr.bf16.mxu0 0
    %1147 = vmatpush1.bf16.msra.mxu0 0
    %1148 = vmatprep.subr.bf16.mxu0 0
    %1149 = vmatpush1.bf16.msra.mxu0 0
    %1150 = vmatprep.subr.bf16.mxu0 0
    %1151 = vmatpush1.bf16.msra.mxu0 0
    %1152 = vmatprep.subr.bf16.mxu0 0
    %1153 = vmatpush1.bf16.msra.mxu0 0
    %1154 = vmatprep.subr.bf16.mxu0 0
    %1155 = vmatpush1.bf16.msra.mxu0 0
    %1156 = vmatprep.subr.bf16.mxu0 0
    %1157 = vmatpush1.bf16.msra.mxu0 0
    %1158 = vmatprep.subr.bf16.mxu0 0
    %1159 = vmatpush1.bf16.msra.mxu0 0
    %1160 = vmatprep.subr.bf16.mxu0 0
    %1161 = vmatpush1.bf16.msra.mxu0 0
    %1162 = vmatprep.subr.bf16.mxu0 0
    %1163 = vmatpush1.bf16.msra.mxu0 0
    %1164 = vmatprep.mubr.bf16.mxu0 0
    %1165 = vmatmul.mubr.bf16.gmra.mrb[0].mxu0 %v1127
    %v1166 = vpop.f32.mrb[0].mxu0
    %v1167 = vadd.f32 0.0, %v1166
    %v1168 = vpop.f32.mrb[0].mxu0
    %v1169 = vadd.f32 0.0, %v1168
    %v1170 = vpop.f32.mrb[0].mxu0
    %v1171 = vadd.f32 0.0, %v1170
    %v1172 = vpop.f32.mrb[0].mxu0
    %v1173 = vadd.f32 0.0, %v1172
    %1174 = vmatprep.mubr.bf16.mxu0 0
    %1175 = vmatmul.mubr.bf16.gmra.mrb[0].mxu0 %v1130
    %v1176 = vpop.f32.mrb[0].mxu0
    %v1177 = vadd.f32 0.0, %v1176
    %v1178 = vpop.f32.mrb[0].mxu0
    %v1179 = vadd.f32 0.0, %v1178
    %v1180 = vpop.f32.mrb[0].mxu0
    %v1181 = vadd.f32 0.0, %v1180
    %v1182 = vpop.f32.mrb[0].mxu0
    %v1183 = vadd.f32 0.0, %v1182
    %1184 = vdwg.mxu0
    %v1185 = vsel %vm1050, %v1167, 0.0
    %1186 = vadd.xlane.f32.xlu0 %v1185
    %v1187 = vpop.xlane.xlu0 %1186
    %v1188 = vsel %vm1050, %v1171, 0.0
    %1189 = vadd.xlane.f32.xlu0 %v1188
    %v1190 = vpop.xlane.xlu0 %1189
    %v1191 = vsel %vm1050, %v1177, 0.0
    %1192 = vadd.xlane.f32.xlu0 %v1191
    %v1193 = vpop.xlane.xlu0 %1192
    %v1194 = vsel %vm1050, %v1181, 0.0
    %1195 = vadd.xlane.f32.xlu0 %v1194
    %v1196 = vpop.xlane.xlu0 %1195
    %v1197 = vrcp.pop 56.0
    %v1198 = vmul.f32 %v1187, %v1197
    %v1199 = vmul.f32 %v1190, %v1197
    %v1200 = vmul.f32 %v1193, %v1197
    %v1201 = vmul.f32 %v1196, %v1197
    %v1202 = vsub.f32 %v1167, %v1198
    %v1203 = vsub.f32 %v1171, %v1199
    %v1204 = vsub.f32 %v1177, %v1200
    %v1205 = vsub.f32 %v1181, %v1201
    %v1206 = vmul.f32 %v1202, %v1202
    %v1207 = vmul.f32 %v1203, %v1203
    %v1208 = vmul.f32 %v1204, %v1204
    %v1209 = vmul.f32 %v1205, %v1205
    %v1210 = vsel %vm1050, %v1206, 0.0
    %1211 = vadd.xlane.f32.xlu0 %v1210
    %v1212 = vpop.xlane.xlu0 %1211
    %v1213 = vsel %vm1050, %v1207, 0.0
    %1214 = vadd.xlane.f32.xlu0 %v1213
    %v1215 = vpop.xlane.xlu0 %1214
    %v1216 = vsel %vm1050, %v1208, 0.0
    %1217 = vadd.xlane.f32.xlu0 %v1216
    %v1218 = vpop.xlane.xlu0 %1217
    %v1219 = vsel %vm1050, %v1209, 0.0
    %1220 = vadd.xlane.f32.xlu0 %v1219
    %v1221 = vpop.xlane.xlu0 %1220
    %v1222 = vmul.f32 %v1212, %v1197
    %v1223 = vmul.f32 %v1215, %v1197
    %v1224 = vmul.f32 %v1218, %v1197
    %v1225 = vmul.f32 %v1221, %v1197
    %v1226 = vadd.f32 %v1222, 1e-05
    %v1227 = vadd.f32 %v1223, 1e-05
    %v1228 = vadd.f32 %v1224, 1e-05
    %v1229 = vadd.f32 %v1225, 1e-05
    %v1230 = vrsqrt.pop %v1226
    %v1231 = vrsqrt.pop %v1227
    %v1232 = vrsqrt.pop %v1228
    %v1233 = vrsqrt.pop %v1229
    %v1234 = vmul.f32 %v1202, %v1230
    %v1235 = vmul.f32 %v1203, %v1231
    %v1236 = vmul.f32 %v1204, %v1232
    %v1237 = vmul.f32 %v1205, %v1233
    %vm1238 = vcmp.ge.f32.partialorder %v1234, 0.0
    %vm1239 = vcmp.ge.f32.partialorder %v1235, 0.0
    %vm1240 = vcmp.ge.f32.partialorder %v1236, 0.0
    %vm1241 = vcmp.ge.f32.partialorder %v1237, 0.0
    %v1242 = vmul.f32 %v1234, 0.2
    %v1243 = vmul.f32 %v1235, 0.2
    %v1244 = vmul.f32 %v1236, 0.2
    %v1245 = vmul.f32 %v1237, 0.2
    %v1246 = vsel %vm1238, %v1234, %v1242
    %v1247 = vsel %vm1239, %v1235, %v1243
    %v1248 = vsel %vm1240, %v1236, %v1244
    %v1249 = vsel %vm1241, %v1237, %v1245
    %1254 = vrot.lane.b32.xlu0 %v1167, 72
    %v1255 = vpop.permute.xlu0 %1254
    %1256 = vrot.lane.b32.xlu0 %v1171, 72
    %v1257 = vpop.permute.xlu0 %1256
    %1258 = vrot.lane.b32.xlu0 %v1177, 72
    %v1259 = vpop.permute.xlu0 %1258
    %1260 = vrot.lane.b32.xlu0 %v1181, 72
    %v1261 = vpop.permute.xlu0 %1260
    %v1266 = vsel %vm1050, %v1255, 0.0
    %1267 = vadd.xlane.f32.xlu0 %v1266
    %v1268 = vpop.xlane.xlu0 %1267
    %v1269 = vsel %vm1050, %v1257, 0.0
    %1270 = vadd.xlane.f32.xlu0 %v1269
    %v1271 = vpop.xlane.xlu0 %1270
    %v1272 = vsel %vm1050, %v1259, 0.0
    %1273 = vadd.xlane.f32.xlu0 %v1272
    %v1274 = vpop.xlane.xlu0 %1273
    %v1275 = vsel %vm1050, %v1261, 0.0
    %1276 = vadd.xlane.f32.xlu0 %v1275
    %v1277 = vpop.xlane.xlu0 %1276
    %v1278 = vmul.f32 %v1268, %v1197
    %v1279 = vmul.f32 %v1271, %v1197
    %v1280 = vmul.f32 %v1274, %v1197
    %v1281 = vmul.f32 %v1277, %v1197
    %v1282 = vsub.f32 %v1167, %v1278
    %v1283 = vsub.f32 %v1171, %v1279
    %v1284 = vsub.f32 %v1177, %v1280
    %v1285 = vsub.f32 %v1181, %v1281
    %v1286 = vmul.f32 %v1282, %v1282
    %v1287 = vmul.f32 %v1283, %v1283
    %v1288 = vmul.f32 %v1284, %v1284
    %v1289 = vmul.f32 %v1285, %v1285
    %1294 = vrot.lane.b32.xlu0 %v1286, 72
    %v1295 = vpop.permute.xlu0 %1294
    %1296 = vrot.lane.b32.xlu0 %v1287, 72
    %v1297 = vpop.permute.xlu0 %1296
    %1298 = vrot.lane.b32.xlu0 %v1288, 72
    %v1299 = vpop.permute.xlu0 %1298
    %1300 = vrot.lane.b32.xlu0 %v1289, 72
    %v1301 = vpop.permute.xlu0 %1300
    %v1306 = vsel %vm1050, %v1295, 0.0
    %1307 = vadd.xlane.f32.xlu0 %v1306
    %v1308 = vpop.xlane.xlu0 %1307
    %v1309 = vsel %vm1050, %v1297, 0.0
    %1310 = vadd.xlane.f32.xlu0 %v1309
    %v1311 = vpop.xlane.xlu0 %1310
    %v1312 = vsel %vm1050, %v1299, 0.0
    %1313 = vadd.xlane.f32.xlu0 %v1312
    %v1314 = vpop.xlane.xlu0 %1313
    %v1315 = vsel %vm1050, %v1301, 0.0
    %1316 = vadd.xlane.f32.xlu0 %v1315
    %v1317 = vpop.xlane.xlu0 %1316
    %v1318 = vmul.f32 %v1308, %v1197
    %v1319 = vmul.f32 %v1311, %v1197
    %v1320 = vmul.f32 %v1314, %v1197
    %v1321 = vmul.f32 %v1317, %v1197
    %v1322 = vadd.f32 %v1318, 1e-05
    %v1323 = vadd.f32 %v1319, 1e-05
    %v1324 = vadd.f32 %v1320, 1e-05
    %v1325 = vadd.f32 %v1321, 1e-05
    %v1326 = vrsqrt.pop %v1322
    %v1327 = vrsqrt.pop %v1323
    %v1328 = vrsqrt.pop %v1324
    %v1329 = vrsqrt.pop %v1325
    %v1330 = vmul.f32 %v1282, %v1326
    %v1331 = vmul.f32 %v1283, %v1327
    %v1332 = vmul.f32 %v1284, %v1328
    %v1333 = vmul.f32 %v1285, %v1329
    %vm1334 = vcmp.ge.f32.partialorder %v1330, 0.0
    %vm1335 = vcmp.ge.f32.partialorder %v1331, 0.0
    %vm1336 = vcmp.ge.f32.partialorder %v1332, 0.0
    %vm1337 = vcmp.ge.f32.partialorder %v1333, 0.0
    %v1338 = vmul.f32 %v1330, 0.2
    %v1339 = vmul.f32 %v1331, 0.2
    %v1340 = vmul.f32 %v1332, 0.2
    %v1341 = vmul.f32 %v1333, 0.2
    %v1342 = vsel %vm1334, %v1330, %v1338
    %v1343 = vsel %vm1335, %v1331, %v1339
    %v1344 = vsel %vm1336, %v1332, %v1340
    %v1345 = vsel %vm1337, %v1333, %v1341
    %1350 = vrot.lane.b32.xlu0 %v1167, 16
    %v1351 = vpop.permute.xlu0 %1350
    %1352 = vrot.lane.b32.xlu0 %v1169, 16
    %v1353 = vpop.permute.xlu0 %1352
    %1354 = vrot.lane.b32.xlu0 %v1171, 16
    %v1355 = vpop.permute.xlu0 %1354
    %1356 = vrot.lane.b32.xlu0 %v1173, 16
    %v1357 = vpop.permute.xlu0 %1356
    %1358 = vrot.lane.b32.xlu0 %v1177, 16
    %v1359 = vpop.permute.xlu0 %1358
    %1360 = vrot.lane.b32.xlu0 %v1179, 16
    %v1361 = vpop.permute.xlu0 %1360
    %1362 = vrot.lane.b32.xlu0 %v1181, 16
    %v1363 = vpop.permute.xlu0 %1362
    %1364 = vrot.lane.b32.xlu0 %v1183, 16
    %v1365 = vpop.permute.xlu0 %1364
    %v1366 = vsel %vm141, %v1351, %v1353
    %v1367 = vsel %vm141, %v1355, %v1357
    %v1368 = vsel %vm141, %v1359, %v1361
    %v1369 = vsel %vm141, %v1363, %v1365
    %v1374 = vsel %vm1050, %v1366, 0.0
    %1375 = vadd.xlane.f32.xlu0 %v1374
    %v1376 = vpop.xlane.xlu0 %1375
    %v1377 = vsel %vm1050, %v1367, 0.0
    %1378 = vadd.xlane.f32.xlu0 %v1377
    %v1379 = vpop.xlane.xlu0 %1378
    %v1380 = vsel %vm1050, %v1368, 0.0
    %1381 = vadd.xlane.f32.xlu0 %v1380
    %v1382 = vpop.xlane.xlu0 %1381
    %v1383 = vsel %vm1050, %v1369, 0.0
    %1384 = vadd.xlane.f32.xlu0 %v1383
    %v1385 = vpop.xlane.xlu0 %1384
    %v1386 = vmul.f32 %v1376, %v1197
    %v1387 = vmul.f32 %v1379, %v1197
    %v1388 = vmul.f32 %v1382, %v1197
    %v1389 = vmul.f32 %v1385, %v1197
    %v1390 = vsub.f32 %v1167, %v1386
    %v1391 = vsub.f32 %v1169, %v1386
    %v1392 = vsub.f32 %v1171, %v1387
    %v1393 = vsub.f32 %v1173, %v1387
    %v1394 = vsub.f32 %v1177, %v1388
    %v1395 = vsub.f32 %v1179, %v1388
    %v1396 = vsub.f32 %v1181, %v1389
    %v1397 = vsub.f32 %v1183, %v1389
    %v1398 = vmul.f32 %v1390, %v1390
    %v1399 = vmul.f32 %v1391, %v1391
    %v1400 = vmul.f32 %v1392, %v1392
    %v1401 = vmul.f32 %v1393, %v1393
    %v1402 = vmul.f32 %v1394, %v1394
    %v1403 = vmul.f32 %v1395, %v1395
    %v1404 = vmul.f32 %v1396, %v1396
    %v1405 = vmul.f32 %v1397, %v1397
    %1414 = vrot.lane.b32.xlu0 %v1398, 16
    %v1415 = vpop.permute.xlu0 %1414
    %1416 = vrot.lane.b32.xlu0 %v1399, 16
    %v1417 = vpop.permute.xlu0 %1416
    %1418 = vrot.lane.b32.xlu0 %v1400, 16
    %v1419 = vpop.permute.xlu0 %1418
    %1420 = vrot.lane.b32.xlu0 %v1401, 16
    %v1421 = vpop.permute.xlu0 %1420
    %1422 = vrot.lane.b32.xlu0 %v1402, 16
    %v1423 = vpop.permute.xlu0 %1422
    %1424 = vrot.lane.b32.xlu0 %v1403, 16
    %v1425 = vpop.permute.xlu0 %1424
    %1426 = vrot.lane.b32.xlu0 %v1404, 16
    %v1427 = vpop.permute.xlu0 %1426
    %1428 = vrot.lane.b32.xlu0 %v1405, 16
    %v1429 = vpop.permute.xlu0 %1428
    %v1430 = vsel %vm141, %v1415, %v1417
    %v1431 = vsel %vm141, %v1419, %v1421
    %v1432 = vsel %vm141, %v1423, %v1425
    %v1433 = vsel %vm141, %v1427, %v1429
    %v1438 = vsel %vm1050, %v1430, 0.0
    %1439 = vadd.xlane.f32.xlu0 %v1438
    %v1440 = vpop.xlane.xlu0 %1439
    %v1441 = vsel %vm1050, %v1431, 0.0
    %1442 = vadd.xlane.f32.xlu0 %v1441
    %v1443 = vpop.xlane.xlu0 %1442
    %v1444 = vsel %vm1050, %v1432, 0.0
    %1445 = vadd.xlane.f32.xlu0 %v1444
    %v1446 = vpop.xlane.xlu0 %1445
    %v1447 = vsel %vm1050, %v1433, 0.0
    %1448 = vadd.xlane.f32.xlu0 %v1447
    %v1449 = vpop.xlane.xlu0 %1448
    %v1450 = vmul.f32 %v1440, %v1197
    %v1451 = vmul.f32 %v1443, %v1197
    %v1452 = vmul.f32 %v1446, %v1197
    %v1453 = vmul.f32 %v1449, %v1197
    %v1454 = vadd.f32 %v1450, 1e-05
    %v1455 = vadd.f32 %v1451, 1e-05
    %v1456 = vadd.f32 %v1452, 1e-05
    %v1457 = vadd.f32 %v1453, 1e-05
    %v1458 = vrsqrt.pop %v1454
    %v1459 = vrsqrt.pop %v1455
    %v1460 = vrsqrt.pop %v1456
    %v1461 = vrsqrt.pop %v1457
    %v1462 = vmul.f32 %v1390, %v1458
    %v1463 = vmul.f32 %v1391, %v1458
    %v1464 = vmul.f32 %v1392, %v1459
    %v1465 = vmul.f32 %v1393, %v1459
    %v1466 = vmul.f32 %v1394, %v1460
    %v1467 = vmul.f32 %v1395, %v1460
    %v1468 = vmul.f32 %v1396, %v1461
    %v1469 = vmul.f32 %v1397, %v1461
    %vm1470 = vcmp.ge.f32.partialorder %v1462, 0.0
    %vm1471 = vcmp.ge.f32.partialorder %v1463, 0.0
    %vm1472 = vcmp.ge.f32.partialorder %v1464, 0.0
    %vm1473 = vcmp.ge.f32.partialorder %v1465, 0.0
    %vm1474 = vcmp.ge.f32.partialorder %v1466, 0.0
    %vm1475 = vcmp.ge.f32.partialorder %v1467, 0.0
    %vm1476 = vcmp.ge.f32.partialorder %v1468, 0.0
    %vm1477 = vcmp.ge.f32.partialorder %v1469, 0.0
    %v1478 = vmul.f32 %v1462, 0.2
    %v1479 = vmul.f32 %v1463, 0.2
    %v1480 = vmul.f32 %v1464, 0.2
    %v1481 = vmul.f32 %v1465, 0.2
    %v1482 = vmul.f32 %v1466, 0.2
    %v1483 = vmul.f32 %v1467, 0.2
    %v1484 = vmul.f32 %v1468, 0.2
    %v1485 = vmul.f32 %v1469, 0.2
    %v1486 = vsel %vm1470, %v1462, %v1478
    %v1487 = vsel %vm1471, %v1463, %v1479
    %v1488 = vsel %vm1472, %v1464, %v1480
    %v1489 = vsel %vm1473, %v1465, %v1481
    %v1490 = vsel %vm1474, %v1466, %v1482
    %v1491 = vsel %vm1475, %v1467, %v1483
    %v1492 = vsel %vm1476, %v1468, %v1484
    %v1493 = vsel %vm1477, %v1469, %v1485
    %1494 = vrot.lane.b32.xlu0 %v1169, 88
    %v1495 = vpop.permute.xlu0 %1494
    %1496 = vrot.lane.b32.xlu0 %v1173, 88
    %v1497 = vpop.permute.xlu0 %1496
    %1498 = vrot.lane.b32.xlu0 %v1179, 88
    %v1499 = vpop.permute.xlu0 %1498
    %1500 = vrot.lane.b32.xlu0 %v1183, 88
    %v1501 = vpop.permute.xlu0 %1500
    %v1506 = vsel %vm1050, %v1495, 0.0
    %1507 = vadd.xlane.f32.xlu0 %v1506
    %v1508 = vpop.xlane.xlu0 %1507
    %v1509 = vsel %vm1050, %v1497, 0.0
    %1510 = vadd.xlane.f32.xlu0 %v1509
    %v1511 = vpop.xlane.xlu0 %1510
    %v1512 = vsel %vm1050, %v1499, 0.0
    %1513 = vadd.xlane.f32.xlu0 %v1512
    %v1514 = vpop.xlane.xlu0 %1513
    %v1515 = vsel %vm1050, %v1501, 0.0
    %1516 = vadd.xlane.f32.xlu0 %v1515
    %v1517 = vpop.xlane.xlu0 %1516
    %v1518 = vmul.f32 %v1508, %v1197
    %v1519 = vmul.f32 %v1511, %v1197
    %v1520 = vmul.f32 %v1514, %v1197
    %v1521 = vmul.f32 %v1517, %v1197
    %v1522 = vsub.f32 %v1169, %v1518
    %v1523 = vsub.f32 %v1173, %v1519
    %v1524 = vsub.f32 %v1179, %v1520
    %v1525 = vsub.f32 %v1183, %v1521
    %v1526 = vmul.f32 %v1522, %v1522
    %v1527 = vmul.f32 %v1523, %v1523
    %v1528 = vmul.f32 %v1524, %v1524
    %v1529 = vmul.f32 %v1525, %v1525
    %1534 = vrot.lane.b32.xlu0 %v1526, 88
    %v1535 = vpop.permute.xlu0 %1534
    %1536 = vrot.lane.b32.xlu0 %v1527, 88
    %v1537 = vpop.permute.xlu0 %1536
    %1538 = vrot.lane.b32.xlu0 %v1528, 88
    %v1539 = vpop.permute.xlu0 %1538
    %1540 = vrot.lane.b32.xlu0 %v1529, 88
    %v1541 = vpop.permute.xlu0 %1540
    %v1546 = vsel %vm1050, %v1535, 0.0
    %1547 = vadd.xlane.f32.xlu0 %v1546
    %v1548 = vpop.xlane.xlu0 %1547
    %v1549 = vsel %vm1050, %v1537, 0.0
    %1550 = vadd.xlane.f32.xlu0 %v1549
    %v1551 = vpop.xlane.xlu0 %1550
    %v1552 = vsel %vm1050, %v1539, 0.0
    %1553 = vadd.xlane.f32.xlu0 %v1552
    %v1554 = vpop.xlane.xlu0 %1553
    %v1555 = vsel %vm1050, %v1541, 0.0
    %1556 = vadd.xlane.f32.xlu0 %v1555
    %v1557 = vpop.xlane.xlu0 %1556
    %v1558 = vmul.f32 %v1548, %v1197
    %v1559 = vmul.f32 %v1551, %v1197
    %v1560 = vmul.f32 %v1554, %v1197
    %v1561 = vmul.f32 %v1557, %v1197
    %v1562 = vadd.f32 %v1558, 1e-05
    %v1563 = vadd.f32 %v1559, 1e-05
    %v1564 = vadd.f32 %v1560, 1e-05
    %v1565 = vadd.f32 %v1561, 1e-05
    %v1566 = vrsqrt.pop %v1562
    %v1567 = vrsqrt.pop %v1563
    %v1568 = vrsqrt.pop %v1564
    %v1569 = vrsqrt.pop %v1565
    %v1570 = vmul.f32 %v1522, %v1566
    %v1571 = vmul.f32 %v1523, %v1567
    %v1572 = vmul.f32 %v1524, %v1568
    %v1573 = vmul.f32 %v1525, %v1569
    %vm1574 = vcmp.ge.f32.partialorder %v1570, 0.0
    %vm1575 = vcmp.ge.f32.partialorder %v1571, 0.0
    %vm1576 = vcmp.ge.f32.partialorder %v1572, 0.0
    %vm1577 = vcmp.ge.f32.partialorder %v1573, 0.0
    %v1578 = vmul.f32 %v1570, 0.2
    %v1579 = vmul.f32 %v1571, 0.2
    %v1580 = vmul.f32 %v1572, 0.2
    %v1581 = vmul.f32 %v1573, 0.2
    %v1582 = vsel %vm1574, %v1570, %v1578
    %v1583 = vsel %vm1575, %v1571, %v1579
    %v1584 = vsel %vm1576, %v1572, %v1580
    %v1585 = vsel %vm1577, %v1573, %v1581
    %v1586 = vpack.c.bf16 %v1247, %v1246
    %v1587 = vpack.c.bf16 %v1249, %v1248
    %v1588 = vpack.c.bf16 %v1343, %v1342
    %v1589 = vpack.c.bf16 %v1345, %v1344
    %v1590 = vpack.c.bf16 %v1488, %v1486
    %v1591 = vpack.c.bf16 %v1489, %v1487
    %v1592 = vpack.c.bf16 %v1492, %v1490
    %v1593 = vpack.c.bf16 %v1493, %v1491
    %v1594 = vpack.c.bf16 %v1583, %v1582
    %v1595 = vpack.c.bf16 %v1585, %v1584
    %v1598 = vsel %vm1050, %v1586, %v1588
    %v1601 = vsel %vm1050, %v1587, %v1589
    %v1603 = vsel %vm1069, %v1598, %v1590
    %v1606 = vsel %vm1069, %v1601, %v1592
    %v1610 = vsel %vm1088, %v1591, %v1594
    %v1614 = vsel %vm1088, %v1593, %v1595
    %v1616 = vld [vmem:[%s3] sm:$0xf]
    %v1617 = vld [vmem:[%s3 + $0x4] sm:$0xf]
    %v1618 = vld [vmem:[%s3 + $0x8] sm:$0xf]
    %v1619 = vld [vmem:[%s3 + $0xc] sm:$0xf]
    %v1624 = vunpack.c.l.b16 %v1616
    %v1625 = vunpack.c.l.b16 %v1617
    %v1626 = vunpack.c.l.b16 %v1618
    %v1627 = vunpack.c.l.b16 %v1619
    %v1628 = vpack.c.b16 %v1625, %v1624
    %v1629 = vpack.c.b16 %v1627, %v1626
    %v1631 = vsel %vm150, %v1628, 0
    %v1634 = vsel %vm150, %v1629, 0
    %1636 = vmatprep.subr.bf16.mxu0 %v1610
    %1637 = vmatpush1.bf16.msra.mxu0 %v1603
    %1638 = vmatprep.subr.bf16.mxu0 %v1614
    %1639 = vmatpush1.bf16.msra.mxu0 %v1606
    %1640 = vmatprep.subr.bf16.mxu0 0
    %1641 = vmatpush1.bf16.msra.mxu0 0
    %1642 = vmatprep.subr.bf16.mxu0 0
    %1643 = vmatpush1.bf16.msra.mxu0 0
    %1644 = vmatprep.subr.bf16.mxu0 0
    %1645 = vmatpush1.bf16.msra.mxu0 0
    %1646 = vmatprep.subr.bf16.mxu0 0
    %1647 = vmatpush1.bf16.msra.mxu0 0
    %1648 = vmatprep.subr.bf16.mxu0 0
    %1649 = vmatpush1.bf16.msra.mxu0 0
    %1650 = vmatprep.subr.bf16.mxu0 0
    %1651 = vmatpush1.bf16.msra.mxu0 0
    %1652 = vmatprep.subr.bf16.mxu0 0
    %1653 = vmatpush1.bf16.msra.mxu0 0
    %1654 = vmatprep.subr.bf16.mxu0 0
    %1655 = vmatpush1.bf16.msra.mxu0 0
    %1656 = vmatprep.subr.bf16.mxu0 0
    %1657 = vmatpush1.bf16.msra.mxu0 0
    %1658 = vmatprep.subr.bf16.mxu0 0
    %1659 = vmatpush1.bf16.msra.mxu0 0
    %1660 = vmatprep.subr.bf16.mxu0 0
    %1661 = vmatpush1.bf16.msra.mxu0 0
    %1662 = vmatprep.subr.bf16.mxu0 0
    %1663 = vmatpush1.bf16.msra.mxu0 0
    %1664 = vmatprep.subr.bf16.mxu0 0
    %1665 = vmatpush1.bf16.msra.mxu0 0
    %1666 = vmatprep.subr.bf16.mxu0 0
    %1667 = vmatpush1.bf16.msra.mxu0 0
    %1668 = vmatprep.mubr.bf16.mxu0 0
    %1669 = vmatmul.mubr.bf16.gmra.mrb[0].mxu0 %v1631
    %v1670 = vpop.f32.mrb[0].mxu0
    %v1671 = vadd.f32 0.0, %v1670
    %v1672 = vpop.f32.mrb[0].mxu0
    %v1673 = vadd.f32 0.0, %v1672
    %v1674 = vpop.f32.mrb[0].mxu0
    %v1675 = vadd.f32 0.0, %v1674
    %v1676 = vpop.f32.mrb[0].mxu0
    %v1677 = vadd.f32 0.0, %v1676
    %1678 = vmatprep.mubr.bf16.mxu0 0
    %1679 = vmatmul.mubr.bf16.gmra.mrb[0].mxu0 %v1634
    %v1680 = vpop.f32.mrb[0].mxu0
    %v1681 = vadd.f32 0.0, %v1680
    %v1682 = vpop.f32.mrb[0].mxu0
    %v1683 = vadd.f32 0.0, %v1682
    %v1684 = vpop.f32.mrb[0].mxu0
    %v1685 = vadd.f32 0.0, %v1684
    %v1686 = vpop.f32.mrb[0].mxu0
    %v1687 = vadd.f32 0.0, %v1686
    %1688 = vdwg.mxu0
    %v1689 = vsel %vm1050, %v1671, 0.0
    %1690 = vadd.xlane.f32.xlu0 %v1689
    %v1691 = vpop.xlane.xlu0 %1690
    %v1692 = vsel %vm1050, %v1675, 0.0
    %1693 = vadd.xlane.f32.xlu0 %v1692
    %v1694 = vpop.xlane.xlu0 %1693
    %v1695 = vsel %vm1050, %v1681, 0.0
    %1696 = vadd.xlane.f32.xlu0 %v1695
    %v1697 = vpop.xlane.xlu0 %1696
    %v1698 = vsel %vm1050, %v1685, 0.0
    %1699 = vadd.xlane.f32.xlu0 %v1698
    %v1700 = vpop.xlane.xlu0 %1699
    %v1701 = vmul.f32 %v1691, %v1197
    %v1702 = vmul.f32 %v1694, %v1197
    %v1703 = vmul.f32 %v1697, %v1197
    %v1704 = vmul.f32 %v1700, %v1197
    %v1705 = vsub.f32 %v1671, %v1701
    %v1706 = vsub.f32 %v1675, %v1702
    %v1707 = vsub.f32 %v1681, %v1703
    %v1708 = vsub.f32 %v1685, %v1704
    %v1709 = vmul.f32 %v1705, %v1705
    %v1710 = vmul.f32 %v1706, %v1706
    %v1711 = vmul.f32 %v1707, %v1707
    %v1712 = vmul.f32 %v1708, %v1708
    %v1713 = vsel %vm1050, %v1709, 0.0
    %1714 = vadd.xlane.f32.xlu0 %v1713
    %v1715 = vpop.xlane.xlu0 %1714
    %v1716 = vsel %vm1050, %v1710, 0.0
    %1717 = vadd.xlane.f32.xlu0 %v1716
    %v1718 = vpop.xlane.xlu0 %1717
    %v1719 = vsel %vm1050, %v1711, 0.0
    %1720 = vadd.xlane.f32.xlu0 %v1719
    %v1721 = vpop.xlane.xlu0 %1720
    %v1722 = vsel %vm1050, %v1712, 0.0
    %1723 = vadd.xlane.f32.xlu0 %v1722
    %v1724 = vpop.xlane.xlu0 %1723
    %v1725 = vmul.f32 %v1715, %v1197
    %v1726 = vmul.f32 %v1718, %v1197
    %v1727 = vmul.f32 %v1721, %v1197
    %v1728 = vmul.f32 %v1724, %v1197
    %v1729 = vadd.f32 %v1725, 1e-05
    %v1730 = vadd.f32 %v1726, 1e-05
    %v1731 = vadd.f32 %v1727, 1e-05
    %v1732 = vadd.f32 %v1728, 1e-05
    %v1733 = vrsqrt.pop %v1729
    %v1734 = vrsqrt.pop %v1730
    %v1735 = vrsqrt.pop %v1731
    %v1736 = vrsqrt.pop %v1732
    %v1737 = vmul.f32 %v1705, %v1733
    %v1738 = vmul.f32 %v1706, %v1734
    %v1739 = vmul.f32 %v1707, %v1735
    %v1740 = vmul.f32 %v1708, %v1736
    %vm1741 = vcmp.ge.f32.partialorder %v1737, 0.0
    %vm1742 = vcmp.ge.f32.partialorder %v1738, 0.0
    %vm1743 = vcmp.ge.f32.partialorder %v1739, 0.0
    %vm1744 = vcmp.ge.f32.partialorder %v1740, 0.0
    %v1745 = vmul.f32 %v1737, 0.2
    %v1746 = vmul.f32 %v1738, 0.2
    %v1747 = vmul.f32 %v1739, 0.2
    %v1748 = vmul.f32 %v1740, 0.2
    %v1749 = vsel %vm1741, %v1737, %v1745
    %v1750 = vsel %vm1742, %v1738, %v1746
    %v1751 = vsel %vm1743, %v1739, %v1747
    %v1752 = vsel %vm1744, %v1740, %v1748
    %1757 = vrot.lane.b32.xlu0 %v1749, 3
    %v1758 = vpop.permute.xlu0 %1757
    %1759 = vrot.lane.b32.xlu0 %v1750, 3
    %v1760 = vpop.permute.xlu0 %1759
    %1761 = vrot.lane.b32.xlu0 %v1751, 3
    %v1762 = vpop.permute.xlu0 %1761
    %1763 = vrot.lane.b32.xlu0 %v1752, 3
    %v1764 = vpop.permute.xlu0 %1763
    %v1769 = vadd.f32 %v605, %v1758
    %v1770 = vadd.f32 %v606, %v1760
    %v1771 = vadd.f32 %v607, %v1762
    %v1772 = vadd.f32 %v608, %v1764
    %1777 = vrot.lane.b32.xlu0 %v1671, 72
    %v1778 = vpop.permute.xlu0 %1777
    %1779 = vrot.lane.b32.xlu0 %v1675, 72
    %v1780 = vpop.permute.xlu0 %1779
    %1781 = vrot.lane.b32.xlu0 %v1681, 72
    %v1782 = vpop.permute.xlu0 %1781
    %1783 = vrot.lane.b32.xlu0 %v1685, 72
    %v1784 = vpop.permute.xlu0 %1783
    %v1789 = vsel %vm1050, %v1778, 0.0
    %1790 = vadd.xlane.f32.xlu0 %v1789
    %v1791 = vpop.xlane.xlu0 %1790
    %v1792 = vsel %vm1050, %v1780, 0.0
    %1793 = vadd.xlane.f32.xlu0 %v1792
    %v1794 = vpop.xlane.xlu0 %1793
    %v1795 = vsel %vm1050, %v1782, 0.0
    %1796 = vadd.xlane.f32.xlu0 %v1795
    %v1797 = vpop.xlane.xlu0 %1796
    %v1798 = vsel %vm1050, %v1784, 0.0
    %1799 = vadd.xlane.f32.xlu0 %v1798
    %v1800 = vpop.xlane.xlu0 %1799
    %v1801 = vmul.f32 %v1791, %v1197
    %v1802 = vmul.f32 %v1794, %v1197
    %v1803 = vmul.f32 %v1797, %v1197
    %v1804 = vmul.f32 %v1800, %v1197
    %v1805 = vsub.f32 %v1671, %v1801
    %v1806 = vsub.f32 %v1675, %v1802
    %v1807 = vsub.f32 %v1681, %v1803
    %v1808 = vsub.f32 %v1685, %v1804
    %v1809 = vmul.f32 %v1805, %v1805
    %v1810 = vmul.f32 %v1806, %v1806
    %v1811 = vmul.f32 %v1807, %v1807
    %v1812 = vmul.f32 %v1808, %v1808
    %1817 = vrot.lane.b32.xlu0 %v1809, 72
    %v1818 = vpop.permute.xlu0 %1817
    %1819 = vrot.lane.b32.xlu0 %v1810, 72
    %v1820 = vpop.permute.xlu0 %1819
    %1821 = vrot.lane.b32.xlu0 %v1811, 72
    %v1822 = vpop.permute.xlu0 %1821
    %1823 = vrot.lane.b32.xlu0 %v1812, 72
    %v1824 = vpop.permute.xlu0 %1823
    %v1829 = vsel %vm1050, %v1818, 0.0
    %1830 = vadd.xlane.f32.xlu0 %v1829
    %v1831 = vpop.xlane.xlu0 %1830
    %v1832 = vsel %vm1050, %v1820, 0.0
    %1833 = vadd.xlane.f32.xlu0 %v1832
    %v1834 = vpop.xlane.xlu0 %1833
    %v1835 = vsel %vm1050, %v1822, 0.0
    %1836 = vadd.xlane.f32.xlu0 %v1835
    %v1837 = vpop.xlane.xlu0 %1836
    %v1838 = vsel %vm1050, %v1824, 0.0
    %1839 = vadd.xlane.f32.xlu0 %v1838
    %v1840 = vpop.xlane.xlu0 %1839
    %v1841 = vmul.f32 %v1831, %v1197
    %v1842 = vmul.f32 %v1834, %v1197
    %v1843 = vmul.f32 %v1837, %v1197
    %v1844 = vmul.f32 %v1840, %v1197
    %v1845 = vadd.f32 %v1841, 1e-05
    %v1846 = vadd.f32 %v1842, 1e-05
    %v1847 = vadd.f32 %v1843, 1e-05
    %v1848 = vadd.f32 %v1844, 1e-05
    %v1849 = vrsqrt.pop %v1845
    %v1850 = vrsqrt.pop %v1846
    %v1851 = vrsqrt.pop %v1847
    %v1852 = vrsqrt.pop %v1848
    %v1853 = vmul.f32 %v1805, %v1849
    %v1854 = vmul.f32 %v1806, %v1850
    %v1855 = vmul.f32 %v1807, %v1851
    %v1856 = vmul.f32 %v1808, %v1852
    %vm1857 = vcmp.ge.f32.partialorder %v1853, 0.0
    %vm1858 = vcmp.ge.f32.partialorder %v1854, 0.0
    %vm1859 = vcmp.ge.f32.partialorder %v1855, 0.0
    %vm1860 = vcmp.ge.f32.partialorder %v1856, 0.0
    %v1861 = vmul.f32 %v1853, 0.2
    %v1862 = vmul.f32 %v1854, 0.2
    %v1863 = vmul.f32 %v1855, 0.2
    %v1864 = vmul.f32 %v1856, 0.2
    %v1865 = vsel %vm1857, %v1853, %v1861
    %v1866 = vsel %vm1858, %v1854, %v1862
    %v1867 = vsel %vm1859, %v1855, %v1863
    %v1868 = vsel %vm1860, %v1856, %v1864
    %1873 = vrot.lane.b32.xlu0 %v1865, 9
    %v1874 = vpop.permute.xlu0 %1873
    %1875 = vrot.lane.b32.xlu0 %v1866, 9
    %v1876 = vpop.permute.xlu0 %1875
    %1877 = vrot.lane.b32.xlu0 %v1867, 9
    %v1878 = vpop.permute.xlu0 %1877
    %1879 = vrot.lane.b32.xlu0 %v1868, 9
    %v1880 = vpop.permute.xlu0 %1879
    %v1885 = vadd.f32 %v701, %v1874
    %v1886 = vadd.f32 %v702, %v1876
    %v1887 = vadd.f32 %v703, %v1878
    %v1888 = vadd.f32 %v704, %v1880
    %1893 = vrot.lane.b32.xlu0 %v1671, 16
    %v1894 = vpop.permute.xlu0 %1893
    %1895 = vrot.lane.b32.xlu0 %v1673, 16
    %v1896 = vpop.permute.xlu0 %1895
    %1897 = vrot.lane.b32.xlu0 %v1675, 16
    %v1898 = vpop.permute.xlu0 %1897
    %1899 = vrot.lane.b32.xlu0 %v1677, 16
    %v1900 = vpop.permute.xlu0 %1899
    %1901 = vrot.lane.b32.xlu0 %v1681, 16
    %v1902 = vpop.permute.xlu0 %1901
    %1903 = vrot.lane.b32.xlu0 %v1683, 16
    %v1904 = vpop.permute.xlu0 %1903
    %1905 = vrot.lane.b32.xlu0 %v1685, 16
    %v1906 = vpop.permute.xlu0 %1905
    %1907 = vrot.lane.b32.xlu0 %v1687, 16
    %v1908 = vpop.permute.xlu0 %1907
    %v1909 = vsel %vm141, %v1894, %v1896
    %v1910 = vsel %vm141, %v1898, %v1900
    %v1911 = vsel %vm141, %v1902, %v1904
    %v1912 = vsel %vm141, %v1906, %v1908
    %v1917 = vsel %vm1050, %v1909, 0.0
    %1918 = vadd.xlane.f32.xlu0 %v1917
    %v1919 = vpop.xlane.xlu0 %1918
    %v1920 = vsel %vm1050, %v1910, 0.0
    %1921 = vadd.xlane.f32.xlu0 %v1920
    %v1922 = vpop.xlane.xlu0 %1921
    %v1923 = vsel %vm1050, %v1911, 0.0
    %1924 = vadd.xlane.f32.xlu0 %v1923
    %v1925 = vpop.xlane.xlu0 %1924
    %v1926 = vsel %vm1050, %v1912, 0.0
    %1927 = vadd.xlane.f32.xlu0 %v1926
    %v1928 = vpop.xlane.xlu0 %1927
    %v1929 = vmul.f32 %v1919, %v1197
    %v1930 = vmul.f32 %v1922, %v1197
    %v1931 = vmul.f32 %v1925, %v1197
    %v1932 = vmul.f32 %v1928, %v1197
    %v1933 = vsub.f32 %v1671, %v1929
    %v1934 = vsub.f32 %v1673, %v1929
    %v1935 = vsub.f32 %v1675, %v1930
    %v1936 = vsub.f32 %v1677, %v1930
    %v1937 = vsub.f32 %v1681, %v1931
    %v1938 = vsub.f32 %v1683, %v1931
    %v1939 = vsub.f32 %v1685, %v1932
    %v1940 = vsub.f32 %v1687, %v1932
    %v1941 = vmul.f32 %v1933, %v1933
    %v1942 = vmul.f32 %v1934, %v1934
    %v1943 = vmul.f32 %v1935, %v1935
    %v1944 = vmul.f32 %v1936, %v1936
    %v1945 = vmul.f32 %v1937, %v1937
    %v1946 = vmul.f32 %v1938, %v1938
    %v1947 = vmul.f32 %v1939, %v1939
    %v1948 = vmul.f32 %v1940, %v1940
    %1957 = vrot.lane.b32.xlu0 %v1941, 16
    %v1958 = vpop.permute.xlu0 %1957
    %1959 = vrot.lane.b32.xlu0 %v1942, 16
    %v1960 = vpop.permute.xlu0 %1959
    %1961 = vrot.lane.b32.xlu0 %v1943, 16
    %v1962 = vpop.permute.xlu0 %1961
    %1963 = vrot.lane.b32.xlu0 %v1944, 16
    %v1964 = vpop.permute.xlu0 %1963
    %1965 = vrot.lane.b32.xlu0 %v1945, 16
    %v1966 = vpop.permute.xlu0 %1965
    %1967 = vrot.lane.b32.xlu0 %v1946, 16
    %v1968 = vpop.permute.xlu0 %1967
    %1969 = vrot.lane.b32.xlu0 %v1947, 16
    %v1970 = vpop.permute.xlu0 %1969
    %1971 = vrot.lane.b32.xlu0 %v1948, 16
    %v1972 = vpop.permute.xlu0 %1971
    %v1973 = vsel %vm141, %v1958, %v1960
    %v1974 = vsel %vm141, %v1962, %v1964
    %v1975 = vsel %vm141, %v1966, %v1968
    %v1976 = vsel %vm141, %v1970, %v1972
    %v1981 = vsel %vm1050, %v1973, 0.0
    %1982 = vadd.xlane.f32.xlu0 %v1981
    %v1983 = vpop.xlane.xlu0 %1982
    %v1984 = vsel %vm1050, %v1974, 0.0
    %1985 = vadd.xlane.f32.xlu0 %v1984
    %v1986 = vpop.xlane.xlu0 %1985
    %v1987 = vsel %vm1050, %v1975, 0.0
    %1988 = vadd.xlane.f32.xlu0 %v1987
    %v1989 = vpop.xlane.xlu0 %1988
    %v1990 = vsel %vm1050, %v1976, 0.0
    %1991 = vadd.xlane.f32.xlu0 %v1990
    %v1992 = vpop.xlane.xlu0 %1991
    %v1993 = vmul.f32 %v1983, %v1197
    %v1994 = vmul.f32 %v1986, %v1197
    %v1995 = vmul.f32 %v1989, %v1197
    %v1996 = vmul.f32 %v1992, %v1197
    %v1997 = vadd.f32 %v1993, 1e-05
    %v1998 = vadd.f32 %v1994, 1e-05
    %v1999 = vadd.f32 %v1995, 1e-05
    %v2000 = vadd.f32 %v1996, 1e-05
    %v2001 = vrsqrt.pop %v1997
    %v2002 = vrsqrt.pop %v1998
    %v2003 = vrsqrt.pop %v1999
    %v2004 = vrsqrt.pop %v2000
    %v2005 = vmul.f32 %v1933, %v2001
    %v2006 = vmul.f32 %v1934, %v2001
    %v2007 = vmul.f32 %v1935, %v2002
    %v2008 = vmul.f32 %v1936, %v2002
    %v2009 = vmul.f32 %v1937, %v2003
    %v2010 = vmul.f32 %v1938, %v2003
    %v2011 = vmul.f32 %v1939, %v2004
    %v2012 = vmul.f32 %v1940, %v2004
    %vm2013 = vcmp.ge.f32.partialorder %v2005, 0.0
    %vm2014 = vcmp.ge.f32.partialorder %v2006, 0.0
    %vm2015 = vcmp.ge.f32.partialorder %v2007, 0.0
    %vm2016 = vcmp.ge.f32.partialorder %v2008, 0.0
    %vm2017 = vcmp.ge.f32.partialorder %v2009, 0.0
    %vm2018 = vcmp.ge.f32.partialorder %v2010, 0.0
    %vm2019 = vcmp.ge.f32.partialorder %v2011, 0.0
    %vm2020 = vcmp.ge.f32.partialorder %v2012, 0.0
    %v2021 = vmul.f32 %v2005, 0.2
    %v2022 = vmul.f32 %v2006, 0.2
    %v2023 = vmul.f32 %v2007, 0.2
    %v2024 = vmul.f32 %v2008, 0.2
    %v2025 = vmul.f32 %v2009, 0.2
    %v2026 = vmul.f32 %v2010, 0.2
    %v2027 = vmul.f32 %v2011, 0.2
    %v2028 = vmul.f32 %v2012, 0.2
    %v2029 = vsel %vm2013, %v2005, %v2021
    %v2030 = vsel %vm2014, %v2006, %v2022
    %v2031 = vsel %vm2015, %v2007, %v2023
    %v2032 = vsel %vm2016, %v2008, %v2024
    %v2033 = vsel %vm2017, %v2009, %v2025
    %v2034 = vsel %vm2018, %v2010, %v2026
    %v2035 = vsel %vm2019, %v2011, %v2027
    %v2036 = vsel %vm2020, %v2012, %v2028
    %2045 = vrot.lane.b32.xlu0 %v2029, 15
    %v2046 = vpop.permute.xlu0 %2045
    %2047 = vrot.lane.b32.xlu0 %v2030, 15
    %v2048 = vpop.permute.xlu0 %2047
    %2049 = vrot.lane.b32.xlu0 %v2031, 15
    %v2050 = vpop.permute.xlu0 %2049
    %2051 = vrot.lane.b32.xlu0 %v2032, 15
    %v2052 = vpop.permute.xlu0 %2051
    %2053 = vrot.lane.b32.xlu0 %v2033, 15
    %v2054 = vpop.permute.xlu0 %2053
    %2055 = vrot.lane.b32.xlu0 %v2034, 15
    %v2056 = vpop.permute.xlu0 %2055
    %2057 = vrot.lane.b32.xlu0 %v2035, 15
    %v2058 = vpop.permute.xlu0 %2057
    %2059 = vrot.lane.b32.xlu0 %v2036, 15
    %v2060 = vpop.permute.xlu0 %2059
    %vm2061 = vcmask 121856
    %v2062 = vsel %vm2061, %v2046, %v2048
    %v2063 = vsel %vm2061, %v2050, %v2052
    %v2064 = vsel %vm2061, %v2054, %v2056
    %v2065 = vsel %vm2061, %v2058, %v2060
    %v2074 = vadd.f32 %v846, %v2046
    %v2075 = vadd.f32 %v847, %v2062
    %v2076 = vadd.f32 %v848, %v2050
    %v2077 = vadd.f32 %v849, %v2063
    %v2078 = vadd.f32 %v850, %v2054
    %v2079 = vadd.f32 %v851, %v2064
    %v2080 = vadd.f32 %v852, %v2058
    %v2081 = vadd.f32 %v853, %v2065
    %2082 = vrot.lane.b32.xlu0 %v1673, 88
    %v2083 = vpop.permute.xlu0 %2082
    %2084 = vrot.lane.b32.xlu0 %v1677, 88
    %v2085 = vpop.permute.xlu0 %2084
    %2086 = vrot.lane.b32.xlu0 %v1683, 88
    %v2087 = vpop.permute.xlu0 %2086
    %2088 = vrot.lane.b32.xlu0 %v1687, 88
    %v2089 = vpop.permute.xlu0 %2088
    %v2094 = vsel %vm1050, %v2083, 0.0
    %2095 = vadd.xlane.f32.xlu0 %v2094
    %v2096 = vpop.xlane.xlu0 %2095
    %v2097 = vsel %vm1050, %v2085, 0.0
    %2098 = vadd.xlane.f32.xlu0 %v2097
    %v2099 = vpop.xlane.xlu0 %2098
    %v2100 = vsel %vm1050, %v2087, 0.0
    %2101 = vadd.xlane.f32.xlu0 %v2100
    %v2102 = vpop.xlane.xlu0 %2101
    %v2103 = vsel %vm1050, %v2089, 0.0
    %2104 = vadd.xlane.f32.xlu0 %v2103
    %v2105 = vpop.xlane.xlu0 %2104
    %v2106 = vmul.f32 %v2096, %v1197
    %v2107 = vmul.f32 %v2099, %v1197
    %v2108 = vmul.f32 %v2102, %v1197
    %v2109 = vmul.f32 %v2105, %v1197
    %v2110 = vsub.f32 %v1673, %v2106
    %v2111 = vsub.f32 %v1677, %v2107
    %v2112 = vsub.f32 %v1683, %v2108
    %v2113 = vsub.f32 %v1687, %v2109
    %v2114 = vmul.f32 %v2110, %v2110
    %v2115 = vmul.f32 %v2111, %v2111
    %v2116 = vmul.f32 %v2112, %v2112
    %v2117 = vmul.f32 %v2113, %v2113
    %2122 = vrot.lane.b32.xlu0 %v2114, 88
    %v2123 = vpop.permute.xlu0 %2122
    %2124 = vrot.lane.b32.xlu0 %v2115, 88
    %v2125 = vpop.permute.xlu0 %2124
    %2126 = vrot.lane.b32.xlu0 %v2116, 88
    %v2127 = vpop.permute.xlu0 %2126
    %2128 = vrot.lane.b32.xlu0 %v2117, 88
    %v2129 = vpop.permute.xlu0 %2128
    %v2134 = vsel %vm1050, %v2123, 0.0
    %2135 = vadd.xlane.f32.xlu0 %v2134
    %v2136 = vpop.xlane.xlu0 %2135
    %v2137 = vsel %vm1050, %v2125, 0.0
    %2138 = vadd.xlane.f32.xlu0 %v2137
    %v2139 = vpop.xlane.xlu0 %2138
    %v2140 = vsel %vm1050, %v2127, 0.0
    %2141 = vadd.xlane.f32.xlu0 %v2140
    %v2142 = vpop.xlane.xlu0 %2141
    %v2143 = vsel %vm1050, %v2129, 0.0
    %2144 = vadd.xlane.f32.xlu0 %v2143
    %v2145 = vpop.xlane.xlu0 %2144
    %v2146 = vmul.f32 %v2136, %v1197
    %v2147 = vmul.f32 %v2139, %v1197
    %v2148 = vmul.f32 %v2142, %v1197
    %v2149 = vmul.f32 %v2145, %v1197
    %v2150 = vadd.f32 %v2146, 1e-05
    %v2151 = vadd.f32 %v2147, 1e-05
    %v2152 = vadd.f32 %v2148, 1e-05
    %v2153 = vadd.f32 %v2149, 1e-05
    %v2154 = vrsqrt.pop %v2150
    %v2155 = vrsqrt.pop %v2151
    %v2156 = vrsqrt.pop %v2152
    %v2157 = vrsqrt.pop %v2153
    %v2158 = vmul.f32 %v2110, %v2154
    %v2159 = vmul.f32 %v2111, %v2155
    %v2160 = vmul.f32 %v2112, %v2156
    %v2161 = vmul.f32 %v2113, %v2157
    %vm2162 = vcmp.ge.f32.partialorder %v2158, 0.0
    %vm2163 = vcmp.ge.f32.partialorder %v2159, 0.0
    %vm2164 = vcmp.ge.f32.partialorder %v2160, 0.0
    %vm2165 = vcmp.ge.f32.partialorder %v2161, 0.0
    %v2166 = vmul.f32 %v2158, 0.2
    %v2167 = vmul.f32 %v2159, 0.2
    %v2168 = vmul.f32 %v2160, 0.2
    %v2169 = vmul.f32 %v2161, 0.2
    %v2170 = vsel %vm2162, %v2158, %v2166
    %v2171 = vsel %vm2163, %v2159, %v2167
    %v2172 = vsel %vm2164, %v2160, %v2168
    %v2173 = vsel %vm2165, %v2161, %v2169
    %2178 = vrot.lane.b32.xlu0 %v2170, 21
    %v2179 = vpop.permute.xlu0 %2178
    %2180 = vrot.lane.b32.xlu0 %v2171, 21
    %v2181 = vpop.permute.xlu0 %2180
    %2182 = vrot.lane.b32.xlu0 %v2172, 21
    %v2183 = vpop.permute.xlu0 %2182
    %2184 = vrot.lane.b32.xlu0 %v2173, 21
    %v2185 = vpop.permute.xlu0 %2184
    %v2190 = vadd.f32 %v942, %v2179
    %v2191 = vadd.f32 %v943, %v2181
    %v2192 = vadd.f32 %v944, %v2183
    %v2193 = vadd.f32 %v945, %v2185
    %v2194 = vpack.c.bf16 %v1770, %v1769
    %v2195 = vpack.c.bf16 %v1772, %v1771
    %v2196 = vpack.c.bf16 %v1886, %v1885
    %v2197 = vpack.c.bf16 %v1888, %v1887
    %v2198 = vpack.c.bf16 %v2076, %v2074
    %v2199 = vpack.c.bf16 %v2077, %v2075
    %v2200 = vpack.c.bf16 %v2080, %v2078
    %v2201 = vpack.c.bf16 %v2081, %v2079
    %v2202 = vpack.c.bf16 %v2191, %v2190
    %v2203 = vpack.c.bf16 %v2193, %v2192
    %2206 = vrot.lane.b32.xlu0 %v2194, 119
    %v2207 = vpop.permute.xlu0 %2206
    %2208 = vrot.lane.b32.xlu0 %v2195, 119
    %v2209 = vpop.permute.xlu0 %2208
    %2210 = vrot.lane.b32.xlu0 %v2194, 110
    %v2211 = vpop.permute.xlu0 %2210
    %2212 = vrot.lane.b32.xlu0 %v2195, 110
    %v2213 = vpop.permute.xlu0 %2212
    %2216 = vrot.lane.b32.xlu0 %v2196, 119
    %v2217 = vpop.permute.xlu0 %2216
    %2218 = vrot.lane.b32.xlu0 %v2197, 119
    %v2219 = vpop.permute.xlu0 %2218
    %2220 = vrot.lane.b32.xlu0 %v2196, 110
    %v2221 = vpop.permute.xlu0 %2220
    %2222 = vrot.lane.b32.xlu0 %v2197, 110
    %v2223 = vpop.permute.xlu0 %2222
    %2226 = vrot.lane.b32.xlu0 %v2199, 119
    %v2227 = vpop.permute.xlu0 %2226
    %2228 = vrot.lane.b32.xlu0 %v2201, 119
    %v2229 = vpop.permute.xlu0 %2228
    %2230 = vrot.lane.b32.xlu0 %v2199, 110
    %v2231 = vpop.permute.xlu0 %2230
    %2232 = vrot.lane.b32.xlu0 %v2201, 110
    %v2233 = vpop.permute.xlu0 %2232
    %2236 = vrot.lane.b32.xlu0 %v2202, 119
    %v2237 = vpop.permute.xlu0 %2236
    %2238 = vrot.lane.b32.xlu0 %v2203, 119
    %v2239 = vpop.permute.xlu0 %2238
    %2240 = vrot.lane.b32.xlu0 %v2202, 110
    %v2241 = vpop.permute.xlu0 %2240
    %2242 = vrot.lane.b32.xlu0 %v2203, 110
    %v2243 = vpop.permute.xlu0 %2242
    %2244 = vrot.lane.b32.xlu0 %v2194, 125
    %v2245 = vpop.permute.xlu0 %2244
    %2246 = vrot.lane.b32.xlu0 %v2195, 125
    %v2247 = vpop.permute.xlu0 %2246
    %2248 = vrot.lane.b32.xlu0 %v2207, 125
    %v2249 = vpop.permute.xlu0 %2248
    %2250 = vrot.lane.b32.xlu0 %v2209, 125
    %v2251 = vpop.permute.xlu0 %2250
    %2252 = vrot.lane.b32.xlu0 %v2211, 125
    %v2253 = vpop.permute.xlu0 %2252
    %2254 = vrot.lane.b32.xlu0 %v2213, 125
    %v2255 = vpop.permute.xlu0 %2254
    %2256 = vrot.lane.b32.xlu0 %v2196, 101
    %v2257 = vpop.permute.xlu0 %2256
    %2258 = vrot.lane.b32.xlu0 %v2197, 101
    %v2259 = vpop.permute.xlu0 %2258
    %2260 = vrot.lane.b32.xlu0 %v2217, 101
    %v2261 = vpop.permute.xlu0 %2260
    %2262 = vrot.lane.b32.xlu0 %v2219, 101
    %v2263 = vpop.permute.xlu0 %2262
    %2264 = vrot.lane.b32.xlu0 %v2221, 101
    %v2265 = vpop.permute.xlu0 %2264
    %2266 = vrot.lane.b32.xlu0 %v2223, 101
    %v2267 = vpop.permute.xlu0 %2266
    %2270 = vrot.lane.b32.xlu0 %v2198, 77
    %v2271 = vpop.permute.xlu0 %2270
    %2272 = vrot.lane.b32.xlu0 %v2199, 77
    %v2273 = vpop.permute.xlu0 %2272
    %2274 = vrot.lane.b32.xlu0 %v2200, 77
    %v2275 = vpop.permute.xlu0 %2274
    %2276 = vrot.lane.b32.xlu0 %v2201, 77
    %v2277 = vpop.permute.xlu0 %2276
    %2278 = vrot.lane.b32.xlu0 %v2227, 77
    %v2279 = vpop.permute.xlu0 %2278
    %2280 = vrot.lane.b32.xlu0 %v2229, 77
    %v2281 = vpop.permute.xlu0 %2280
    %2282 = vrot.lane.b32.xlu0 %v2231, 77
    %v2283 = vpop.permute.xlu0 %2282
    %2284 = vrot.lane.b32.xlu0 %v2233, 77
    %v2285 = vpop.permute.xlu0 %2284
    %vm2286 = vcmask 629760
    %v2287 = vsel %vm2286, %v2271, %v2273
    %v2288 = vsel %vm2286, %v2275, %v2277
    %2289 = vrot.lane.b32.xlu0 %v2202, 53
    %v2290 = vpop.permute.xlu0 %2289
    %2291 = vrot.lane.b32.xlu0 %v2203, 53
    %v2292 = vpop.permute.xlu0 %2291
    %2293 = vrot.lane.b32.xlu0 %v2237, 53
    %v2294 = vpop.permute.xlu0 %2293
    %2295 = vrot.lane.b32.xlu0 %v2239, 53
    %v2296 = vpop.permute.xlu0 %2295
    %2297 = vrot.lane.b32.xlu0 %v2241, 53
    %v2298 = vpop.permute.xlu0 %2297
    %2299 = vrot.lane.b32.xlu0 %v2243, 53
    %v2300 = vpop.permute.xlu0 %2299
    %vm2307 = vcmask 310272
    %v2310 = vsel %vm2307, %v2245, %v2257
    %v2313 = vsel %vm2307, %v2247, %v2259
    %v2316 = vsel %vm2307, %v2249, %v2261
    %v2319 = vsel %vm2307, %v2251, %v2263
    %v2322 = vsel %vm2307, %v2253, %v2265
    %v2325 = vsel %vm2307, %v2255, %v2267
    %vm2326 = vcmask 621568
    %v2328 = vsel %vm2326, %v2310, %v2287
    %v2330 = vsel %vm2326, %v2313, %v2288
    %v2332 = vsel %vm2326, %v2316, %v2279
    %v2334 = vsel %vm2326, %v2319, %v2281
    %v2336 = vsel %vm2326, %v2322, %v2283
    %v2338 = vsel %vm2326, %v2325, %v2285
    %vm2339 = vcmask 932864
    %v2341 = vsel %vm2339, %v2328, %v2290
    %v2344 = vsel %vm2339, %v2330, %v2292
    %v2347 = vsel %vm2339, %v2332, %v2294
    %v2350 = vsel %vm2339, %v2334, %v2296
    %v2353 = vsel %vm2339, %v2336, %v2298
    %v2356 = vsel %vm2339, %v2338, %v2300
    %v2358 = vld [vmem:[%s4] sm:$0xf]
    %v2359 = vld [vmem:[%s4 + $0x4] sm:$0xf]
    %v2360 = vld [vmem:[%s4 + $0x8] sm:$0xf]
    %v2361 = vld [vmem:[%s4 + $0xc] sm:$0xf]
    %v2366 = vunpack.c.l.b16 %v2358
    %v2367 = vunpack.c.l.b16 %v2359
    %v2368 = vunpack.c.l.b16 %v2360
    %v2369 = vunpack.c.l.b16 %v2361
    %v2370 = vpack.c.b16 %v2367, %v2366
    %v2371 = vpack.c.b16 %v2369, %v2368
    %v2373 = vsel %vm1125, %v2370, 0
    %v2376 = vsel %vm1125, %v2371, 0
    %2378 = vmatprep.subr.bf16.mxu0 %v2290
    %2379 = vmatpush1.bf16.msra.mxu0 %v2341
    %2380 = vmatprep.subr.bf16.mxu0 %v2292
    %2381 = vmatpush1.bf16.msra.mxu0 %v2344
    %2382 = vmatprep.subr.bf16.mxu0 %v2294
    %2383 = vmatpush1.bf16.msra.mxu0 %v2347
    %2384 = vmatprep.subr.bf16.mxu0 %v2296
    %2385 = vmatpush1.bf16.msra.mxu0 %v2350
    %2386 = vmatprep.subr.bf16.mxu0 %v2298
    %2387 = vmatpush1.bf16.msra.mxu0 %v2353
    %2388 = vmatprep.subr.bf16.mxu0 %v2300
    %2389 = vmatpush1.bf16.msra.mxu0 %v2356
    %2390 = vmatprep.subr.bf16.mxu0 0
    %2391 = vmatpush1.bf16.msra.mxu0 0
    %2392 = vmatprep.subr.bf16.mxu0 0
    %2393 = vmatpush1.bf16.msra.mxu0 0
    %2394 = vmatprep.subr.bf16.mxu0 0
    %2395 = vmatpush1.bf16.msra.mxu0 0
    %2396 = vmatprep.subr.bf16.mxu0 0
    %2397 = vmatpush1.bf16.msra.mxu0 0
    %2398 = vmatprep.subr.bf16.mxu0 0
    %2399 = vmatpush1.bf16.msra.mxu0 0
    %2400 = vmatprep.subr.bf16.mxu0 0
    %2401 = vmatpush1.bf16.msra.mxu0 0
    %2402 = vmatprep.subr.bf16.mxu0 0
    %2403 = vmatpush1.bf16.msra.mxu0 0
    %2404 = vmatprep.subr.bf16.mxu0 0
    %2405 = vmatpush1.bf16.msra.mxu0 0
    %2406 = vmatprep.subr.bf16.mxu0 0
    %2407 = vmatpush1.bf16.msra.mxu0 0
    %2408 = vmatprep.subr.bf16.mxu0 0
    %2409 = vmatpush1.bf16.msra.mxu0 0
    %2410 = vmatprep.mubr.bf16.mxu0 0
    %2411 = vmatmul.mubr.bf16.gmra.mrb[0].mxu0 %v2373
    %v2412 = vpop.f32.mrb[0].mxu0
    %v2413 = vadd.f32 0.0, %v2412
    %v2414 = vpop.f32.mrb[0].mxu0
    %v2415 = vadd.f32 0.0, %v2414
    %v2416 = vpop.f32.mrb[0].mxu0
    %v2417 = vadd.f32 0.0, %v2416
    %v2418 = vpop.f32.mrb[0].mxu0
    %v2419 = vadd.f32 0.0, %v2418
    %2420 = vmatprep.mubr.bf16.mxu0 0
    %2421 = vmatmul.mubr.bf16.gmra.mrb[0].mxu0 %v2376
    %v2422 = vpop.f32.mrb[0].mxu0
    %v2423 = vadd.f32 0.0, %v2422
    %v2424 = vpop.f32.mrb[0].mxu0
    %v2425 = vadd.f32 0.0, %v2424
    %v2426 = vpop.f32.mrb[0].mxu0
    %v2427 = vadd.f32 0.0, %v2426
    %v2428 = vpop.f32.mrb[0].mxu0
    %v2429 = vadd.f32 0.0, %v2428
    %2430 = vdwg.mxu0
    %v2431 = vsel %vm2307, %v2413, 0.0
    %2432 = vadd.xlane.f32.xlu0 %v2431
    %v2433 = vpop.xlane.xlu0 %2432
    %v2434 = vsel %vm2307, %v2417, 0.0
    %2435 = vadd.xlane.f32.xlu0 %v2434
    %v2436 = vpop.xlane.xlu0 %2435
    %v2437 = vsel %vm2307, %v2423, 0.0
    %2438 = vadd.xlane.f32.xlu0 %v2437
    %v2439 = vpop.xlane.xlu0 %2438
    %v2440 = vsel %vm2307, %v2427, 0.0
    %2441 = vadd.xlane.f32.xlu0 %v2440
    %v2442 = vpop.xlane.xlu0 %2441
    %v2443 = vrcp.pop 38.0
    %v2444 = vmul.f32 %v2433, %v2443
    %v2445 = vmul.f32 %v2436, %v2443
    %v2446 = vmul.f32 %v2439, %v2443
    %v2447 = vmul.f32 %v2442, %v2443
    %v2448 = vsub.f32 %v2413, %v2444
    %v2449 = vsub.f32 %v2417, %v2445
    %v2450 = vsub.f32 %v2423, %v2446
    %v2451 = vsub.f32 %v2427, %v2447
    %v2452 = vmul.f32 %v2448, %v2448
    %v2453 = vmul.f32 %v2449, %v2449
    %v2454 = vmul.f32 %v2450, %v2450
    %v2455 = vmul.f32 %v2451, %v2451
    %v2456 = vsel %vm2307, %v2452, 0.0
    %2457 = vadd.xlane.f32.xlu0 %v2456
    %v2458 = vpop.xlane.xlu0 %2457
    %v2459 = vsel %vm2307, %v2453, 0.0
    %2460 = vadd.xlane.f32.xlu0 %v2459
    %v2461 = vpop.xlane.xlu0 %2460
    %v2462 = vsel %vm2307, %v2454, 0.0
    %2463 = vadd.xlane.f32.xlu0 %v2462
    %v2464 = vpop.xlane.xlu0 %2463
    %v2465 = vsel %vm2307, %v2455, 0.0
    %2466 = vadd.xlane.f32.xlu0 %v2465
    %v2467 = vpop.xlane.xlu0 %2466
    %v2468 = vmul.f32 %v2458, %v2443
    %v2469 = vmul.f32 %v2461, %v2443
    %v2470 = vmul.f32 %v2464, %v2443
    %v2471 = vmul.f32 %v2467, %v2443
    %v2472 = vadd.f32 %v2468, 1e-05
    %v2473 = vadd.f32 %v2469, 1e-05
    %v2474 = vadd.f32 %v2470, 1e-05
    %v2475 = vadd.f32 %v2471, 1e-05
    %v2476 = vrsqrt.pop %v2472
    %v2477 = vrsqrt.pop %v2473
    %v2478 = vrsqrt.pop %v2474
    %v2479 = vrsqrt.pop %v2475
    %v2480 = vmul.f32 %v2448, %v2476
    %v2481 = vmul.f32 %v2449, %v2477
    %v2482 = vmul.f32 %v2450, %v2478
    %v2483 = vmul.f32 %v2451, %v2479
    %vm2484 = vcmp.ge.f32.partialorder %v2480, 0.0
    %vm2485 = vcmp.ge.f32.partialorder %v2481, 0.0
    %vm2486 = vcmp.ge.f32.partialorder %v2482, 0.0
    %vm2487 = vcmp.ge.f32.partialorder %v2483, 0.0
    %v2488 = vmul.f32 %v2480, 0.2
    %v2489 = vmul.f32 %v2481, 0.2
    %v2490 = vmul.f32 %v2482, 0.2
    %v2491 = vmul.f32 %v2483, 0.2
    %v2492 = vsel %vm2484, %v2480, %v2488
    %v2493 = vsel %vm2485, %v2481, %v2489
    %v2494 = vsel %vm2486, %v2482, %v2490
    %v2495 = vsel %vm2487, %v2483, %v2491
    %2500 = vrot.lane.b32.xlu0 %v2413, 90
    %v2501 = vpop.permute.xlu0 %2500
    %2502 = vrot.lane.b32.xlu0 %v2417, 90
    %v2503 = vpop.permute.xlu0 %2502
    %2504 = vrot.lane.b32.xlu0 %v2423, 90
    %v2505 = vpop.permute.xlu0 %2504
    %2506 = vrot.lane.b32.xlu0 %v2427, 90
    %v2507 = vpop.permute.xlu0 %2506
    %v2512 = vsel %vm2307, %v2501, 0.0
    %2513 = vadd.xlane.f32.xlu0 %v2512
    %v2514 = vpop.xlane.xlu0 %2513
    %v2515 = vsel %vm2307, %v2503, 0.0
    %2516 = vadd.xlane.f32.xlu0 %v2515
    %v2517 = vpop.xlane.xlu0 %2516
    %v2518 = vsel %vm2307, %v2505, 0.0
    %2519 = vadd.xlane.f32.xlu0 %v2518
    %v2520 = vpop.xlane.xlu0 %2519
    %v2521 = vsel %vm2307, %v2507, 0.0
    %2522 = vadd.xlane.f32.xlu0 %v2521
    %v2523 = vpop.xlane.xlu0 %2522
    %v2524 = vmul.f32 %v2514, %v2443
    %v2525 = vmul.f32 %v2517, %v2443
    %v2526 = vmul.f32 %v2520, %v2443
    %v2527 = vmul.f32 %v2523, %v2443
    %v2528 = vsub.f32 %v2413, %v2524
    %v2529 = vsub.f32 %v2417, %v2525
    %v2530 = vsub.f32 %v2423, %v2526
    %v2531 = vsub.f32 %v2427, %v2527
    %v2532 = vmul.f32 %v2528, %v2528
    %v2533 = vmul.f32 %v2529, %v2529
    %v2534 = vmul.f32 %v2530, %v2530
    %v2535 = vmul.f32 %v2531, %v2531
    %2540 = vrot.lane.b32.xlu0 %v2532, 90
    %v2541 = vpop.permute.xlu0 %2540
    %2542 = vrot.lane.b32.xlu0 %v2533, 90
    %v2543 = vpop.permute.xlu0 %2542
    %2544 = vrot.lane.b32.xlu0 %v2534, 90
    %v2545 = vpop.permute.xlu0 %2544
    %2546 = vrot.lane.b32.xlu0 %v2535, 90
    %v2547 = vpop.permute.xlu0 %2546
    %v2552 = vsel %vm2307, %v2541, 0.0
    %2553 = vadd.xlane.f32.xlu0 %v2552
    %v2554 = vpop.xlane.xlu0 %2553
    %v2555 = vsel %vm2307, %v2543, 0.0
    %2556 = vadd.xlane.f32.xlu0 %v2555
    %v2557 = vpop.xlane.xlu0 %2556
    %v2558 = vsel %vm2307, %v2545, 0.0
    %2559 = vadd.xlane.f32.xlu0 %v2558
    %v2560 = vpop.xlane.xlu0 %2559
    %v2561 = vsel %vm2307, %v2547, 0.0
    %2562 = vadd.xlane.f32.xlu0 %v2561
    %v2563 = vpop.xlane.xlu0 %2562
    %v2564 = vmul.f32 %v2554, %v2443
    %v2565 = vmul.f32 %v2557, %v2443
    %v2566 = vmul.f32 %v2560, %v2443
    %v2567 = vmul.f32 %v2563, %v2443
    %v2568 = vadd.f32 %v2564, 1e-05
    %v2569 = vadd.f32 %v2565, 1e-05
    %v2570 = vadd.f32 %v2566, 1e-05
    %v2571 = vadd.f32 %v2567, 1e-05
    %v2572 = vrsqrt.pop %v2568
    %v2573 = vrsqrt.pop %v2569
    %v2574 = vrsqrt.pop %v2570
    %v2575 = vrsqrt.pop %v2571
    %v2576 = vmul.f32 %v2528, %v2572
    %v2577 = vmul.f32 %v2529, %v2573
    %v2578 = vmul.f32 %v2530, %v2574
    %v2579 = vmul.f32 %v2531, %v2575
    %vm2580 = vcmp.ge.f32.partialorder %v2576, 0.0
    %vm2581 = vcmp.ge.f32.partialorder %v2577, 0.0
    %vm2582 = vcmp.ge.f32.partialorder %v2578, 0.0
    %vm2583 = vcmp.ge.f32.partialorder %v2579, 0.0
    %v2584 = vmul.f32 %v2576, 0.2
    %v2585 = vmul.f32 %v2577, 0.2
    %v2586 = vmul.f32 %v2578, 0.2
    %v2587 = vmul.f32 %v2579, 0.2
    %v2588 = vsel %vm2580, %v2576, %v2584
    %v2589 = vsel %vm2581, %v2577, %v2585
    %v2590 = vsel %vm2582, %v2578, %v2586
    %v2591 = vsel %vm2583, %v2579, %v2587
    %2592 = vrot.lane.b32.xlu0 %v2413, 52
    %v2593 = vpop.permute.xlu0 %2592
    %2594 = vrot.lane.b32.xlu0 %v2417, 52
    %v2595 = vpop.permute.xlu0 %2594
    %2596 = vrot.lane.b32.xlu0 %v2423, 52
    %v2597 = vpop.permute.xlu0 %2596
    %2598 = vrot.lane.b32.xlu0 %v2427, 52
    %v2599 = vpop.permute.xlu0 %2598
    %v2604 = vsel %vm2307, %v2593, 0.0
    %2605 = vadd.xlane.f32.xlu0 %v2604
    %v2606 = vpop.xlane.xlu0 %2605
    %v2607 = vsel %vm2307, %v2595, 0.0
    %2608 = vadd.xlane.f32.xlu0 %v2607
    %v2609 = vpop.xlane.xlu0 %2608
    %v2610 = vsel %vm2307, %v2597, 0.0
    %2611 = vadd.xlane.f32.xlu0 %v2610
    %v2612 = vpop.xlane.xlu0 %2611
    %v2613 = vsel %vm2307, %v2599, 0.0
    %2614 = vadd.xlane.f32.xlu0 %v2613
    %v2615 = vpop.xlane.xlu0 %2614
    %v2616 = vmul.f32 %v2606, %v2443
    %v2617 = vmul.f32 %v2609, %v2443
    %v2618 = vmul.f32 %v2612, %v2443
    %v2619 = vmul.f32 %v2615, %v2443
    %v2620 = vsub.f32 %v2413, %v2616
    %v2621 = vsub.f32 %v2417, %v2617
    %v2622 = vsub.f32 %v2423, %v2618
    %v2623 = vsub.f32 %v2427, %v2619
    %v2624 = vmul.f32 %v2620, %v2620
    %v2625 = vmul.f32 %v2621, %v2621
    %v2626 = vmul.f32 %v2622, %v2622
    %v2627 = vmul.f32 %v2623, %v2623
    %2632 = vrot.lane.b32.xlu0 %v2624, 52
    %v2633 = vpop.permute.xlu0 %2632
    %2634 = vrot.lane.b32.xlu0 %v2625, 52
    %v2635 = vpop.permute.xlu0 %2634
    %2636 = vrot.lane.b32.xlu0 %v2626, 52
    %v2637 = vpop.permute.xlu0 %2636
    %2638 = vrot.lane.b32.xlu0 %v2627, 52
    %v2639 = vpop.permute.xlu0 %2638
    %v2644 = vsel %vm2307, %v2633, 0.0
    %2645 = vadd.xlane.f32.xlu0 %v2644
    %v2646 = vpop.xlane.xlu0 %2645
    %v2647 = vsel %vm2307, %v2635, 0.0
    %2648 = vadd.xlane.f32.xlu0 %v2647
    %v2649 = vpop.xlane.xlu0 %2648
    %v2650 = vsel %vm2307, %v2637, 0.0
    %2651 = vadd.xlane.f32.xlu0 %v2650
    %v2652 = vpop.xlane.xlu0 %2651
    %v2653 = vsel %vm2307, %v2639, 0.0
    %2654 = vadd.xlane.f32.xlu0 %v2653
    %v2655 = vpop.xlane.xlu0 %2654
    %v2656 = vmul.f32 %v2646, %v2443
    %v2657 = vmul.f32 %v2649, %v2443
    %v2658 = vmul.f32 %v2652, %v2443
    %v2659 = vmul.f32 %v2655, %v2443
    %v2660 = vadd.f32 %v2656, 1e-05
    %v2661 = vadd.f32 %v2657, 1e-05
    %v2662 = vadd.f32 %v2658, 1e-05
    %v2663 = vadd.f32 %v2659, 1e-05
    %v2664 = vrsqrt.pop %v2660
    %v2665 = vrsqrt.pop %v2661
    %v2666 = vrsqrt.pop %v2662
    %v2667 = vrsqrt.pop %v2663
    %v2668 = vmul.f32 %v2620, %v2664
    %v2669 = vmul.f32 %v2621, %v2665
    %v2670 = vmul.f32 %v2622, %v2666
    %v2671 = vmul.f32 %v2623, %v2667
    %vm2672 = vcmp.ge.f32.partialorder %v2668, 0.0
    %vm2673 = vcmp.ge.f32.partialorder %v2669, 0.0
    %vm2674 = vcmp.ge.f32.partialorder %v2670, 0.0
    %vm2675 = vcmp.ge.f32.partialorder %v2671, 0.0
    %v2676 = vmul.f32 %v2668, 0.2
    %v2677 = vmul.f32 %v2669, 0.2
    %v2678 = vmul.f32 %v2670, 0.2
    %v2679 = vmul.f32 %v2671, 0.2
    %v2680 = vsel %vm2672, %v2668, %v2676
    %v2681 = vsel %vm2673, %v2669, %v2677
    %v2682 = vsel %vm2674, %v2670, %v2678
    %v2683 = vsel %vm2675, %v2671, %v2679
    %2688 = vrot.lane.b32.xlu0 %v2413, 14
    %v2689 = vpop.permute.xlu0 %2688
    %2690 = vrot.lane.b32.xlu0 %v2415, 14
    %v2691 = vpop.permute.xlu0 %2690
    %2692 = vrot.lane.b32.xlu0 %v2417, 14
    %v2693 = vpop.permute.xlu0 %2692
    %2694 = vrot.lane.b32.xlu0 %v2419, 14
    %v2695 = vpop.permute.xlu0 %2694
    %2696 = vrot.lane.b32.xlu0 %v2423, 14
    %v2697 = vpop.permute.xlu0 %2696
    %2698 = vrot.lane.b32.xlu0 %v2425, 14
    %v2699 = vpop.permute.xlu0 %2698
    %2700 = vrot.lane.b32.xlu0 %v2427, 14
    %v2701 = vpop.permute.xlu0 %2700
    %2702 = vrot.lane.b32.xlu0 %v2429, 14
    %v2703 = vpop.permute.xlu0 %2702
    %vm2704 = vcmask 113664
    %v2705 = vsel %vm2704, %v2689, %v2691
    %v2706 = vsel %vm2704, %v2693, %v2695
    %v2707 = vsel %vm2704, %v2697, %v2699
    %v2708 = vsel %vm2704, %v2701, %v2703
    %v2713 = vsel %vm2307, %v2705, 0.0
    %2714 = vadd.xlane.f32.xlu0 %v2713
    %v2715 = vpop.xlane.xlu0 %2714
    %v2716 = vsel %vm2307, %v2706, 0.0
    %2717 = vadd.xlane.f32.xlu0 %v2716
    %v2718 = vpop.xlane.xlu0 %2717
    %v2719 = vsel %vm2307, %v2707, 0.0
    %2720 = vadd.xlane.f32.xlu0 %v2719
    %v2721 = vpop.xlane.xlu0 %2720
    %v2722 = vsel %vm2307, %v2708, 0.0
    %2723 = vadd.xlane.f32.xlu0 %v2722
    %v2724 = vpop.xlane.xlu0 %2723
    %v2725 = vmul.f32 %v2715, %v2443
    %v2726 = vmul.f32 %v2718, %v2443
    %v2727 = vmul.f32 %v2721, %v2443
    %v2728 = vmul.f32 %v2724, %v2443
    %v2729 = vsub.f32 %v2413, %v2725
    %v2730 = vsub.f32 %v2415, %v2725
    %v2731 = vsub.f32 %v2417, %v2726
    %v2732 = vsub.f32 %v2419, %v2726
    %v2733 = vsub.f32 %v2423, %v2727
    %v2734 = vsub.f32 %v2425, %v2727
    %v2735 = vsub.f32 %v2427, %v2728
    %v2736 = vsub.f32 %v2429, %v2728
    %v2737 = vmul.f32 %v2729, %v2729
    %v2738 = vmul.f32 %v2730, %v2730
    %v2739 = vmul.f32 %v2731, %v2731
    %v2740 = vmul.f32 %v2732, %v2732
    %v2741 = vmul.f32 %v2733, %v2733
    %v2742 = vmul.f32 %v2734, %v2734
    %v2743 = vmul.f32 %v2735, %v2735
    %v2744 = vmul.f32 %v2736, %v2736
    %2753 = vrot.lane.b32.xlu0 %v2737, 14
    %v2754 = vpop.permute.xlu0 %2753
    %2755 = vrot.lane.b32.xlu0 %v2738, 14
    %v2756 = vpop.permute.xlu0 %2755
    %2757 = vrot.lane.b32.xlu0 %v2739, 14
    %v2758 = vpop.permute.xlu0 %2757
    %2759 = vrot.lane.b32.xlu0 %v2740, 14
    %v2760 = vpop.permute.xlu0 %2759
    %2761 = vrot.lane.b32.xlu0 %v2741, 14
    %v2762 = vpop.permute.xlu0 %2761
    %2763 = vrot.lane.b32.xlu0 %v2742, 14
    %v2764 = vpop.permute.xlu0 %2763
    %2765 = vrot.lane.b32.xlu0 %v2743, 14
    %v2766 = vpop.permute.xlu0 %2765
    %2767 = vrot.lane.b32.xlu0 %v2744, 14
    %v2768 = vpop.permute.xlu0 %2767
    %v2769 = vsel %vm2704, %v2754, %v2756
    %v2770 = vsel %vm2704, %v2758, %v2760
    %v2771 = vsel %vm2704, %v2762, %v2764
    %v2772 = vsel %vm2704, %v2766, %v2768
    %v2777 = vsel %vm2307, %v2769, 0.0
    %2778 = vadd.xlane.f32.xlu0 %v2777
    %v2779 = vpop.xlane.xlu0 %2778
    %v2780 = vsel %vm2307, %v2770, 0.0
    %2781 = vadd.xlane.f32.xlu0 %v2780
    %v2782 = vpop.xlane.xlu0 %2781
    %v2783 = vsel %vm2307, %v2771, 0.0
    %2784 = vadd.xlane.f32.xlu0 %v2783
    %v2785 = vpop.xlane.xlu0 %2784
    %v2786 = vsel %vm2307, %v2772, 0.0
    %2787 = vadd.xlane.f32.xlu0 %v2786
    %v2788 = vpop.xlane.xlu0 %2787
    %v2789 = vmul.f32 %v2779, %v2443
    %v2790 = vmul.f32 %v2782, %v2443
    %v2791 = vmul.f32 %v2785, %v2443
    %v2792 = vmul.f32 %v2788, %v2443
    %v2793 = vadd.f32 %v2789, 1e-05
    %v2794 = vadd.f32 %v2790, 1e-05
    %v2795 = vadd.f32 %v2791, 1e-05
    %v2796 = vadd.f32 %v2792, 1e-05
    %v2797 = vrsqrt.pop %v2793
    %v2798 = vrsqrt.pop %v2794
    %v2799 = vrsqrt.pop %v2795
    %v2800 = vrsqrt.pop %v2796
    %v2801 = vmul.f32 %v2729, %v2797
    %v2802 = vmul.f32 %v2730, %v2797
    %v2803 = vmul.f32 %v2731, %v2798
    %v2804 = vmul.f32 %v2732, %v2798
    %v2805 = vmul.f32 %v2733, %v2799
    %v2806 = vmul.f32 %v2734, %v2799
    %v2807 = vmul.f32 %v2735, %v2800
    %v2808 = vmul.f32 %v2736, %v2800
    %vm2809 = vcmp.ge.f32.partialorder %v2801, 0.0
    %vm2810 = vcmp.ge.f32.partialorder %v2802, 0.0
    %vm2811 = vcmp.ge.f32.partialorder %v2803, 0.0
    %vm2812 = vcmp.ge.f32.partialorder %v2804, 0.0
    %vm2813 = vcmp.ge.f32.partialorder %v2805, 0.0
    %vm2814 = vcmp.ge.f32.partialorder %v2806, 0.0
    %vm2815 = vcmp.ge.f32.partialorder %v2807, 0.0
    %vm2816 = vcmp.ge.f32.partialorder %v2808, 0.0
    %v2817 = vmul.f32 %v2801, 0.2
    %v2818 = vmul.f32 %v2802, 0.2
    %v2819 = vmul.f32 %v2803, 0.2
    %v2820 = vmul.f32 %v2804, 0.2
    %v2821 = vmul.f32 %v2805, 0.2
    %v2822 = vmul.f32 %v2806, 0.2
    %v2823 = vmul.f32 %v2807, 0.2
    %v2824 = vmul.f32 %v2808, 0.2
    %v2825 = vsel %vm2809, %v2801, %v2817
    %v2826 = vsel %vm2810, %v2802, %v2818
    %v2827 = vsel %vm2811, %v2803, %v2819
    %v2828 = vsel %vm2812, %v2804, %v2820
    %v2829 = vsel %vm2813, %v2805, %v2821
    %v2830 = vsel %vm2814, %v2806, %v2822
    %v2831 = vsel %vm2815, %v2807, %v2823
    %v2832 = vsel %vm2816, %v2808, %v2824
    %v2833 = vpack.c.bf16 %v2493, %v2492
    %v2834 = vpack.c.bf16 %v2495, %v2494
    %v2835 = vpack.c.bf16 %v2589, %v2588
    %v2836 = vpack.c.bf16 %v2591, %v2590
    %v2837 = vpack.c.bf16 %v2681, %v2680
    %v2838 = vpack.c.bf16 %v2683, %v2682
    %v2839 = vpack.c.bf16 %v2827, %v2825
    %v2840 = vpack.c.bf16 %v2828, %v2826
    %v2841 = vpack.c.bf16 %v2831, %v2829
    %v2842 = vpack.c.bf16 %v2832, %v2830
    %v2845 = vsel %vm2307, %v2833, %v2835
    %v2848 = vsel %vm2307, %v2834, %v2836
    %v2850 = vsel %vm2326, %v2845, %v2837
    %v2852 = vsel %vm2326, %v2848, %v2838
    %v2854 = vsel %vm2339, %v2850, %v2839
    %v2857 = vsel %vm2339, %v2852, %v2841
    %v2859 = vld [vmem:[%s5] sm:$0xf]
    %v2860 = vld [vmem:[%s5 + $0x4] sm:$0xf]
    %v2861 = vld [vmem:[%s5 + $0x8] sm:$0xf]
    %v2862 = vld [vmem:[%s5 + $0xc] sm:$0xf]
    %v2867 = vunpack.c.l.b16 %v2859
    %v2868 = vunpack.c.l.b16 %v2860
    %v2869 = vunpack.c.l.b16 %v2861
    %v2870 = vunpack.c.l.b16 %v2862
    %v2871 = vpack.c.b16 %v2868, %v2867
    %v2872 = vpack.c.b16 %v2870, %v2869
    %v2874 = vsel %vm150, %v2871, 0
    %v2877 = vsel %vm150, %v2872, 0
    %2879 = vmatprep.subr.bf16.mxu0 %v2840
    %2880 = vmatpush1.bf16.msra.mxu0 %v2854
    %2881 = vmatprep.subr.bf16.mxu0 %v2842
    %2882 = vmatpush1.bf16.msra.mxu0 %v2857
    %2883 = vmatprep.subr.bf16.mxu0 0
    %2884 = vmatpush1.bf16.msra.mxu0 0
    %2885 = vmatprep.subr.bf16.mxu0 0
    %2886 = vmatpush1.bf16.msra.mxu0 0
    %2887 = vmatprep.subr.bf16.mxu0 0
    %2888 = vmatpush1.bf16.msra.mxu0 0
    %2889 = vmatprep.subr.bf16.mxu0 0
    %2890 = vmatpush1.bf16.msra.mxu0 0
    %2891 = vmatprep.subr.bf16.mxu0 0
    %2892 = vmatpush1.bf16.msra.mxu0 0
    %2893 = vmatprep.subr.bf16.mxu0 0
    %2894 = vmatpush1.bf16.msra.mxu0 0
    %2895 = vmatprep.subr.bf16.mxu0 0
    %2896 = vmatpush1.bf16.msra.mxu0 0
    %2897 = vmatprep.subr.bf16.mxu0 0
    %2898 = vmatpush1.bf16.msra.mxu0 0
    %2899 = vmatprep.subr.bf16.mxu0 0
    %2900 = vmatpush1.bf16.msra.mxu0 0
    %2901 = vmatprep.subr.bf16.mxu0 0
    %2902 = vmatpush1.bf16.msra.mxu0 0
    %2903 = vmatprep.subr.bf16.mxu0 0
    %2904 = vmatpush1.bf16.msra.mxu0 0
    %2905 = vmatprep.subr.bf16.mxu0 0
    %2906 = vmatpush1.bf16.msra.mxu0 0
    %2907 = vmatprep.subr.bf16.mxu0 0
    %2908 = vmatpush1.bf16.msra.mxu0 0
    %2909 = vmatprep.subr.bf16.mxu0 0
    %2910 = vmatpush1.bf16.msra.mxu0 0
    %2911 = vmatprep.mubr.bf16.mxu0 0
    %2912 = vmatmul.mubr.bf16.gmra.mrb[0].mxu0 %v2874
    %v2913 = vpop.f32.mrb[0].mxu0
    %v2914 = vadd.f32 0.0, %v2913
    %v2915 = vpop.f32.mrb[0].mxu0
    %v2916 = vadd.f32 0.0, %v2915
    %v2917 = vpop.f32.mrb[0].mxu0
    %v2918 = vadd.f32 0.0, %v2917
    %v2919 = vpop.f32.mrb[0].mxu0
    %v2920 = vadd.f32 0.0, %v2919
    %2921 = vmatprep.mubr.bf16.mxu0 0
    %2922 = vmatmul.mubr.bf16.gmra.mrb[0].mxu0 %v2877
    %v2923 = vpop.f32.mrb[0].mxu0
    %v2924 = vadd.f32 0.0, %v2923
    %v2925 = vpop.f32.mrb[0].mxu0
    %v2926 = vadd.f32 0.0, %v2925
    %v2927 = vpop.f32.mrb[0].mxu0
    %v2928 = vadd.f32 0.0, %v2927
    %v2929 = vpop.f32.mrb[0].mxu0
    %v2930 = vadd.f32 0.0, %v2929
    %2931 = vdwg.mxu0
    %v2932 = vsel %vm2307, %v2914, 0.0
    %2933 = vadd.xlane.f32.xlu0 %v2932
    %v2934 = vpop.xlane.xlu0 %2933
    %v2935 = vsel %vm2307, %v2918, 0.0
    %2936 = vadd.xlane.f32.xlu0 %v2935
    %v2937 = vpop.xlane.xlu0 %2936
    %v2938 = vsel %vm2307, %v2924, 0.0
    %2939 = vadd.xlane.f32.xlu0 %v2938
    %v2940 = vpop.xlane.xlu0 %2939
    %v2941 = vsel %vm2307, %v2928, 0.0
    %2942 = vadd.xlane.f32.xlu0 %v2941
    %v2943 = vpop.xlane.xlu0 %2942
    %v2944 = vmul.f32 %v2934, %v2443
    %v2945 = vmul.f32 %v2937, %v2443
    %v2946 = vmul.f32 %v2940, %v2443
    %v2947 = vmul.f32 %v2943, %v2443
    %v2948 = vsub.f32 %v2914, %v2944
    %v2949 = vsub.f32 %v2918, %v2945
    %v2950 = vsub.f32 %v2924, %v2946
    %v2951 = vsub.f32 %v2928, %v2947
    %v2952 = vmul.f32 %v2948, %v2948
    %v2953 = vmul.f32 %v2949, %v2949
    %v2954 = vmul.f32 %v2950, %v2950
    %v2955 = vmul.f32 %v2951, %v2951
    %v2956 = vsel %vm2307, %v2952, 0.0
    %2957 = vadd.xlane.f32.xlu0 %v2956
    %v2958 = vpop.xlane.xlu0 %2957
    %v2959 = vsel %vm2307, %v2953, 0.0
    %2960 = vadd.xlane.f32.xlu0 %v2959
    %v2961 = vpop.xlane.xlu0 %2960
    %v2962 = vsel %vm2307, %v2954, 0.0
    %2963 = vadd.xlane.f32.xlu0 %v2962
    %v2964 = vpop.xlane.xlu0 %2963
    %v2965 = vsel %vm2307, %v2955, 0.0
    %2966 = vadd.xlane.f32.xlu0 %v2965
    %v2967 = vpop.xlane.xlu0 %2966
    %v2968 = vmul.f32 %v2958, %v2443
    %v2969 = vmul.f32 %v2961, %v2443
    %v2970 = vmul.f32 %v2964, %v2443
    %v2971 = vmul.f32 %v2967, %v2443
    %v2972 = vadd.f32 %v2968, 1e-05
    %v2973 = vadd.f32 %v2969, 1e-05
    %v2974 = vadd.f32 %v2970, 1e-05
    %v2975 = vadd.f32 %v2971, 1e-05
    %v2976 = vrsqrt.pop %v2972
    %v2977 = vrsqrt.pop %v2973
    %v2978 = vrsqrt.pop %v2974
    %v2979 = vrsqrt.pop %v2975
    %v2980 = vmul.f32 %v2948, %v2976
    %v2981 = vmul.f32 %v2949, %v2977
    %v2982 = vmul.f32 %v2950, %v2978
    %v2983 = vmul.f32 %v2951, %v2979
    %vm2984 = vcmp.ge.f32.partialorder %v2980, 0.0
    %vm2985 = vcmp.ge.f32.partialorder %v2981, 0.0
    %vm2986 = vcmp.ge.f32.partialorder %v2982, 0.0
    %vm2987 = vcmp.ge.f32.partialorder %v2983, 0.0
    %v2988 = vmul.f32 %v2980, 0.2
    %v2989 = vmul.f32 %v2981, 0.2
    %v2990 = vmul.f32 %v2982, 0.2
    %v2991 = vmul.f32 %v2983, 0.2
    %v2992 = vsel %vm2984, %v2980, %v2988
    %v2993 = vsel %vm2985, %v2981, %v2989
    %v2994 = vsel %vm2986, %v2982, %v2990
    %v2995 = vsel %vm2987, %v2983, %v2991
    %3000 = vrot.lane.b32.xlu0 %v2992, 12
    %v3001 = vpop.permute.xlu0 %3000
    %3002 = vrot.lane.b32.xlu0 %v2993, 12
    %v3003 = vpop.permute.xlu0 %3002
    %3004 = vrot.lane.b32.xlu0 %v2994, 12
    %v3005 = vpop.permute.xlu0 %3004
    %3006 = vrot.lane.b32.xlu0 %v2995, 12
    %v3007 = vpop.permute.xlu0 %3006
    %v3012 = vadd.f32 %v1769, %v3001
    %v3013 = vadd.f32 %v1770, %v3003
    %v3014 = vadd.f32 %v1771, %v3005
    %v3015 = vadd.f32 %v1772, %v3007
    %3020 = vrot.lane.b32.xlu0 %v2914, 90
    %v3021 = vpop.permute.xlu0 %3020
    %3022 = vrot.lane.b32.xlu0 %v2918, 90
    %v3023 = vpop.permute.xlu0 %3022
    %3024 = vrot.lane.b32.xlu0 %v2924, 90
    %v3025 = vpop.permute.xlu0 %3024
    %3026 = vrot.lane.b32.xlu0 %v2928, 90
    %v3027 = vpop.permute.xlu0 %3026
    %v3032 = vsel %vm2307, %v3021, 0.0
    %3033 = vadd.xlane.f32.xlu0 %v3032
    %v3034 = vpop.xlane.xlu0 %3033
    %v3035 = vsel %vm2307, %v3023, 0.0
    %3036 = vadd.xlane.f32.xlu0 %v3035
    %v3037 = vpop.xlane.xlu0 %3036
    %v3038 = vsel %vm2307, %v3025, 0.0
    %3039 = vadd.xlane.f32.xlu0 %v3038
    %v3040 = vpop.xlane.xlu0 %3039
    %v3041 = vsel %vm2307, %v3027, 0.0
    %3042 = vadd.xlane.f32.xlu0 %v3041
    %v3043 = vpop.xlane.xlu0 %3042
    %v3044 = vmul.f32 %v3034, %v2443
    %v3045 = vmul.f32 %v3037, %v2443
    %v3046 = vmul.f32 %v3040, %v2443
    %v3047 = vmul.f32 %v3043, %v2443
    %v3048 = vsub.f32 %v2914, %v3044
    %v3049 = vsub.f32 %v2918, %v3045
    %v3050 = vsub.f32 %v2924, %v3046
    %v3051 = vsub.f32 %v2928, %v3047
    %v3052 = vmul.f32 %v3048, %v3048
    %v3053 = vmul.f32 %v3049, %v3049
    %v3054 = vmul.f32 %v3050, %v3050
    %v3055 = vmul.f32 %v3051, %v3051
    %3060 = vrot.lane.b32.xlu0 %v3052, 90
    %v3061 = vpop.permute.xlu0 %3060
    %3062 = vrot.lane.b32.xlu0 %v3053, 90
    %v3063 = vpop.permute.xlu0 %3062
    %3064 = vrot.lane.b32.xlu0 %v3054, 90
    %v3065 = vpop.permute.xlu0 %3064
    %3066 = vrot.lane.b32.xlu0 %v3055, 90
    %v3067 = vpop.permute.xlu0 %3066
    %v3072 = vsel %vm2307, %v3061, 0.0
    %3073 = vadd.xlane.f32.xlu0 %v3072
    %v3074 = vpop.xlane.xlu0 %3073
    %v3075 = vsel %vm2307, %v3063, 0.0
    %3076 = vadd.xlane.f32.xlu0 %v3075
    %v3077 = vpop.xlane.xlu0 %3076
    %v3078 = vsel %vm2307, %v3065, 0.0
    %3079 = vadd.xlane.f32.xlu0 %v3078
    %v3080 = vpop.xlane.xlu0 %3079
    %v3081 = vsel %vm2307, %v3067, 0.0
    %3082 = vadd.xlane.f32.xlu0 %v3081
    %v3083 = vpop.xlane.xlu0 %3082
    %v3084 = vmul.f32 %v3074, %v2443
    %v3085 = vmul.f32 %v3077, %v2443
    %v3086 = vmul.f32 %v3080, %v2443
    %v3087 = vmul.f32 %v3083, %v2443
    %v3088 = vadd.f32 %v3084, 1e-05
    %v3089 = vadd.f32 %v3085, 1e-05
    %v3090 = vadd.f32 %v3086, 1e-05
    %v3091 = vadd.f32 %v3087, 1e-05
    %v3092 = vrsqrt.pop %v3088
    %v3093 = vrsqrt.pop %v3089
    %v3094 = vrsqrt.pop %v3090
    %v3095 = vrsqrt.pop %v3091
    %v3096 = vmul.f32 %v3048, %v3092
    %v3097 = vmul.f32 %v3049, %v3093
    %v3098 = vmul.f32 %v3050, %v3094
    %v3099 = vmul.f32 %v3051, %v3095
    %vm3100 = vcmp.ge.f32.partialorder %v3096, 0.0
    %vm3101 = vcmp.ge.f32.partialorder %v3097, 0.0
    %vm3102 = vcmp.ge.f32.partialorder %v3098, 0.0
    %vm3103 = vcmp.ge.f32.partialorder %v3099, 0.0
    %v3104 = vmul.f32 %v3096, 0.2
    %v3105 = vmul.f32 %v3097, 0.2
    %v3106 = vmul.f32 %v3098, 0.2
    %v3107 = vmul.f32 %v3099, 0.2
    %v3108 = vsel %vm3100, %v3096, %v3104
    %v3109 = vsel %vm3101, %v3097, %v3105
    %v3110 = vsel %vm3102, %v3098, %v3106
    %v3111 = vsel %vm3103, %v3099, %v3107
    %3116 = vrot.lane.b32.xlu0 %v3108, 36
    %v3117 = vpop.permute.xlu0 %3116
    %3118 = vrot.lane.b32.xlu0 %v3109, 36
    %v3119 = vpop.permute.xlu0 %3118
    %3120 = vrot.lane.b32.xlu0 %v3110, 36
    %v3121 = vpop.permute.xlu0 %3120
    %3122 = vrot.lane.b32.xlu0 %v3111, 36
    %v3123 = vpop.permute.xlu0 %3122
    %v3128 = vadd.f32 %v1885, %v3117
    %v3129 = vadd.f32 %v1886, %v3119
    %v3130 = vadd.f32 %v1887, %v3121
    %v3131 = vadd.f32 %v1888, %v3123
    %3132 = vrot.lane.b32.xlu0 %v2914, 52
    %v3133 = vpop.permute.xlu0 %3132
    %3134 = vrot.lane.b32.xlu0 %v2918, 52
    %v3135 = vpop.permute.xlu0 %3134
    %3136 = vrot.lane.b32.xlu0 %v2924, 52
    %v3137 = vpop.permute.xlu0 %3136
    %3138 = vrot.lane.b32.xlu0 %v2928, 52
    %v3139 = vpop.permute.xlu0 %3138
    %v3144 = vsel %vm2307, %v3133, 0.0
    %3145 = vadd.xlane.f32.xlu0 %v3144
    %v3146 = vpop.xlane.xlu0 %3145
    %v3147 = vsel %vm2307, %v3135, 0.0
    %3148 = vadd.xlane.f32.xlu0 %v3147
    %v3149 = vpop.xlane.xlu0 %3148
    %v3150 = vsel %vm2307, %v3137, 0.0
    %3151 = vadd.xlane.f32.xlu0 %v3150
    %v3152 = vpop.xlane.xlu0 %3151
    %v3153 = vsel %vm2307, %v3139, 0.0
    %3154 = vadd.xlane.f32.xlu0 %v3153
    %v3155 = vpop.xlane.xlu0 %3154
    %v3156 = vmul.f32 %v3146, %v2443
    %v3157 = vmul.f32 %v3149, %v2443
    %v3158 = vmul.f32 %v3152, %v2443
    %v3159 = vmul.f32 %v3155, %v2443
    %v3160 = vsub.f32 %v2914, %v3156
    %v3161 = vsub.f32 %v2918, %v3157
    %v3162 = vsub.f32 %v2924, %v3158
    %v3163 = vsub.f32 %v2928, %v3159
    %v3164 = vmul.f32 %v3160, %v3160
    %v3165 = vmul.f32 %v3161, %v3161
    %v3166 = vmul.f32 %v3162, %v3162
    %v3167 = vmul.f32 %v3163, %v3163
    %3172 = vrot.lane.b32.xlu0 %v3164, 52
    %v3173 = vpop.permute.xlu0 %3172
    %3174 = vrot.lane.b32.xlu0 %v3165, 52
    %v3175 = vpop.permute.xlu0 %3174
    %3176 = vrot.lane.b32.xlu0 %v3166, 52
    %v3177 = vpop.permute.xlu0 %3176
    %3178 = vrot.lane.b32.xlu0 %v3167, 52
    %v3179 = vpop.permute.xlu0 %3178
    %v3184 = vsel %vm2307, %v3173, 0.0
    %3185 = vadd.xlane.f32.xlu0 %v3184
    %v3186 = vpop.xlane.xlu0 %3185
    %v3187 = vsel %vm2307, %v3175, 0.0
    %3188 = vadd.xlane.f32.xlu0 %v3187
    %v3189 = vpop.xlane.xlu0 %3188
    %v3190 = vsel %vm2307, %v3177, 0.0
    %3191 = vadd.xlane.f32.xlu0 %v3190
    %v3192 = vpop.xlane.xlu0 %3191
    %v3193 = vsel %vm2307, %v3179, 0.0
    %3194 = vadd.xlane.f32.xlu0 %v3193
    %v3195 = vpop.xlane.xlu0 %3194
    %v3196 = vmul.f32 %v3186, %v2443
    %v3197 = vmul.f32 %v3189, %v2443
    %v3198 = vmul.f32 %v3192, %v2443
    %v3199 = vmul.f32 %v3195, %v2443
    %v3200 = vadd.f32 %v3196, 1e-05
    %v3201 = vadd.f32 %v3197, 1e-05
    %v3202 = vadd.f32 %v3198, 1e-05
    %v3203 = vadd.f32 %v3199, 1e-05
    %v3204 = vrsqrt.pop %v3200
    %v3205 = vrsqrt.pop %v3201
    %v3206 = vrsqrt.pop %v3202
    %v3207 = vrsqrt.pop %v3203
    %v3208 = vmul.f32 %v3160, %v3204
    %v3209 = vmul.f32 %v3161, %v3205
    %v3210 = vmul.f32 %v3162, %v3206
    %v3211 = vmul.f32 %v3163, %v3207
    %vm3212 = vcmp.ge.f32.partialorder %v3208, 0.0
    %vm3213 = vcmp.ge.f32.partialorder %v3209, 0.0
    %vm3214 = vcmp.ge.f32.partialorder %v3210, 0.0
    %vm3215 = vcmp.ge.f32.partialorder %v3211, 0.0
    %v3216 = vmul.f32 %v3208, 0.2
    %v3217 = vmul.f32 %v3209, 0.2
    %v3218 = vmul.f32 %v3210, 0.2
    %v3219 = vmul.f32 %v3211, 0.2
    %v3220 = vsel %vm3212, %v3208, %v3216
    %v3221 = vsel %vm3213, %v3209, %v3217
    %v3222 = vsel %vm3214, %v3210, %v3218
    %v3223 = vsel %vm3215, %v3211, %v3219
    %3228 = vrot.lane.b32.xlu0 %v3220, 60
    %v3229 = vpop.permute.xlu0 %3228
    %3230 = vrot.lane.b32.xlu0 %v3221, 60
    %v3231 = vpop.permute.xlu0 %3230
    %3232 = vrot.lane.b32.xlu0 %v3222, 60
    %v3233 = vpop.permute.xlu0 %3232
    %3234 = vrot.lane.b32.xlu0 %v3223, 60
    %v3235 = vpop.permute.xlu0 %3234
    %v3240 = vadd.f32 %v2075, %v3229
    %v3241 = vadd.f32 %v2077, %v3231
    %v3242 = vadd.f32 %v2079, %v3233
    %v3243 = vadd.f32 %v2081, %v3235
    %3248 = vrot.lane.b32.xlu0 %v2914, 14
    %v3249 = vpop.permute.xlu0 %3248
    %3250 = vrot.lane.b32.xlu0 %v2916, 14
    %v3251 = vpop.permute.xlu0 %3250
    %3252 = vrot.lane.b32.xlu0 %v2918, 14
    %v3253 = vpop.permute.xlu0 %3252
    %3254 = vrot.lane.b32.xlu0 %v2920, 14
    %v3255 = vpop.permute.xlu0 %3254
    %3256 = vrot.lane.b32.xlu0 %v2924, 14
    %v3257 = vpop.permute.xlu0 %3256
    %3258 = vrot.lane.b32.xlu0 %v2926, 14
    %v3259 = vpop.permute.xlu0 %3258
    %3260 = vrot.lane.b32.xlu0 %v2928, 14
    %v3261 = vpop.permute.xlu0 %3260
    %3262 = vrot.lane.b32.xlu0 %v2930, 14
    %v3263 = vpop.permute.xlu0 %3262
    %v3264 = vsel %vm2704, %v3249, %v3251
    %v3265 = vsel %vm2704, %v3253, %v3255
    %v3266 = vsel %vm2704, %v3257, %v3259
    %v3267 = vsel %vm2704, %v3261, %v3263
    %v3272 = vsel %vm2307, %v3264, 0.0
    %3273 = vadd.xlane.f32.xlu0 %v3272
    %v3274 = vpop.xlane.xlu0 %3273
    %v3275 = vsel %vm2307, %v3265, 0.0
    %3276 = vadd.xlane.f32.xlu0 %v3275
    %v3277 = vpop.xlane.xlu0 %3276
    %v3278 = vsel %vm2307, %v3266, 0.0
    %3279 = vadd.xlane.f32.xlu0 %v3278
    %v3280 = vpop.xlane.xlu0 %3279
    %v3281 = vsel %vm2307, %v3267, 0.0
    %3282 = vadd.xlane.f32.xlu0 %v3281
    %v3283 = vpop.xlane.xlu0 %3282
    %v3284 = vmul.f32 %v3274, %v2443
    %v3285 = vmul.f32 %v3277, %v2443
    %v3286 = vmul.f32 %v3280, %v2443
    %v3287 = vmul.f32 %v3283, %v2443
    %v3288 = vsub.f32 %v2914, %v3284
    %v3289 = vsub.f32 %v2916, %v3284
    %v3290 = vsub.f32 %v2918, %v3285
    %v3291 = vsub.f32 %v2920, %v3285
    %v3292 = vsub.f32 %v2924, %v3286
    %v3293 = vsub.f32 %v2926, %v3286
    %v3294 = vsub.f32 %v2928, %v3287
    %v3295 = vsub.f32 %v2930, %v3287
    %v3296 = vmul.f32 %v3288, %v3288
    %v3297 = vmul.f32 %v3289, %v3289
    %v3298 = vmul.f32 %v3290, %v3290
    %v3299 = vmul.f32 %v3291, %v3291
    %v3300 = vmul.f32 %v3292, %v3292
    %v3301 = vmul.f32 %v3293, %v3293
    %v3302 = vmul.f32 %v3294, %v3294
    %v3303 = vmul.f32 %v3295, %v3295
    %3312 = vrot.lane.b32.xlu0 %v3296, 14
    %v3313 = vpop.permute.xlu0 %3312
    %3314 = vrot.lane.b32.xlu0 %v3297, 14
    %v3315 = vpop.permute.xlu0 %3314
    %3316 = vrot.lane.b32.xlu0 %v3298, 14
    %v3317 = vpop.permute.xlu0 %3316
    %3318 = vrot.lane.b32.xlu0 %v3299, 14
    %v3319 = vpop.permute.xlu0 %3318
    %3320 = vrot.lane.b32.xlu0 %v3300, 14
    %v3321 = vpop.permute.xlu0 %3320
    %3322 = vrot.lane.b32.xlu0 %v3301, 14
    %v3323 = vpop.permute.xlu0 %3322
    %3324 = vrot.lane.b32.xlu0 %v3302, 14
    %v3325 = vpop.permute.xlu0 %3324
    %3326 = vrot.lane.b32.xlu0 %v3303, 14
    %v3327 = vpop.permute.xlu0 %3326
    %v3328 = vsel %vm2704, %v3313, %v3315
    %v3329 = vsel %vm2704, %v3317, %v3319
    %v3330 = vsel %vm2704, %v3321, %v3323
    %v3331 = vsel %vm2704, %v3325, %v3327
    %v3336 = vsel %vm2307, %v3328, 0.0
    %3337 = vadd.xlane.f32.xlu0 %v3336
    %v3338 = vpop.xlane.xlu0 %3337
    %v3339 = vsel %vm2307, %v3329, 0.0
    %3340 = vadd.xlane.f32.xlu0 %v3339
    %v3341 = vpop.xlane.xlu0 %3340
    %v3342 = vsel %vm2307, %v3330, 0.0
    %3343 = vadd.xlane.f32.xlu0 %v3342
    %v3344 = vpop.xlane.xlu0 %3343
    %v3345 = vsel %vm2307, %v3331, 0.0
    %3346 = vadd.xlane.f32.xlu0 %v3345
    %v3347 = vpop.xlane.xlu0 %3346
    %v3348 = vmul.f32 %v3338, %v2443
    %v3349 = vmul.f32 %v3341, %v2443
    %v3350 = vmul.f32 %v3344, %v2443
    %v3351 = vmul.f32 %v3347, %v2443
    %v3352 = vadd.f32 %v3348, 1e-05
    %v3353 = vadd.f32 %v3349, 1e-05
    %v3354 = vadd.f32 %v3350, 1e-05
    %v3355 = vadd.f32 %v3351, 1e-05
    %v3356 = vrsqrt.pop %v3352
    %v3357 = vrsqrt.pop %v3353
    %v3358 = vrsqrt.pop %v3354
    %v3359 = vrsqrt.pop %v3355
    %v3360 = vmul.f32 %v3288, %v3356
    %v3361 = vmul.f32 %v3289, %v3356
    %v3362 = vmul.f32 %v3290, %v3357
    %v3363 = vmul.f32 %v3291, %v3357
    %v3364 = vmul.f32 %v3292, %v3358
    %v3365 = vmul.f32 %v3293, %v3358
    %v3366 = vmul.f32 %v3294, %v3359
    %v3367 = vmul.f32 %v3295, %v3359
    %vm3368 = vcmp.ge.f32.partialorder %v3360, 0.0
    %vm3369 = vcmp.ge.f32.partialorder %v3361, 0.0
    %vm3370 = vcmp.ge.f32.partialorder %v3362, 0.0
    %vm3371 = vcmp.ge.f32.partialorder %v3363, 0.0
    %vm3372 = vcmp.ge.f32.partialorder %v3364, 0.0
    %vm3373 = vcmp.ge.f32.partialorder %v3365, 0.0
    %vm3374 = vcmp.ge.f32.partialorder %v3366, 0.0
    %vm3375 = vcmp.ge.f32.partialorder %v3367, 0.0
    %v3376 = vmul.f32 %v3360, 0.2
    %v3377 = vmul.f32 %v3361, 0.2
    %v3378 = vmul.f32 %v3362, 0.2
    %v3379 = vmul.f32 %v3363, 0.2
    %v3380 = vmul.f32 %v3364, 0.2
    %v3381 = vmul.f32 %v3365, 0.2
    %v3382 = vmul.f32 %v3366, 0.2
    %v3383 = vmul.f32 %v3367, 0.2
    %v3384 = vsel %vm3368, %v3360, %v3376
    %v3385 = vsel %vm3369, %v3361, %v3377
    %v3386 = vsel %vm3370, %v3362, %v3378
    %v3387 = vsel %vm3371, %v3363, %v3379
    %v3388 = vsel %vm3372, %v3364, %v3380
    %v3389 = vsel %vm3373, %v3365, %v3381
    %v3390 = vsel %vm3374, %v3366, %v3382
    %v3391 = vsel %vm3375, %v3367, %v3383
    %3400 = vrot.lane.b32.xlu0 %v3384, 84
    %v3401 = vpop.permute.xlu0 %3400
    %3402 = vrot.lane.b32.xlu0 %v3385, 84
    %v3403 = vpop.permute.xlu0 %3402
    %3404 = vrot.lane.b32.xlu0 %v3386, 84
    %v3405 = vpop.permute.xlu0 %3404
    %3406 = vrot.lane.b32.xlu0 %v3387, 84
    %v3407 = vpop.permute.xlu0 %3406
    %3408 = vrot.lane.b32.xlu0 %v3388, 84
    %v3409 = vpop.permute.xlu0 %3408
    %3410 = vrot.lane.b32.xlu0 %v3389, 84
    %v3411 = vpop.permute.xlu0 %3410
    %3412 = vrot.lane.b32.xlu0 %v3390, 84
    %v3413 = vpop.permute.xlu0 %3412
    %3414 = vrot.lane.b32.xlu0 %v3391, 84
    %v3415 = vpop.permute.xlu0 %3414
    %vm3416 = vcmask 687104
    %v3417 = vsel %vm3416, %v3401, %v3403
    %v3418 = vsel %vm3416, %v3405, %v3407
    %v3419 = vsel %vm3416, %v3409, %v3411
    %v3420 = vsel %vm3416, %v3413, %v3415
    %v3425 = vadd.f32 %v2190, %v3417
    %v3426 = vadd.f32 %v2191, %v3418
    %v3427 = vadd.f32 %v2192, %v3419
    %v3428 = vadd.f32 %v2193, %v3420
    %v3429 = vld [vmem:[%s6] sm:$0xff]
    %v3430 = vld [vmem:[%s6 + $0x8] sm:$0xff]
    %v3431 = vld [vmem:[%s6 + $0x10] sm:$0xff]
    %v3432 = vld [vmem:[%s6 + $0x18] sm:$0xff]
    %3434 = vset.pattern.permute.xlu0 0
    %3435 = vperm.xlu0 %3434, %v3429
    %v3436 = vpop.permute.xlu0 %3435
    %3439 = vset.pattern.permute.xlu0 0
    %3440 = vperm.xlu0 %3439, %v3430
    %v3441 = vpop.permute.xlu0 %3440
    %3444 = vset.pattern.permute.xlu0 0
    %3445 = vperm.xlu0 %3444, %v3431
    %v3446 = vpop.permute.xlu0 %3445
    %3449 = vset.pattern.permute.xlu0 0
    %3450 = vperm.xlu0 %3449, %v3432
    %v3451 = vpop.permute.xlu0 %3450
    %v3453 = vmul.f32 %v3012, %v3436
    %v3454 = vmul.f32 %v3013, %v3441
    %v3455 = vmul.f32 %v3014, %v3446
    %v3456 = vmul.f32 %v3015, %v3451
    %vm3457 = vcmask 408672
    %v3458 = vsel %vm3457, %v3453, 0.0
    %v3459 = vsel %vm3457, %v3454, 0.0
    %v3460 = vadd.f32 %v3458, %v3459
    %v3461 = vsel %vm3457, %v3455, 0.0
    %v3462 = vadd.f32 %v3460, %v3461
    %v3463 = vsel %vm3457, %v3456, 0.0
    %v3464 = vadd.f32 %v3462, %v3463
    %v3465 = vrot.slane %v3464, 4
    %v3466 = vadd.f32 %v3464, %v3465
    %v3467 = vrot.slane %v3466, 2
    %v3468 = vadd.f32 %v3466, %v3467
    %v3469 = vrot.slane %v3468, 1
    %v3470 = vadd.f32 %v3468, %v3469
    %v3471 = vmul.f32 %v3128, %v3436
    %v3472 = vmul.f32 %v3129, %v3441
    %v3473 = vmul.f32 %v3130, %v3446
    %v3474 = vmul.f32 %v3131, %v3451
    %vm3475 = vcmask 917072
    %v3476 = vsel %vm3475, %v3471, 0.0
    %v3477 = vsel %vm3475, %v3472, 0.0
    %v3478 = vadd.f32 %v3476, %v3477
    %v3479 = vsel %vm3475, %v3473, 0.0
    %v3480 = vadd.f32 %v3478, %v3479
    %v3481 = vsel %vm3475, %v3474, 0.0
    %v3482 = vadd.f32 %v3480, %v3481
    %v3483 = vrot.slane %v3482, 4
    %v3484 = vadd.f32 %v3482, %v3483
    %v3485 = vrot.slane %v3484, 2
    %v3486 = vadd.f32 %v3484, %v3485
    %v3487 = vrot.slane %v3486, 1
    %v3488 = vadd.f32 %v3486, %v3487
    %v3489 = vmul.f32 %v3240, %v3436
    %v3490 = vmul.f32 %v3241, %v3441
    %v3491 = vmul.f32 %v3242, %v3446
    %v3492 = vmul.f32 %v3243, %v3451
    %vm3493 = vcmask 375872
    %v3494 = vsel %vm3493, %v3489, 0.0
    %v3495 = vsel %vm3493, %v3490, 0.0
    %v3496 = vadd.f32 %v3494, %v3495
    %v3497 = vsel %vm3493, %v3491, 0.0
    %v3498 = vadd.f32 %v3496, %v3497
    %v3499 = vsel %vm3493, %v3492, 0.0
    %v3500 = vadd.f32 %v3498, %v3499
    %v3501 = vrot.slane %v3500, 4
    %v3502 = vadd.f32 %v3500, %v3501
    %v3503 = vrot.slane %v3502, 2
    %v3504 = vadd.f32 %v3502, %v3503
    %v3505 = vrot.slane %v3504, 1
    %v3506 = vadd.f32 %v3504, %v3505
    %v3507 = vmul.f32 %v3425, %v3436
    %v3508 = vmul.f32 %v3426, %v3441
    %v3509 = vmul.f32 %v3427, %v3446
    %v3510 = vmul.f32 %v3428, %v3451
    %vm3511 = vcmask 884272
    %v3512 = vsel %vm3511, %v3507, 0.0
    %v3513 = vsel %vm3511, %v3508, 0.0
    %v3514 = vadd.f32 %v3512, %v3513
    %v3515 = vsel %vm3511, %v3509, 0.0
    %v3516 = vadd.f32 %v3514, %v3515
    %v3517 = vsel %vm3511, %v3510, 0.0
    %v3518 = vadd.f32 %v3516, %v3517
    %v3519 = vrot.slane %v3518, 4
    %v3520 = vadd.f32 %v3518, %v3519
    %v3521 = vrot.slane %v3520, 2
    %v3522 = vadd.f32 %v3520, %v3521
    %v3523 = vrot.slane %v3522, 1
    %v3524 = vadd.f32 %v3522, %v3523
    %3526 = vrot.lane.b32.xlu0 %v3488, 66
    %v3527 = vpop.permute.xlu0 %3526
    %3530 = vrot.lane.b32.xlu0 %v3506, 4
    %v3531 = vpop.permute.xlu0 %3530
    %3534 = vrot.lane.b32.xlu0 %v3524, 70
    %v3535 = vpop.permute.xlu0 %3534
    %vm3537 = vcmask 1040384
    %v3538 = vsel %vm3537, %v3470, %v3527
    %vm3539 = vcmask 1041408
    %v3540 = vsel %vm3539, %v3538, %v3531
    %vm3541 = vcmask 1042432
    %v3542 = vsel %vm3541, %v3540, %v3535
    %v3543 = vld [vmem:[#allocation2] sm:$0x1]
    %v3545 = vlaneseq
    %v3546 = vshrl.u32 %v3545, 7
    %v3547 = vsub.s32 0, %v3546
    %v3548 = vrot.slane %v3543, %v3547
    %3549 = vset.pattern.permute.xlu0 0
    %3550 = vperm.xlu0 %3549, %v3548
    %v3551 = vpop.permute.xlu0 %3550
    %v3553 = vadd.f32 %v3542, %v3551
    %3555 = vrot.lane.b32.xlu0 %v3553, 116
    %v3556 = vpop.permute.xlu0 %3555
    %v3558 = vsel %vm2307, %v3556, 0.0
    %3559 = vst [vmem:[#allocation3] sm:$0xf] %v3558
    // Predicated region
    $region34: #{tpu_custom_call.1} parent=1 // pred_check
      _
    $region35: #{tpu_custom_call.1} parent=1 // pred_check_branch
      %3561 = sbr.rel (0) target = $region37
    $region36: #{tpu_custom_call.1} parent=1 // pred_region
      %s3563 = ssub.s32 64, 64
      %3564 = vsyncadd [#allocation4], %s3563
      %s3566 = sshll.u32 [#allocation3], 4
      %s3567 = int_to_ptr.vmem [resolvable:$true] %s3566
      %3569 = dma.vmem_to_hbm [thread:$0]  %s3567, 64, %s8, [#allocation4]
    $region37: #{tpu_custom_call.1} parent=1 // pred_fallthru
      _
    // Predicated region
    $region38: #{tpu_custom_call.1} parent=1 // pred_check
      _
    $region39: #{tpu_custom_call.1} parent=1 // pred_check_branch
      %3571 = sbr.rel (0) target = $region41
    $region40: #{tpu_custom_call.1} parent=1 // pred_region
      %3572 = dma.done [#allocation4], 64
    $region41: #{tpu_custom_call.1} parent=1 // pred_fallthru
      _
    %3573 = vsyncpa [#allocation4], 1

</llo_original>
